<compile_context>
chip_gen: v7x
topology: tpu7x:2x2x1
jax: 0.10.0
libtpu: 0.0.40
codegen_flags: <defaults>
</compile_context>

<pallas_src>
import math

import jax
import jax.numpy as jnp
from jax.experimental import pallas as pl
from jax.experimental.pallas import tpu as pltpu


# ---------------------------------------------------------------------------
# Fused kernel: [BN-affine + LeakyReLU] -> [optional 2x2 avg-pool] -> conv3x3
# + bias, plus (optionally) per-image sum / sum-of-squares of the conv output.
# One grid step = one batch element.
# ---------------------------------------------------------------------------
def _make_conv_kernel(H, W, Cin, Cout, *, act, pool, stats, slope=0.2):
    def kernel(*refs):
        if stats:
            x_ref, w_ref, b_ref, s_ref, t_ref, y_ref, ps_ref, pq_ref = refs
        else:
            x_ref, w_ref, b_ref, s_ref, t_ref, y_ref = refs

        x = x_ref[0].astype(jnp.float32)                 # (Hin, W, Cl)

        if act:
            # Previous layer's BatchNorm folded to y*scale+shift, then LeakyReLU.
            x = x * s_ref[0] + t_ref[0]
            x = jnp.where(x >= 0.0, x, slope * x)

        if pool:
            # Input arrives as (2H, W, 2*Cin): the wrapper folded each pair of W
            # columns into the lane dim (free row-major reshape), so the 2x2
            # average pool needs no strided / gather access at all.
            xr = x.reshape(H, 2, W, 2 * Cin)             # leading-dim split: free
            xh = xr[:, 0] + xr[:, 1]                     # pool along H
            x = (xh[:, :, :Cin] + xh[:, :, Cin:]) * 0.25  # pool along W (lane halves)

        # Zero-pad H by one row and pack the three dx taps into the lane dim so
        # each dy tap becomes a single K = 3*Cin matmul over a contiguous row
        # slab (im2col along dx).  No host-side jnp.pad, no non-contiguous
        # window copies, no strided ref reads.
        zrow = jnp.zeros((1, W, Cin), jnp.float32)
        xp = jnp.concatenate([zrow, x, zrow], axis=0)                 # (H+2, W, Cin)
        zcol = jnp.zeros((H + 2, 1, Cin), jnp.float32)
        x_m1 = jnp.concatenate([zcol, xp[:, :W - 1, :]], axis=1)      # tap at w-1
        x_p1 = jnp.concatenate([xp[:, 1:, :], zcol], axis=1)          # tap at w+1
        xcat = jnp.concatenate([x_m1, xp, x_p1], axis=-1)             # (H+2, W, 3*Cin)
        xcat = xcat.astype(jnp.bfloat16)                 # bf16 MXU operands, f32 accum

        # Three dy taps accumulated into a register-resident f32 accumulator;
        # the output block is written exactly once (and the BN partials reuse
        # the same value instead of re-reading VMEM).
        bias = b_ref[...].astype(jnp.float32)                         # (1, Cout)
        acc = jnp.dot(xcat[0:H].reshape(H * W, 3 * Cin), w_ref[0],
                      preferred_element_type=jnp.float32) + bias
        for dy in (1, 2):
            acc = acc + jnp.dot(xcat[dy:dy + H].reshape(H * W, 3 * Cin), w_ref[dy],
                                preferred_element_type=jnp.float32)

        y_ref[0] = acc.astype(y_ref.dtype)

        if stats:
            # BN statistic partials for this image (batch reduction happens on
            # host, it is a few-KB op).
            ps_ref[0] = jnp.sum(acc, axis=0, keepdims=True)
            pq_ref[0] = jnp.sum(acc * acc, axis=0, keepdims=True)

    return kernel


def conv3x3_block(x_in, w_hwio, bias, scale, shift, *, out_hw, act, pool,
                  stats, out_dtype):
    """Fused (affine+LReLU) -> (optional 2x2 avg-pool) -> conv3x3 + bias.

    x_in : (N, Hin, W, Cl) NHWC activation; if pool=True it is the previous
           (N, 2H, 2W, Cin) activation viewed as (N, 2H, W, 2*Cin) (free reshape).
    Returns y (N, H*W, Cout) [out_dtype], plus per-image sum / sumsq
    (N, 1, Cout) of y when stats=True.
    """
    N, Hin, Win, Cl = x_in.shape
    Cin, Cout = w_hwio.shape[2], w_hwio.shape[3]
    H, W = out_hw
    assert Win == W and Hin == (2 * H if pool else H)
    assert Cl == (2 * Cin if pool else Cin)

    # (dy, dx, ci, co) -> (dy, dx*Cin+ci, co): matches the lane order of xcat.
    w2 = w_hwio.reshape(3, 3 * Cin, Cout).astype(jnp.bfloat16)
    b2 = bias.reshape(1, Cout).astype(jnp.float32)
    s2 = scale.reshape(1, 1, Cl).astype(jnp.float32)
    t2 = shift.reshape(1, 1, Cl).astype(jnp.float32)

    kernel = _make_conv_kernel(H, W, Cin, Cout, act=act, pool=pool, stats=stats)

    y_shape = jax.ShapeDtypeStruct((N, H * W, Cout), out_dtype)
    y_spec = pl.BlockSpec((1, H * W, Cout), lambda n: (n, 0, 0))
    if stats:
        st_shape = jax.ShapeDtypeStruct((N, 1, Cout), jnp.float32)
        st_spec = pl.BlockSpec((1, 1, Cout), lambda n: (n, 0, 0))
        out_shape = (y_shape, st_shape, st_shape)
        out_specs = (y_spec, st_spec, st_spec)
    else:
        out_shape = y_shape
        out_specs = y_spec

    # TODO(synk): for very large spatial extents (e.g. 256x256 first block) add a
    #             halo'd row-tiling grid axis so per-step VMEM / vreg pressure
    #             stays bounded on v7x (64 MiB) and pipelining gets finer grained.
    # TODO(synk): pack the Cout<128 output into a lane-dense layout to avoid
    #             masked partial stores (would need an in-kernel relayout).
    return pl.pallas_call(
        kernel,
        out_shape=out_shape,
        grid=(N,),
        in_specs=[
            pl.BlockSpec((1, Hin, Win, Cl), lambda n: (n, 0, 0, 0)),
            pl.BlockSpec((3, 3 * Cin, Cout), lambda n: (0, 0, 0)),
            pl.BlockSpec((1, Cout), lambda n: (0, 0)),
            pl.BlockSpec((1, 1, Cl), lambda n: (0, 0, 0)),
            pl.BlockSpec((1, 1, Cl), lambda n: (0, 0, 0)),
        ],
        out_specs=out_specs,
        compiler_params=pltpu.CompilerParams(
            dimension_semantics=("parallel",)),   # batch shards across v7x TCs
    )(x_in, w2, b2, s2, t2)


# ---------------------------------------------------------------------------
# Forward pass: every layer is one fused conv call; the BN affine of layer i is
# folded into the prologue of conv i+1, and each AvgPool2d is folded into the
# prologue of the conv that follows it.
# ---------------------------------------------------------------------------
def encoder_simple_forward(x_nchw, layers, eps=1e-5):
    x = jnp.transpose(x_nchw, (0, 2, 3, 1)).astype(jnp.float32)   # NCHW -> NHWC
    N, H, W, _ = x.shape

    cur = x                      # activation feeding the next conv
    p_scale = None               # pending BN affine (folded into next conv)
    p_shift = None
    pend_pool = False

    for layer in layers:
        if layer["kind"] == "pool":
            pend_pool = True
            continue

        w = layer["w"]
        Cin, Cout = w.shape[2], w.shape[3]
        act = p_scale is not None

        if pend_pool:
            Ho, Wo = H // 2, W // 2
            x_in = cur.reshape(N, H, Wo, 2 * Cin)    # fold W pairs into lanes (free)
            s_in = jnp.tile(p_scale, 2) if act else jnp.ones((2 * Cin,), jnp.float32)
            t_in = jnp.tile(p_shift, 2) if act else jnp.zeros((2 * Cin,), jnp.float32)
            H, W = Ho, Wo
        else:
            x_in = cur
            s_in = p_scale if act else jnp.ones((Cin,), jnp.float32)
            t_in = p_shift if act else jnp.zeros((Cin,), jnp.float32)

        needs_bn = layer["kind"] == "conv_bn_lrelu"
        # Intermediate activations round-trip HBM in bf16 (MXU operands are bf16
        # anyway); the final network output stays f32.
        out_dtype = jnp.bfloat16 if needs_bn else jnp.float32

        res = conv3x3_block(x_in, w, layer["b"], s_in, t_in,
                            out_hw=(H, W), act=act, pool=pend_pool,
                            stats=needs_bn, out_dtype=out_dtype)
        pend_pool = False

        if needs_bn:
            y, ps, pq = res
            m = N * H * W
            mean = jnp.sum(ps, axis=(0, 1)) / m
            var = jnp.maximum(jnp.sum(pq, axis=(0, 1)) / m - mean * mean, 0.0)
            inv = layer["gamma"] * jax.lax.rsqrt(var + eps)
            p_scale = inv
            p_shift = layer["beta"] - mean * inv
        else:                                        # final plain conv
            y = res
            p_scale = p_shift = None

        cur = y.reshape(N, H, W, Cout)               # free row-major reshape

    return jnp.transpose(cur.astype(jnp.float32), (0, 3, 1, 2))   # NHWC -> NCHW


# ---------------------------------------------------------------------------
# Pure-JAX (XLA, f32) reference for self-checking.
# ---------------------------------------------------------------------------
def encoder_simple_reference(x_nchw, layers, eps=1e-5, slope=0.2):
    x = jnp.transpose(x_nchw, (0, 2, 3, 1)).astype(jnp.float32)
    for layer in layers:
        if layer["kind"] == "pool":
            n, h, w, c = x.shape
            x = x.reshape(n, h // 2, 2, w // 2, 2, c).mean(axis=(2, 4))
            continue
        y = jax.lax.conv_general_dilated(
            x, layer["w"], window_strides=(1, 1), padding=((1, 1), (1, 1)),
            dimension_numbers=("NHWC", "HWIO", "NHWC"))
        y = y + layer["b"]
        if layer["kind"] == "conv_bn_lrelu":
            mean = jnp.mean(y, axis=(0, 1, 2))
            var = jnp.mean(jnp.square(y - mean), axis=(0, 1, 2))
            yn = (y - mean) * jax.lax.rsqrt(var + eps) * layer["gamma"] + layer["beta"]
            x = jnp.where(yn >= 0, yn, slope * yn)
        else:
            x = y
    return jnp.transpose(x, (0, 3, 1, 2))


# ---------------------------------------------------------------------------
# Deterministic parameter construction mirroring the nn.Module __init__ /
# _initialize_weights (kaiming_normal fan_out conv weights, bias=0, BN gamma=1,
# beta=0).
# ---------------------------------------------------------------------------
def build_params(key, encoder_input_shape, encoder_output_shape,
                 filter_min=32, filter_max=64):
    assert len(encoder_input_shape) == 3 and len(encoder_output_shape) == 3
    in_channels = encoder_input_shape[0]
    in_size = encoder_input_shape[1]
    output_channels = encoder_output_shape[0]
    out_size = encoder_output_shape[1]

    cfg = []
    block_nums = int(math.log2(in_size // out_size))
    oc = filter_min
    for _ in range(block_nums):
        cfg += [oc, oc, oc, "P"]
        oc = min(2 * oc, filter_max)
    cfg += [output_channels, output_channels]

    layers = []
    for idx, v in enumerate(cfg):
        if v == "P":
            layers.append({"kind": "pool"})
            continue
        key, k1 = jax.random.split(key)
        fan_out = v * 9                                # kaiming_normal, mode='fan_out'
        std = math.sqrt(2.0 / fan_out)
        w = std * jax.random.normal(k1, (3, 3, in_channels, v), jnp.float32)  # HWIO
        b = jnp.zeros((v,), jnp.float32)
        if idx == len(cfg) - 1:
            layers.append({"kind": "conv", "w": w, "b": b})
            break
        layers.append({"kind": "conv_bn_lrelu", "w": w, "b": b,
                       "gamma": jnp.ones((v,), jnp.float32),
                       "beta": jnp.zeros((v,), jnp.float32)})
        in_channels = v
    return layers


if __name__ == "__main__":
    key = jax.random.PRNGKey(0)
    kx, kp = jax.random.split(key)

    # Small config: (C,H,W) = (4,16,16) -> (8,8,8): one [conv x3 + pool] block
    # followed by conv+BN+LReLU and a final plain conv.
    encoder_input_shape = (4, 16, 16)
    encoder_output_shape = (8, 8, 8)
    batch = 2

    x = jax.random.normal(kx, (batch,) + encoder_input_shape, jnp.float32)
    layers = build_params(kp, encoder_input_shape, encoder_output_shape,
                          filter_min=32, filter_max=64)

    fwd = jax.jit(lambda xx: encoder_simple_forward(xx, layers))
    out = jax.block_until_ready(fwd(x))
    assert out.shape == (batch,) + encoder_output_shape, out.shape
    assert bool(jnp.all(jnp.isfinite(out)))

    # Cross-check against a pure-JAX f32 reference; tolerance covers the bf16
    # MXU operands and the bf16 inter-layer activations.
    ref = jax.block_until_ready(encoder_simple_reference(x, layers))
    rel = float(jnp.linalg.norm(out - ref) / (jnp.linalg.norm(ref) + 1e-8))
    assert rel < 5e-2, f"relative L2 error vs reference too large: {rel}"
    print("KERNEL_OK")
</pallas_src>

<mosaic_0001>
module attributes {stable_mosaic.version = 11 : i64} {
  func.func @kernel(%arg0: i32, %arg1: memref<1x16x16x4xf32, #tpu.memory_space<vmem>>, %arg2: memref<3x12x32xbf16, #tpu.memory_space<vmem>>, %arg3: memref<1x32xf32, #tpu.memory_space<vmem>>, %arg4: memref<1x1x4xf32, #tpu.memory_space<vmem>>, %arg5: memref<1x1x4xf32, #tpu.memory_space<vmem>>, %arg6: memref<1x256x32xbf16, #tpu.memory_space<vmem>>, %arg7: memref<1x1x32xf32, #tpu.memory_space<vmem>>, %arg8: memref<1x1x32xf32, #tpu.memory_space<vmem>>) attributes {dimension_semantics = [#tpu.dimension_semantics<parallel>], iteration_bounds = array<i64: 2>, scalar_prefetch = 0 : i64, scratch_operands = 0 : i64, tpu.core_type = #tpu.core_type<tc>, window_params = [{transform_indices = @transform_0, window_bounds = array<i64: 1, 16, 16, 4>}, {pipeline_mode = #tpu.pipeline_mode<synchronous>, transform_indices = @transform_1, window_bounds = array<i64: 3, 12, 32>}, {pipeline_mode = #tpu.pipeline_mode<synchronous>, transform_indices = @transform_2, window_bounds = array<i64: 1, 32>}, {pipeline_mode = #tpu.pipeline_mode<synchronous>, transform_indices = @transform_3, window_bounds = array<i64: 1, 1, 4>}, {pipeline_mode = #tpu.pipeline_mode<synchronous>, transform_indices = @transform_4, window_bounds = array<i64: 1, 1, 4>}, {transform_indices = @transform_5, window_bounds = array<i64: 1, 256, 32>}, {transform_indices = @transform_6, window_bounds = array<i64: 1, 1, 32>}, {transform_indices = @transform_7, window_bounds = array<i64: 1, 1, 32>}]} {
    %c0 = arith.constant 0 : index
    %c0_0 = arith.constant 0 : index
    %c0_1 = arith.constant 0 : index
    %c0_2 = arith.constant 0 : index
    %0 = vector.load %arg1[%c0, %c0_0, %c0_1, %c0_2] : memref<1x16x16x4xf32, #tpu.memory_space<vmem>>, vector<1x16x16x4xf32>
    %1 = vector.shape_cast %0 : vector<1x16x16x4xf32> to vector<16x16x4xf32>
    %cst = arith.constant 0.000000e+00 : f32
    %2 = vector.broadcast %cst : f32 to vector<1x16x4xf32>
    %3 = tpu.concatenate %2, %1, %2 in 0 : vector<1x16x4xf32>, vector<16x16x4xf32>, vector<1x16x4xf32> -> vector<18x16x4xf32>
    %cst_3 = arith.constant 0.000000e+00 : f32
    %4 = vector.broadcast %cst_3 : f32 to vector<18x1x4xf32>
    %5 = vector.extract_strided_slice %3 {offsets = [0, 0, 0], sizes = [18, 15, 4], strides = [1, 1, 1]} : vector<18x16x4xf32> to vector<18x15x4xf32>
    %6 = tpu.concatenate %4, %5 in 1 : vector<18x1x4xf32>, vector<18x15x4xf32> -> vector<18x16x4xf32>
    %7 = vector.extract_strided_slice %3 {offsets = [0, 1, 0], sizes = [18, 15, 4], strides = [1, 1, 1]} : vector<18x16x4xf32> to vector<18x15x4xf32>
    %8 = tpu.concatenate %7, %4 in 1 : vector<18x15x4xf32>, vector<18x1x4xf32> -> vector<18x16x4xf32>
    %9 = tpu.concatenate %6, %3, %8 in 2 : vector<18x16x4xf32>, vector<18x16x4xf32>, vector<18x16x4xf32> -> vector<18x16x12xf32>
    %10 = arith.truncf %9 : vector<18x16x12xf32> to vector<18x16x12xbf16>
    %c0_4 = arith.constant 0 : index
    %c0_5 = arith.constant 0 : index
    %11 = vector.load %arg3[%c0_4, %c0_5] : memref<1x32xf32, #tpu.memory_space<vmem>>, vector<1x32xf32>
    %12 = vector.extract_strided_slice %10 {offsets = [0, 0, 0], sizes = [16, 16, 12], strides = [1, 1, 1]} : vector<18x16x12xbf16> to vector<16x16x12xbf16>
    %13 = vector.shape_cast %12 : vector<16x16x12xbf16> to vector<256x12xbf16>
    %c0_6 = arith.constant 0 : index
    %c0_7 = arith.constant 0 : index
    %c0_8 = arith.constant 0 : index
    %14 = vector.load %arg2[%c0_6, %c0_7, %c0_8] : memref<3x12x32xbf16, #tpu.memory_space<vmem>>, vector<1x12x32xbf16>
    %15 = vector.shape_cast %14 : vector<1x12x32xbf16> to vector<12x32xbf16>
    %cst_9 = arith.constant dense<0.000000e+00> : vector<256x32xf32>
    %16 = tpu.matmul %13, %15, %cst_9 {dimension_numbers = #tpu.dot_dimension_numbers<[1], [0], [0], [1], [0, 0, 1, 1], [], []>} : vector<256x12xbf16>, vector<12x32xbf16>, vector<256x32xf32> -> vector<256x32xf32>
    %17 = vector.broadcast %11 : vector<1x32xf32> to vector<256x32xf32>
    %18 = arith.addf %16, %17 : vector<256x32xf32>
    %19 = vector.extract_strided_slice %10 {offsets = [1, 0, 0], sizes = [16, 16, 12], strides = [1, 1, 1]} : vector<18x16x12xbf16> to vector<16x16x12xbf16>
    %20 = vector.shape_cast %19 : vector<16x16x12xbf16> to vector<256x12xbf16>
    %c1 = arith.constant 1 : index
    %c0_10 = arith.constant 0 : index
    %c0_11 = arith.constant 0 : index
    %21 = vector.load %arg2[%c1, %c0_10, %c0_11] : memref<3x12x32xbf16, #tpu.memory_space<vmem>>, vector<1x12x32xbf16>
    %22 = vector.shape_cast %21 : vector<1x12x32xbf16> to vector<12x32xbf16>
    %cst_12 = arith.constant dense<0.000000e+00> : vector<256x32xf32>
    %23 = tpu.matmul %20, %22, %cst_12 {dimension_numbers = #tpu.dot_dimension_numbers<[1], [0], [0], [1], [0, 0, 1, 1], [], []>} : vector<256x12xbf16>, vector<12x32xbf16>, vector<256x32xf32> -> vector<256x32xf32>
    %24 = arith.addf %18, %23 : vector<256x32xf32>
    %25 = vector.extract_strided_slice %10 {offsets = [2, 0, 0], sizes = [16, 16, 12], strides = [1, 1, 1]} : vector<18x16x12xbf16> to vector<16x16x12xbf16>
    %26 = vector.shape_cast %25 : vector<16x16x12xbf16> to vector<256x12xbf16>
    %c2 = arith.constant 2 : index
    %c0_13 = arith.constant 0 : index
    %c0_14 = arith.constant 0 : index
    %27 = vector.load %arg2[%c2, %c0_13, %c0_14] : memref<3x12x32xbf16, #tpu.memory_space<vmem>>, vector<1x12x32xbf16>
    %28 = vector.shape_cast %27 : vector<1x12x32xbf16> to vector<12x32xbf16>
    %cst_15 = arith.constant dense<0.000000e+00> : vector<256x32xf32>
    %29 = tpu.matmul %26, %28, %cst_15 {dimension_numbers = #tpu.dot_dimension_numbers<[1], [0], [0], [1], [0, 0, 1, 1], [], []>} : vector<256x12xbf16>, vector<12x32xbf16>, vector<256x32xf32> -> vector<256x32xf32>
    %30 = arith.addf %24, %29 : vector<256x32xf32>
    %31 = arith.truncf %30 : vector<256x32xf32> to vector<256x32xbf16>
    %c0_16 = arith.constant 0 : index
    %c0_17 = arith.constant 0 : index
    %c0_18 = arith.constant 0 : index
    %32 = vector.load %arg6[%c0_16, %c0_17, %c0_18] : memref<1x256x32xbf16, #tpu.memory_space<vmem>>, vector<1x256x32xbf16>
    %33 = vector.shape_cast %32 : vector<1x256x32xbf16> to vector<256x32xbf16>
    %34 = vector.shape_cast %31 : vector<256x32xbf16> to vector<1x256x32xbf16>
    tpu.vector_store %arg6[%c0_16, %c0_17, %c0_18], %34 {strides = array<i32>} : memref<1x256x32xbf16, #tpu.memory_space<vmem>>, vector<1x256x32xbf16>,
    %cst_19 = arith.constant dense<0.000000e+00> : vector<32xf32>
    %35 = vector.multi_reduction <add>, %30, %cst_19 [0] : vector<256x32xf32> to vector<32xf32>
    %36 = vector.shape_cast %35 : vector<32xf32> to vector<1x32xf32>
    %c0_20 = arith.constant 0 : index
    %c0_21 = arith.constant 0 : index
    %c0_22 = arith.constant 0 : index
    %37 = vector.load %arg7[%c0_20, %c0_21, %c0_22] : memref<1x1x32xf32, #tpu.memory_space<vmem>>, vector<1x1x32xf32>
    %38 = vector.shape_cast %37 : vector<1x1x32xf32> to vector<1x32xf32>
    %39 = vector.shape_cast %36 : vector<1x32xf32> to vector<1x1x32xf32>
    tpu.vector_store %arg7[%c0_20, %c0_21, %c0_22], %39 {strides = array<i32>} : memref<1x1x32xf32, #tpu.memory_space<vmem>>, vector<1x1x32xf32>,
    %40 = arith.mulf %30, %30 : vector<256x32xf32>
    %cst_23 = arith.constant dense<0.000000e+00> : vector<32xf32>
    %41 = vector.multi_reduction <add>, %40, %cst_23 [0] : vector<256x32xf32> to vector<32xf32>
    %42 = vector.shape_cast %41 : vector<32xf32> to vector<1x32xf32>
    %c0_24 = arith.constant 0 : index
    %c0_25 = arith.constant 0 : index
    %c0_26 = arith.constant 0 : index
    %43 = vector.load %arg8[%c0_24, %c0_25, %c0_26] : memref<1x1x32xf32, #tpu.memory_space<vmem>>, vector<1x1x32xf32>
    %44 = vector.shape_cast %43 : vector<1x1x32xf32> to vector<1x32xf32>
    %45 = vector.shape_cast %42 : vector<1x32xf32> to vector<1x1x32xf32>
    tpu.vector_store %arg8[%c0_24, %c0_25, %c0_26], %45 {strides = array<i32>} : memref<1x1x32xf32, #tpu.memory_space<vmem>>, vector<1x1x32xf32>,
    return
  }
  func.func @transform_0(%arg0: i32) -> (i32, i32, i32, i32) {
    %c0_i32 = arith.constant 0 : i32
    %c0_i32_0 = arith.constant 0 : i32
    %c0_i32_1 = arith.constant 0 : i32
    %c0_i32_2 = arith.constant 0 : i32
    return %arg0, %c0_i32, %c0_i32_0, %c0_i32_1 : i32, i32, i32, i32
  }
  func.func @transform_1(%arg0: i32) -> (i32, i32, i32) {
    %c0_i32 = arith.constant 0 : i32
    %c0_i32_0 = arith.constant 0 : i32
    %c0_i32_1 = arith.constant 0 : i32
    %c0_i32_2 = arith.constant 0 : i32
    return %c0_i32, %c0_i32_0, %c0_i32_1 : i32, i32, i32
  }
  func.func @transform_2(%arg0: i32) -> (i32, i32) {
    %c0_i32 = arith.constant 0 : i32
    %c0_i32_0 = arith.constant 0 : i32
    %c0_i32_1 = arith.constant 0 : i32
    return %c0_i32, %c0_i32_0 : i32, i32
  }
  func.func @transform_3(%arg0: i32) -> (i32, i32, i32) {
    %c0_i32 = arith.constant 0 : i32
    %c0_i32_0 = arith.constant 0 : i32
    %c0_i32_1 = arith.constant 0 : i32
    %c0_i32_2 = arith.constant 0 : i32
    return %c0_i32, %c0_i32_0, %c0_i32_1 : i32, i32, i32
  }
  func.func @transform_4(%arg0: i32) -> (i32, i32, i32) {
    %c0_i32 = arith.constant 0 : i32
    %c0_i32_0 = arith.constant 0 : i32
    %c0_i32_1 = arith.constant 0 : i32
    %c0_i32_2 = arith.constant 0 : i32
    return %c0_i32, %c0_i32_0, %c0_i32_1 : i32, i32, i32
  }
  func.func @transform_5(%arg0: i32) -> (i32, i32, i32) {
    %c0_i32 = arith.constant 0 : i32
    %c0_i32_0 = arith.constant 0 : i32
    %c0_i32_1 = arith.constant 0 : i32
    return %arg0, %c0_i32, %c0_i32_0 : i32, i32, i32
  }
  func.func @transform_6(%arg0: i32) -> (i32, i32, i32) {
    %c0_i32 = arith.constant 0 : i32
    %c0_i32_0 = arith.constant 0 : i32
    %c0_i32_1 = arith.constant 0 : i32
    return %arg0, %c0_i32, %c0_i32_0 : i32, i32, i32
  }
  func.func @transform_7(%arg0: i32) -> (i32, i32, i32) {
    %c0_i32 = arith.constant 0 : i32
    %c0_i32_0 = arith.constant 0 : i32
    %c0_i32_1 = arith.constant 0 : i32
    return %arg0, %c0_i32, %c0_i32_0 : i32, i32, i32
  }
}

module attributes {stable_mosaic.version = 11 : i64} {
  func.func @kernel(%arg0: i32, %arg1: memref<1x16x16x32xbf16, #tpu.memory_space<vmem>>, %arg2: memref<3x96x32xbf16, #tpu.memory_space<vmem>>, %arg3: memref<1x32xf32, #tpu.memory_space<vmem>>, %arg4: memref<1x1x32xf32, #tpu.memory_space<vmem>>, %arg5: memref<1x1x32xf32, #tpu.memory_space<vmem>>, %arg6: memref<1x256x32xbf16, #tpu.memory_space<vmem>>, %arg7: memref<1x1x32xf32, #tpu.memory_space<vmem>>, %arg8: memref<1x1x32xf32, #tpu.memory_space<vmem>>) attributes {dimension_semantics = [#tpu.dimension_semantics<parallel>], iteration_bounds = array<i64: 2>, scalar_prefetch = 0 : i64, scratch_operands = 0 : i64, tpu.core_type = #tpu.core_type<tc>, window_params = [{transform_indices = @transform_0, window_bounds = array<i64: 1, 16, 16, 32>}, {pipeline_mode = #tpu.pipeline_mode<synchronous>, transform_indices = @transform_1, window_bounds = array<i64: 3, 96, 32>}, {pipeline_mode = #tpu.pipeline_mode<synchronous>, transform_indices = @transform_2, window_bounds = array<i64: 1, 32>}, {pipeline_mode = #tpu.pipeline_mode<synchronous>, transform_indices = @transform_3, window_bounds = array<i64: 1, 1, 32>}, {pipeline_mode = #tpu.pipeline_mode<synchronous>, transform_indices = @transform_4, window_bounds = array<i64: 1, 1, 32>}, {transform_indices = @transform_5, window_bounds = array<i64: 1, 256, 32>}, {transform_indices = @transform_6, window_bounds = array<i64: 1, 1, 32>}, {transform_indices = @transform_7, window_bounds = array<i64: 1, 1, 32>}]} {
    %c0 = arith.constant 0 : index
    %c0_0 = arith.constant 0 : index
    %c0_1 = arith.constant 0 : index
    %c0_2 = arith.constant 0 : index
    %0 = vector.load %arg1[%c0, %c0_0, %c0_1, %c0_2] : memref<1x16x16x32xbf16, #tpu.memory_space<vmem>>, vector<1x16x16x32xbf16>
    %1 = vector.shape_cast %0 : vector<1x16x16x32xbf16> to vector<16x16x32xbf16>
    %2 = arith.extf %1 : vector<16x16x32xbf16> to vector<16x16x32xf32>
    %c0_3 = arith.constant 0 : index
    %c0_4 = arith.constant 0 : index
    %c0_5 = arith.constant 0 : index
    %3 = vector.load %arg4[%c0_3, %c0_4, %c0_5] : memref<1x1x32xf32, #tpu.memory_space<vmem>>, vector<1x1x32xf32>
    %4 = vector.shape_cast %3 : vector<1x1x32xf32> to vector<1x32xf32>
    %5 = vector.shape_cast %4 : vector<1x32xf32> to vector<1x1x32xf32>
    %6 = vector.broadcast %5 : vector<1x1x32xf32> to vector<16x16x32xf32>
    %7 = arith.mulf %2, %6 : vector<16x16x32xf32>
    %c0_6 = arith.constant 0 : index
    %c0_7 = arith.constant 0 : index
    %c0_8 = arith.constant 0 : index
    %8 = vector.load %arg5[%c0_6, %c0_7, %c0_8] : memref<1x1x32xf32, #tpu.memory_space<vmem>>, vector<1x1x32xf32>
    %9 = vector.shape_cast %8 : vector<1x1x32xf32> to vector<1x32xf32>
    %10 = vector.shape_cast %9 : vector<1x32xf32> to vector<1x1x32xf32>
    %11 = vector.broadcast %10 : vector<1x1x32xf32> to vector<16x16x32xf32>
    %12 = arith.addf %7, %11 : vector<16x16x32xf32>
    %cst = arith.constant 0.000000e+00 : f32
    %13 = vector.broadcast %cst : f32 to vector<16x16x32xf32>
    %14 = arith.cmpf oge, %12, %13 : vector<16x16x32xf32>
    %cst_9 = arith.constant 2.000000e-01 : f32
    %15 = vector.broadcast %cst_9 : f32 to vector<16x16x32xf32>
    %16 = arith.mulf %15, %12 : vector<16x16x32xf32>
    %17 = arith.select %14, %12, %16 : vector<16x16x32xi1>, vector<16x16x32xf32>
    %cst_10 = arith.constant 0.000000e+00 : f32
    %18 = vector.broadcast %cst_10 : f32 to vector<1x16x32xf32>
    %19 = tpu.concatenate %18, %17, %18 in 0 : vector<1x16x32xf32>, vector<16x16x32xf32>, vector<1x16x32xf32> -> vector<18x16x32xf32>
    %cst_11 = arith.constant 0.000000e+00 : f32
    %20 = vector.broadcast %cst_11 : f32 to vector<18x1x32xf32>
    %21 = vector.extract_strided_slice %19 {offsets = [0, 0, 0], sizes = [18, 15, 32], strides = [1, 1, 1]} : vector<18x16x32xf32> to vector<18x15x32xf32>
    %22 = tpu.concatenate %20, %21 in 1 : vector<18x1x32xf32>, vector<18x15x32xf32> -> vector<18x16x32xf32>
    %23 = vector.extract_strided_slice %19 {offsets = [0, 1, 0], sizes = [18, 15, 32], strides = [1, 1, 1]} : vector<18x16x32xf32> to vector<18x15x32xf32>
    %24 = tpu.concatenate %23, %20 in 1 : vector<18x15x32xf32>, vector<18x1x32xf32> -> vector<18x16x32xf32>
    %25 = tpu.concatenate %22, %19, %24 in 2 : vector<18x16x32xf32>, vector<18x16x32xf32>, vector<18x16x32xf32> -> vector<18x16x96xf32>
    %26 = arith.truncf %25 : vector<18x16x96xf32> to vector<18x16x96xbf16>
    %c0_12 = arith.constant 0 : index
    %c0_13 = arith.constant 0 : index
    %27 = vector.load %arg3[%c0_12, %c0_13] : memref<1x32xf32, #tpu.memory_space<vmem>>, vector<1x32xf32>
    %28 = vector.extract_strided_slice %26 {offsets = [0, 0, 0], sizes = [16, 16, 96], strides = [1, 1, 1]} : vector<18x16x96xbf16> to vector<16x16x96xbf16>
    %29 = vector.shape_cast %28 : vector<16x16x96xbf16> to vector<256x96xbf16>
    %c0_14 = arith.constant 0 : index
    %c0_15 = arith.constant 0 : index
    %c0_16 = arith.constant 0 : index
    %30 = vector.load %arg2[%c0_14, %c0_15, %c0_16] : memref<3x96x32xbf16, #tpu.memory_space<vmem>>, vector<1x96x32xbf16>
    %31 = vector.shape_cast %30 : vector<1x96x32xbf16> to vector<96x32xbf16>
    %cst_17 = arith.constant dense<0.000000e+00> : vector<256x32xf32>
    %32 = tpu.matmul %29, %31, %cst_17 {dimension_numbers = #tpu.dot_dimension_numbers<[1], [0], [0], [1], [0, 0, 1, 1], [], []>} : vector<256x96xbf16>, vector<96x32xbf16>, vector<256x32xf32> -> vector<256x32xf32>
    %33 = vector.broadcast %27 : vector<1x32xf32> to vector<256x32xf32>
    %34 = arith.addf %32, %33 : vector<256x32xf32>
    %35 = vector.extract_strided_slice %26 {offsets = [1, 0, 0], sizes = [16, 16, 96], strides = [1, 1, 1]} : vector<18x16x96xbf16> to vector<16x16x96xbf16>
    %36 = vector.shape_cast %35 : vector<16x16x96xbf16> to vector<256x96xbf16>
    %c1 = arith.constant 1 : index
    %c0_18 = arith.constant 0 : index
    %c0_19 = arith.constant 0 : index
    %37 = vector.load %arg2[%c1, %c0_18, %c0_19] : memref<3x96x32xbf16, #tpu.memory_space<vmem>>, vector<1x96x32xbf16>
    %38 = vector.shape_cast %37 : vector<1x96x32xbf16> to vector<96x32xbf16>
    %cst_20 = arith.constant dense<0.000000e+00> : vector<256x32xf32>
    %39 = tpu.matmul %36, %38, %cst_20 {dimension_numbers = #tpu.dot_dimension_numbers<[1], [0], [0], [1], [0, 0, 1, 1], [], []>} : vector<256x96xbf16>, vector<96x32xbf16>, vector<256x32xf32> -> vector<256x32xf32>
    %40 = arith.addf %34, %39 : vector<256x32xf32>
    %41 = vector.extract_strided_slice %26 {offsets = [2, 0, 0], sizes = [16, 16, 96], strides = [1, 1, 1]} : vector<18x16x96xbf16> to vector<16x16x96xbf16>
    %42 = vector.shape_cast %41 : vector<16x16x96xbf16> to vector<256x96xbf16>
    %c2 = arith.constant 2 : index
    %c0_21 = arith.constant 0 : index
    %c0_22 = arith.constant 0 : index
    %43 = vector.load %arg2[%c2, %c0_21, %c0_22] : memref<3x96x32xbf16, #tpu.memory_space<vmem>>, vector<1x96x32xbf16>
    %44 = vector.shape_cast %43 : vector<1x96x32xbf16> to vector<96x32xbf16>
    %cst_23 = arith.constant dense<0.000000e+00> : vector<256x32xf32>
    %45 = tpu.matmul %42, %44, %cst_23 {dimension_numbers = #tpu.dot_dimension_numbers<[1], [0], [0], [1], [0, 0, 1, 1], [], []>} : vector<256x96xbf16>, vector<96x32xbf16>, vector<256x32xf32> -> vector<256x32xf32>
    %46 = arith.addf %40, %45 : vector<256x32xf32>
    %47 = arith.truncf %46 : vector<256x32xf32> to vector<256x32xbf16>
    %c0_24 = arith.constant 0 : index
    %c0_25 = arith.constant 0 : index
    %c0_26 = arith.constant 0 : index
    %48 = vector.load %arg6[%c0_24, %c0_25, %c0_26] : memref<1x256x32xbf16, #tpu.memory_space<vmem>>, vector<1x256x32xbf16>
    %49 = vector.shape_cast %48 : vector<1x256x32xbf16> to vector<256x32xbf16>
    %50 = vector.shape_cast %47 : vector<256x32xbf16> to vector<1x256x32xbf16>
    tpu.vector_store %arg6[%c0_24, %c0_25, %c0_26], %50 {strides = array<i32>} : memref<1x256x32xbf16, #tpu.memory_space<vmem>>, vector<1x256x32xbf16>,
    %cst_27 = arith.constant dense<0.000000e+00> : vector<32xf32>
    %51 = vector.multi_reduction <add>, %46, %cst_27 [0] : vector<256x32xf32> to vector<32xf32>
    %52 = vector.shape_cast %51 : vector<32xf32> to vector<1x32xf32>
    %c0_28 = arith.constant 0 : index
    %c0_29 = arith.constant 0 : index
    %c0_30 = arith.constant 0 : index
    %53 = vector.load %arg7[%c0_28, %c0_29, %c0_30] : memref<1x1x32xf32, #tpu.memory_space<vmem>>, vector<1x1x32xf32>
    %54 = vector.shape_cast %53 : vector<1x1x32xf32> to vector<1x32xf32>
    %55 = vector.shape_cast %52 : vector<1x32xf32> to vector<1x1x32xf32>
    tpu.vector_store %arg7[%c0_28, %c0_29, %c0_30], %55 {strides = array<i32>} : memref<1x1x32xf32, #tpu.memory_space<vmem>>, vector<1x1x32xf32>,
    %56 = arith.mulf %46, %46 : vector<256x32xf32>
    %cst_31 = arith.constant dense<0.000000e+00> : vector<32xf32>
    %57 = vector.multi_reduction <add>, %56, %cst_31 [0] : vector<256x32xf32> to vector<32xf32>
    %58 = vector.shape_cast %57 : vector<32xf32> to vector<1x32xf32>
    %c0_32 = arith.constant 0 : index
    %c0_33 = arith.constant 0 : index
    %c0_34 = arith.constant 0 : index
    %59 = vector.load %arg8[%c0_32, %c0_33, %c0_34] : memref<1x1x32xf32, #tpu.memory_space<vmem>>, vector<1x1x32xf32>
    %60 = vector.shape_cast %59 : vector<1x1x32xf32> to vector<1x32xf32>
    %61 = vector.shape_cast %58 : vector<1x32xf32> to vector<1x1x32xf32>
    tpu.vector_store %arg8[%c0_32, %c0_33, %c0_34], %61 {strides = array<i32>} : memref<1x1x32xf32, #tpu.memory_space<vmem>>, vector<1x1x32xf32>,
    return
  }
  func.func @transform_0(%arg0: i32) -> (i32, i32, i32, i32) {
    %c0_i32 = arith.constant 0 : i32
    %c0_i32_0 = arith.constant 0 : i32
    %c0_i32_1 = arith.constant 0 : i32
    %c0_i32_2 = arith.constant 0 : i32
    return %arg0, %c0_i32, %c0_i32_0, %c0_i32_1 : i32, i32, i32, i32
  }
  func.func @transform_1(%arg0: i32) -> (i32, i32, i32) {
    %c0_i32 = arith.constant 0 : i32
    %c0_i32_0 = arith.constant 0 : i32
    %c0_i32_1 = arith.constant 0 : i32
    %c0_i32_2 = arith.constant 0 : i32
    return %c0_i32, %c0_i32_0, %c0_i32_1 : i32, i32, i32
  }
  func.func @transform_2(%arg0: i32) -> (i32, i32) {
    %c0_i32 = arith.constant 0 : i32
    %c0_i32_0 = arith.constant 0 : i32
    %c0_i32_1 = arith.constant 0 : i32
    return %c0_i32, %c0_i32_0 : i32, i32
  }
  func.func @transform_3(%arg0: i32) -> (i32, i32, i32) {
    %c0_i32 = arith.constant 0 : i32
    %c0_i32_0 = arith.constant 0 : i32
    %c0_i32_1 = arith.constant 0 : i32
    %c0_i32_2 = arith.constant 0 : i32
    return %c0_i32, %c0_i32_0, %c0_i32_1 : i32, i32, i32
  }
  func.func @transform_4(%arg0: i32) -> (i32, i32, i32) {
    %c0_i32 = arith.constant 0 : i32
    %c0_i32_0 = arith.constant 0 : i32
    %c0_i32_1 = arith.constant 0 : i32
    %c0_i32_2 = arith.constant 0 : i32
    return %c0_i32, %c0_i32_0, %c0_i32_1 : i32, i32, i32
  }
  func.func @transform_5(%arg0: i32) -> (i32, i32, i32) {
    %c0_i32 = arith.constant 0 : i32
    %c0_i32_0 = arith.constant 0 : i32
    %c0_i32_1 = arith.constant 0 : i32
    return %arg0, %c0_i32, %c0_i32_0 : i32, i32, i32
  }
  func.func @transform_6(%arg0: i32) -> (i32, i32, i32) {
    %c0_i32 = arith.constant 0 : i32
    %c0_i32_0 = arith.constant 0 : i32
    %c0_i32_1 = arith.constant 0 : i32
    return %arg0, %c0_i32, %c0_i32_0 : i32, i32, i32
  }
  func.func @transform_7(%arg0: i32) -> (i32, i32, i32) {
    %c0_i32 = arith.constant 0 : i32
    %c0_i32_0 = arith.constant 0 : i32
    %c0_i32_1 = arith.constant 0 : i32
    return %arg0, %c0_i32, %c0_i32_0 : i32, i32, i32
  }
}

module attributes {stable_mosaic.version = 11 : i64} {
  func.func @kernel(%arg0: i32, %arg1: memref<1x16x8x64xbf16, #tpu.memory_space<vmem>>, %arg2: memref<3x96x8xbf16, #tpu.memory_space<vmem>>, %arg3: memref<1x8xf32, #tpu.memory_space<vmem>>, %arg4: memref<1x1x64xf32, #tpu.memory_space<vmem>>, %arg5: memref<1x1x64xf32, #tpu.memory_space<vmem>>, %arg6: memref<1x64x8xbf16, #tpu.memory_space<vmem>>, %arg7: memref<1x1x8xf32, #tpu.memory_space<vmem>>, %arg8: memref<1x1x8xf32, #tpu.memory_space<vmem>>) attributes {dimension_semantics = [#tpu.dimension_semantics<parallel>], iteration_bounds = array<i64: 2>, scalar_prefetch = 0 : i64, scratch_operands = 0 : i64, tpu.core_type = #tpu.core_type<tc>, window_params = [{transform_indices = @transform_0, window_bounds = array<i64: 1, 16, 8, 64>}, {pipeline_mode = #tpu.pipeline_mode<synchronous>, transform_indices = @transform_1, window_bounds = array<i64: 3, 96, 8>}, {pipeline_mode = #tpu.pipeline_mode<synchronous>, transform_indices = @transform_2, window_bounds = array<i64: 1, 8>}, {pipeline_mode = #tpu.pipeline_mode<synchronous>, transform_indices = @transform_3, window_bounds = array<i64: 1, 1, 64>}, {pipeline_mode = #tpu.pipeline_mode<synchronous>, transform_indices = @transform_4, window_bounds = array<i64: 1, 1, 64>}, {transform_indices = @transform_5, window_bounds = array<i64: 1, 64, 8>}, {transform_indices = @transform_6, window_bounds = array<i64: 1, 1, 8>}, {transform_indices = @transform_7, window_bounds = array<i64: 1, 1, 8>}]} {
    %c0 = arith.constant 0 : index
    %c0_0 = arith.constant 0 : index
    %c0_1 = arith.constant 0 : index
    %c0_2 = arith.constant 0 : index
    %0 = vector.load %arg1[%c0, %c0_0, %c0_1, %c0_2] : memref<1x16x8x64xbf16, #tpu.memory_space<vmem>>, vector<1x16x8x64xbf16>
    %1 = vector.shape_cast %0 : vector<1x16x8x64xbf16> to vector<16x8x64xbf16>
    %2 = arith.extf %1 : vector<16x8x64xbf16> to vector<16x8x64xf32>
    %c0_3 = arith.constant 0 : index
    %c0_4 = arith.constant 0 : index
    %c0_5 = arith.constant 0 : index
    %3 = vector.load %arg4[%c0_3, %c0_4, %c0_5] : memref<1x1x64xf32, #tpu.memory_space<vmem>>, vector<1x1x64xf32>
    %4 = vector.shape_cast %3 : vector<1x1x64xf32> to vector<1x64xf32>
    %5 = vector.shape_cast %4 : vector<1x64xf32> to vector<1x1x64xf32>
    %6 = vector.broadcast %5 : vector<1x1x64xf32> to vector<16x8x64xf32>
    %7 = arith.mulf %2, %6 : vector<16x8x64xf32>
    %c0_6 = arith.constant 0 : index
    %c0_7 = arith.constant 0 : index
    %c0_8 = arith.constant 0 : index
    %8 = vector.load %arg5[%c0_6, %c0_7, %c0_8] : memref<1x1x64xf32, #tpu.memory_space<vmem>>, vector<1x1x64xf32>
    %9 = vector.shape_cast %8 : vector<1x1x64xf32> to vector<1x64xf32>
    %10 = vector.shape_cast %9 : vector<1x64xf32> to vector<1x1x64xf32>
    %11 = vector.broadcast %10 : vector<1x1x64xf32> to vector<16x8x64xf32>
    %12 = arith.addf %7, %11 : vector<16x8x64xf32>
    %cst = arith.constant 0.000000e+00 : f32
    %13 = vector.broadcast %cst : f32 to vector<16x8x64xf32>
    %14 = arith.cmpf oge, %12, %13 : vector<16x8x64xf32>
    %cst_9 = arith.constant 2.000000e-01 : f32
    %15 = vector.broadcast %cst_9 : f32 to vector<16x8x64xf32>
    %16 = arith.mulf %15, %12 : vector<16x8x64xf32>
    %17 = arith.select %14, %12, %16 : vector<16x8x64xi1>, vector<16x8x64xf32>
    %18 = vector.shape_cast %17 : vector<16x8x64xf32> to vector<8x2x8x64xf32>
    %19 = vector.extract_strided_slice %18 {offsets = [0, 0, 0, 0], sizes = [8, 1, 8, 64], strides = [1, 1, 1, 1]} : vector<8x2x8x64xf32> to vector<8x1x8x64xf32>
    %20 = vector.shape_cast %19 : vector<8x1x8x64xf32> to vector<8x8x64xf32>
    %21 = vector.extract_strided_slice %18 {offsets = [0, 1, 0, 0], sizes = [8, 1, 8, 64], strides = [1, 1, 1, 1]} : vector<8x2x8x64xf32> to vector<8x1x8x64xf32>
    %22 = vector.shape_cast %21 : vector<8x1x8x64xf32> to vector<8x8x64xf32>
    %23 = arith.addf %20, %22 : vector<8x8x64xf32>
    %24 = vector.extract_strided_slice %23 {offsets = [0, 0, 0], sizes = [8, 8, 32], strides = [1, 1, 1]} : vector<8x8x64xf32> to vector<8x8x32xf32>
    %25 = vector.extract_strided_slice %23 {offsets = [0, 0, 32], sizes = [8, 8, 32], strides = [1, 1, 1]} : vector<8x8x64xf32> to vector<8x8x32xf32>
    %26 = arith.addf %24, %25 : vector<8x8x32xf32>
    %cst_10 = arith.constant 2.500000e-01 : f32
    %27 = vector.broadcast %cst_10 : f32 to vector<8x8x32xf32>
    %28 = arith.mulf %26, %27 : vector<8x8x32xf32>
    %cst_11 = arith.constant 0.000000e+00 : f32
    %29 = vector.broadcast %cst_11 : f32 to vector<1x8x32xf32>
    %30 = tpu.concatenate %29, %28, %29 in 0 : vector<1x8x32xf32>, vector<8x8x32xf32>, vector<1x8x32xf32> -> vector<10x8x32xf32>
    %cst_12 = arith.constant 0.000000e+00 : f32
    %31 = vector.broadcast %cst_12 : f32 to vector<10x1x32xf32>
    %32 = vector.extract_strided_slice %30 {offsets = [0, 0, 0], sizes = [10, 7, 32], strides = [1, 1, 1]} : vector<10x8x32xf32> to vector<10x7x32xf32>
    %33 = tpu.concatenate %31, %32 in 1 : vector<10x1x32xf32>, vector<10x7x32xf32> -> vector<10x8x32xf32>
    %34 = vector.extract_strided_slice %30 {offsets = [0, 1, 0], sizes = [10, 7, 32], strides = [1, 1, 1]} : vector<10x8x32xf32> to vector<10x7x32xf32>
    %35 = tpu.concatenate %34, %31 in 1 : vector<10x7x32xf32>, vector<10x1x32xf32> -> vector<10x8x32xf32>
    %36 = tpu.concatenate %33, %30, %35 in 2 : vector<10x8x32xf32>, vector<10x8x32xf32>, vector<10x8x32xf32> -> vector<10x8x96xf32>
    %37 = arith.truncf %36 : vector<10x8x96xf32> to vector<10x8x96xbf16>
    %c0_13 = arith.constant 0 : index
    %c0_14 = arith.constant 0 : index
    %38 = vector.load %arg3[%c0_13, %c0_14] : memref<1x8xf32, #tpu.memory_space<vmem>>, vector<1x8xf32>
    %39 = vector.extract_strided_slice %37 {offsets = [0, 0, 0], sizes = [8, 8, 96], strides = [1, 1, 1]} : vector<10x8x96xbf16> to vector<8x8x96xbf16>
    %40 = vector.shape_cast %39 : vector<8x8x96xbf16> to vector<64x96xbf16>
    %c0_15 = arith.constant 0 : index
    %c0_16 = arith.constant 0 : index
    %c0_17 = arith.constant 0 : index
    %41 = vector.load %arg2[%c0_15, %c0_16, %c0_17] : memref<3x96x8xbf16, #tpu.memory_space<vmem>>, vector<1x96x8xbf16>
    %42 = vector.shape_cast %41 : vector<1x96x8xbf16> to vector<96x8xbf16>
    %cst_18 = arith.constant dense<0.000000e+00> : vector<64x8xf32>
    %43 = tpu.matmul %40, %42, %cst_18 {dimension_numbers = #tpu.dot_dimension_numbers<[1], [0], [0], [1], [0, 0, 1, 1], [], []>} : vector<64x96xbf16>, vector<96x8xbf16>, vector<64x8xf32> -> vector<64x8xf32>
    %44 = vector.broadcast %38 : vector<1x8xf32> to vector<64x8xf32>
    %45 = arith.addf %43, %44 : vector<64x8xf32>
    %46 = vector.extract_strided_slice %37 {offsets = [1, 0, 0], sizes = [8, 8, 96], strides = [1, 1, 1]} : vector<10x8x96xbf16> to vector<8x8x96xbf16>
    %47 = vector.shape_cast %46 : vector<8x8x96xbf16> to vector<64x96xbf16>
    %c1 = arith.constant 1 : index
    %c0_19 = arith.constant 0 : index
    %c0_20 = arith.constant 0 : index
    %48 = vector.load %arg2[%c1, %c0_19, %c0_20] : memref<3x96x8xbf16, #tpu.memory_space<vmem>>, vector<1x96x8xbf16>
    %49 = vector.shape_cast %48 : vector<1x96x8xbf16> to vector<96x8xbf16>
    %cst_21 = arith.constant dense<0.000000e+00> : vector<64x8xf32>
    %50 = tpu.matmul %47, %49, %cst_21 {dimension_numbers = #tpu.dot_dimension_numbers<[1], [0], [0], [1], [0, 0, 1, 1], [], []>} : vector<64x96xbf16>, vector<96x8xbf16>, vector<64x8xf32> -> vector<64x8xf32>
    %51 = arith.addf %45, %50 : vector<64x8xf32>
    %52 = vector.extract_strided_slice %37 {offsets = [2, 0, 0], sizes = [8, 8, 96], strides = [1, 1, 1]} : vector<10x8x96xbf16> to vector<8x8x96xbf16>
    %53 = vector.shape_cast %52 : vector<8x8x96xbf16> to vector<64x96xbf16>
    %c2 = arith.constant 2 : index
    %c0_22 = arith.constant 0 : index
    %c0_23 = arith.constant 0 : index
    %54 = vector.load %arg2[%c2, %c0_22, %c0_23] : memref<3x96x8xbf16, #tpu.memory_space<vmem>>, vector<1x96x8xbf16>
    %55 = vector.shape_cast %54 : vector<1x96x8xbf16> to vector<96x8xbf16>
    %cst_24 = arith.constant dense<0.000000e+00> : vector<64x8xf32>
    %56 = tpu.matmul %53, %55, %cst_24 {dimension_numbers = #tpu.dot_dimension_numbers<[1], [0], [0], [1], [0, 0, 1, 1], [], []>} : vector<64x96xbf16>, vector<96x8xbf16>, vector<64x8xf32> -> vector<64x8xf32>
    %57 = arith.addf %51, %56 : vector<64x8xf32>
    %58 = arith.truncf %57 : vector<64x8xf32> to vector<64x8xbf16>
    %c0_25 = arith.constant 0 : index
    %c0_26 = arith.constant 0 : index
    %c0_27 = arith.constant 0 : index
    %59 = vector.load %arg6[%c0_25, %c0_26, %c0_27] : memref<1x64x8xbf16, #tpu.memory_space<vmem>>, vector<1x64x8xbf16>
    %60 = vector.shape_cast %59 : vector<1x64x8xbf16> to vector<64x8xbf16>
    %61 = vector.shape_cast %58 : vector<64x8xbf16> to vector<1x64x8xbf16>
    tpu.vector_store %arg6[%c0_25, %c0_26, %c0_27], %61 {strides = array<i32>} : memref<1x64x8xbf16, #tpu.memory_space<vmem>>, vector<1x64x8xbf16>,
    %cst_28 = arith.constant dense<0.000000e+00> : vector<8xf32>
    %62 = vector.multi_reduction <add>, %57, %cst_28 [0] : vector<64x8xf32> to vector<8xf32>
    %63 = vector.shape_cast %62 : vector<8xf32> to vector<1x8xf32>
    %c0_29 = arith.constant 0 : index
    %c0_30 = arith.constant 0 : index
    %c0_31 = arith.constant 0 : index
    %64 = vector.load %arg7[%c0_29, %c0_30, %c0_31] : memref<1x1x8xf32, #tpu.memory_space<vmem>>, vector<1x1x8xf32>
    %65 = vector.shape_cast %64 : vector<1x1x8xf32> to vector<1x8xf32>
    %66 = vector.shape_cast %63 : vector<1x8xf32> to vector<1x1x8xf32>
    tpu.vector_store %arg7[%c0_29, %c0_30, %c0_31], %66 {strides = array<i32>} : memref<1x1x8xf32, #tpu.memory_space<vmem>>, vector<1x1x8xf32>,
    %67 = arith.mulf %57, %57 : vector<64x8xf32>
    %cst_32 = arith.constant dense<0.000000e+00> : vector<8xf32>
    %68 = vector.multi_reduction <add>, %67, %cst_32 [0] : vector<64x8xf32> to vector<8xf32>
    %69 = vector.shape_cast %68 : vector<8xf32> to vector<1x8xf32>
    %c0_33 = arith.constant 0 : index
    %c0_34 = arith.constant 0 : index
    %c0_35 = arith.constant 0 : index
    %70 = vector.load %arg8[%c0_33, %c0_34, %c0_35] : memref<1x1x8xf32, #tpu.memory_space<vmem>>, vector<1x1x8xf32>
    %71 = vector.shape_cast %70 : vector<1x1x8xf32> to vector<1x8xf32>
    %72 = vector.shape_cast %69 : vector<1x8xf32> to vector<1x1x8xf32>
    tpu.vector_store %arg8[%c0_33, %c0_34, %c0_35], %72 {strides = array<i32>} : memref<1x1x8xf32, #tpu.memory_space<vmem>>, vector<1x1x8xf32>,
    return
  }
  func.func @transform_0(%arg0: i32) -> (i32, i32, i32, i32) {
    %c0_i32 = arith.constant 0 : i32
    %c0_i32_0 = arith.constant 0 : i32
    %c0_i32_1 = arith.constant 0 : i32
    %c0_i32_2 = arith.constant 0 : i32
    return %arg0, %c0_i32, %c0_i32_0, %c0_i32_1 : i32, i32, i32, i32
  }
  func.func @transform_1(%arg0: i32) -> (i32, i32, i32) {
    %c0_i32 = arith.constant 0 : i32
    %c0_i32_0 = arith.constant 0 : i32
    %c0_i32_1 = arith.constant 0 : i32
    %c0_i32_2 = arith.constant 0 : i32
    return %c0_i32, %c0_i32_0, %c0_i32_1 : i32, i32, i32
  }
  func.func @transform_2(%arg0: i32) -> (i32, i32) {
    %c0_i32 = arith.constant 0 : i32
    %c0_i32_0 = arith.constant 0 : i32
    %c0_i32_1 = arith.constant 0 : i32
    return %c0_i32, %c0_i32_0 : i32, i32
  }
  func.func @transform_3(%arg0: i32) -> (i32, i32, i32) {
    %c0_i32 = arith.constant 0 : i32
    %c0_i32_0 = arith.constant 0 : i32
    %c0_i32_1 = arith.constant 0 : i32
    %c0_i32_2 = arith.constant 0 : i32
    return %c0_i32, %c0_i32_0, %c0_i32_1 : i32, i32, i32
  }
  func.func @transform_4(%arg0: i32) -> (i32, i32, i32) {
    %c0_i32 = arith.constant 0 : i32
    %c0_i32_0 = arith.constant 0 : i32
    %c0_i32_1 = arith.constant 0 : i32
    %c0_i32_2 = arith.constant 0 : i32
    return %c0_i32, %c0_i32_0, %c0_i32_1 : i32, i32, i32
  }
  func.func @transform_5(%arg0: i32) -> (i32, i32, i32) {
    %c0_i32 = arith.constant 0 : i32
    %c0_i32_0 = arith.constant 0 : i32
    %c0_i32_1 = arith.constant 0 : i32
    return %arg0, %c0_i32, %c0_i32_0 : i32, i32, i32
  }
  func.func @transform_6(%arg0: i32) -> (i32, i32, i32) {
    %c0_i32 = arith.constant 0 : i32
    %c0_i32_0 = arith.constant 0 : i32
    %c0_i32_1 = arith.constant 0 : i32
    return %arg0, %c0_i32, %c0_i32_0 : i32, i32, i32
  }
  func.func @transform_7(%arg0: i32) -> (i32, i32, i32) {
    %c0_i32 = arith.constant 0 : i32
    %c0_i32_0 = arith.constant 0 : i32
    %c0_i32_1 = arith.constant 0 : i32
    return %arg0, %c0_i32, %c0_i32_0 : i32, i32, i32
  }
}

module attributes {stable_mosaic.version = 11 : i64} {
  func.func @kernel(%arg0: i32, %arg1: memref<1x8x8x8xbf16, #tpu.memory_space<vmem>>, %arg2: memref<3x24x8xbf16, #tpu.memory_space<vmem>>, %arg3: memref<1x8xf32, #tpu.memory_space<vmem>>, %arg4: memref<1x1x8xf32, #tpu.memory_space<vmem>>, %arg5: memref<1x1x8xf32, #tpu.memory_space<vmem>>, %arg6: memref<1x64x8xf32, #tpu.memory_space<vmem>>) attributes {dimension_semantics = [#tpu.dimension_semantics<parallel>], iteration_bounds = array<i64: 2>, scalar_prefetch = 0 : i64, scratch_operands = 0 : i64, tpu.core_type = #tpu.core_type<tc>, window_params = [{transform_indices = @transform_0, window_bounds = array<i64: 1, 8, 8, 8>}, {pipeline_mode = #tpu.pipeline_mode<synchronous>, transform_indices = @transform_1, window_bounds = array<i64: 3, 24, 8>}, {pipeline_mode = #tpu.pipeline_mode<synchronous>, transform_indices = @transform_2, window_bounds = array<i64: 1, 8>}, {pipeline_mode = #tpu.pipeline_mode<synchronous>, transform_indices = @transform_3, window_bounds = array<i64: 1, 1, 8>}, {pipeline_mode = #tpu.pipeline_mode<synchronous>, transform_indices = @transform_4, window_bounds = array<i64: 1, 1, 8>}, {transform_indices = @transform_5, window_bounds = array<i64: 1, 64, 8>}]} {
    %c0 = arith.constant 0 : index
    %c0_0 = arith.constant 0 : index
    %c0_1 = arith.constant 0 : index
    %c0_2 = arith.constant 0 : index
    %0 = vector.load %arg1[%c0, %c0_0, %c0_1, %c0_2] : memref<1x8x8x8xbf16, #tpu.memory_space<vmem>>, vector<1x8x8x8xbf16>
    %1 = vector.shape_cast %0 : vector<1x8x8x8xbf16> to vector<8x8x8xbf16>
    %2 = arith.extf %1 : vector<8x8x8xbf16> to vector<8x8x8xf32>
    %c0_3 = arith.constant 0 : index
    %c0_4 = arith.constant 0 : index
    %c0_5 = arith.constant 0 : index
    %3 = vector.load %arg4[%c0_3, %c0_4, %c0_5] : memref<1x1x8xf32, #tpu.memory_space<vmem>>, vector<1x1x8xf32>
    %4 = vector.shape_cast %3 : vector<1x1x8xf32> to vector<1x8xf32>
    %5 = vector.shape_cast %4 : vector<1x8xf32> to vector<1x1x8xf32>
    %6 = vector.broadcast %5 : vector<1x1x8xf32> to vector<8x8x8xf32>
    %7 = arith.mulf %2, %6 : vector<8x8x8xf32>
    %c0_6 = arith.constant 0 : index
    %c0_7 = arith.constant 0 : index
    %c0_8 = arith.constant 0 : index
    %8 = vector.load %arg5[%c0_6, %c0_7, %c0_8] : memref<1x1x8xf32, #tpu.memory_space<vmem>>, vector<1x1x8xf32>
    %9 = vector.shape_cast %8 : vector<1x1x8xf32> to vector<1x8xf32>
    %10 = vector.shape_cast %9 : vector<1x8xf32> to vector<1x1x8xf32>
    %11 = vector.broadcast %10 : vector<1x1x8xf32> to vector<8x8x8xf32>
    %12 = arith.addf %7, %11 : vector<8x8x8xf32>
    %cst = arith.constant 0.000000e+00 : f32
    %13 = vector.broadcast %cst : f32 to vector<8x8x8xf32>
    %14 = arith.cmpf oge, %12, %13 : vector<8x8x8xf32>
    %cst_9 = arith.constant 2.000000e-01 : f32
    %15 = vector.broadcast %cst_9 : f32 to vector<8x8x8xf32>
    %16 = arith.mulf %15, %12 : vector<8x8x8xf32>
    %17 = arith.select %14, %12, %16 : vector<8x8x8xi1>, vector<8x8x8xf32>
    %cst_10 = arith.constant 0.000000e+00 : f32
    %18 = vector.broadcast %cst_10 : f32 to vector<1x8x8xf32>
    %19 = tpu.concatenate %18, %17, %18 in 0 : vector<1x8x8xf32>, vector<8x8x8xf32>, vector<1x8x8xf32> -> vector<10x8x8xf32>
    %cst_11 = arith.constant 0.000000e+00 : f32
    %20 = vector.broadcast %cst_11 : f32 to vector<10x1x8xf32>
    %21 = vector.extract_strided_slice %19 {offsets = [0, 0, 0], sizes = [10, 7, 8], strides = [1, 1, 1]} : vector<10x8x8xf32> to vector<10x7x8xf32>
    %22 = tpu.concatenate %20, %21 in 1 : vector<10x1x8xf32>, vector<10x7x8xf32> -> vector<10x8x8xf32>
    %23 = vector.extract_strided_slice %19 {offsets = [0, 1, 0], sizes = [10, 7, 8], strides = [1, 1, 1]} : vector<10x8x8xf32> to vector<10x7x8xf32>
    %24 = tpu.concatenate %23, %20 in 1 : vector<10x7x8xf32>, vector<10x1x8xf32> -> vector<10x8x8xf32>
    %25 = tpu.concatenate %22, %19, %24 in 2 : vector<10x8x8xf32>, vector<10x8x8xf32>, vector<10x8x8xf32> -> vector<10x8x24xf32>
    %26 = arith.truncf %25 : vector<10x8x24xf32> to vector<10x8x24xbf16>
    %c0_12 = arith.constant 0 : index
    %c0_13 = arith.constant 0 : index
    %27 = vector.load %arg3[%c0_12, %c0_13] : memref<1x8xf32, #tpu.memory_space<vmem>>, vector<1x8xf32>
    %28 = vector.extract_strided_slice %26 {offsets = [0, 0, 0], sizes = [8, 8, 24], strides = [1, 1, 1]} : vector<10x8x24xbf16> to vector<8x8x24xbf16>
    %29 = vector.shape_cast %28 : vector<8x8x24xbf16> to vector<64x24xbf16>
    %c0_14 = arith.constant 0 : index
    %c0_15 = arith.constant 0 : index
    %c0_16 = arith.constant 0 : index
    %30 = vector.load %arg2[%c0_14, %c0_15, %c0_16] : memref<3x24x8xbf16, #tpu.memory_space<vmem>>, vector<1x24x8xbf16>
    %31 = vector.shape_cast %30 : vector<1x24x8xbf16> to vector<24x8xbf16>
    %cst_17 = arith.constant dense<0.000000e+00> : vector<64x8xf32>
    %32 = tpu.matmul %29, %31, %cst_17 {dimension_numbers = #tpu.dot_dimension_numbers<[1], [0], [0], [1], [0, 0, 1, 1], [], []>} : vector<64x24xbf16>, vector<24x8xbf16>, vector<64x8xf32> -> vector<64x8xf32>
    %33 = vector.broadcast %27 : vector<1x8xf32> to vector<64x8xf32>
    %34 = arith.addf %32, %33 : vector<64x8xf32>
    %35 = vector.extract_strided_slice %26 {offsets = [1, 0, 0], sizes = [8, 8, 24], strides = [1, 1, 1]} : vector<10x8x24xbf16> to vector<8x8x24xbf16>
    %36 = vector.shape_cast %35 : vector<8x8x24xbf16> to vector<64x24xbf16>
    %c1 = arith.constant 1 : index
    %c0_18 = arith.constant 0 : index
    %c0_19 = arith.constant 0 : index
    %37 = vector.load %arg2[%c1, %c0_18, %c0_19] : memref<3x24x8xbf16, #tpu.memory_space<vmem>>, vector<1x24x8xbf16>
    %38 = vector.shape_cast %37 : vector<1x24x8xbf16> to vector<24x8xbf16>
    %cst_20 = arith.constant dense<0.000000e+00> : vector<64x8xf32>
    %39 = tpu.matmul %36, %38, %cst_20 {dimension_numbers = #tpu.dot_dimension_numbers<[1], [0], [0], [1], [0, 0, 1, 1], [], []>} : vector<64x24xbf16>, vector<24x8xbf16>, vector<64x8xf32> -> vector<64x8xf32>
    %40 = arith.addf %34, %39 : vector<64x8xf32>
    %41 = vector.extract_strided_slice %26 {offsets = [2, 0, 0], sizes = [8, 8, 24], strides = [1, 1, 1]} : vector<10x8x24xbf16> to vector<8x8x24xbf16>
    %42 = vector.shape_cast %41 : vector<8x8x24xbf16> to vector<64x24xbf16>
    %c2 = arith.constant 2 : index
    %c0_21 = arith.constant 0 : index
    %c0_22 = arith.constant 0 : index
    %43 = vector.load %arg2[%c2, %c0_21, %c0_22] : memref<3x24x8xbf16, #tpu.memory_space<vmem>>, vector<1x24x8xbf16>
    %44 = vector.shape_cast %43 : vector<1x24x8xbf16> to vector<24x8xbf16>
    %cst_23 = arith.constant dense<0.000000e+00> : vector<64x8xf32>
    %45 = tpu.matmul %42, %44, %cst_23 {dimension_numbers = #tpu.dot_dimension_numbers<[1], [0], [0], [1], [0, 0, 1, 1], [], []>} : vector<64x24xbf16>, vector<24x8xbf16>, vector<64x8xf32> -> vector<64x8xf32>
    %46 = arith.addf %40, %45 : vector<64x8xf32>
    %c0_24 = arith.constant 0 : index
    %c0_25 = arith.constant 0 : index
    %c0_26 = arith.constant 0 : index
    %47 = vector.load %arg6[%c0_24, %c0_25, %c0_26] : memref<1x64x8xf32, #tpu.memory_space<vmem>>, vector<1x64x8xf32>
    %48 = vector.shape_cast %47 : vector<1x64x8xf32> to vector<64x8xf32>
    %49 = vector.shape_cast %46 : vector<64x8xf32> to vector<1x64x8xf32>
    tpu.vector_store %arg6[%c0_24, %c0_25, %c0_26], %49 {strides = array<i32>} : memref<1x64x8xf32, #tpu.memory_space<vmem>>, vector<1x64x8xf32>,
    return
  }
  func.func @transform_0(%arg0: i32) -> (i32, i32, i32, i32) {
    %c0_i32 = arith.constant 0 : i32
    %c0_i32_0 = arith.constant 0 : i32
    %c0_i32_1 = arith.constant 0 : i32
    %c0_i32_2 = arith.constant 0 : i32
    return %arg0, %c0_i32, %c0_i32_0, %c0_i32_1 : i32, i32, i32, i32
  }
  func.func @transform_1(%arg0: i32) -> (i32, i32, i32) {
    %c0_i32 = arith.constant 0 : i32
    %c0_i32_0 = arith.constant 0 : i32
    %c0_i32_1 = arith.constant 0 : i32
    %c0_i32_2 = arith.constant 0 : i32
    return %c0_i32, %c0_i32_0, %c0_i32_1 : i32, i32, i32
  }
  func.func @transform_2(%arg0: i32) -> (i32, i32) {
    %c0_i32 = arith.constant 0 : i32
    %c0_i32_0 = arith.constant 0 : i32
    %c0_i32_1 = arith.constant 0 : i32
    return %c0_i32, %c0_i32_0 : i32, i32
  }
  func.func @transform_3(%arg0: i32) -> (i32, i32, i32) {
    %c0_i32 = arith.constant 0 : i32
    %c0_i32_0 = arith.constant 0 : i32
    %c0_i32_1 = arith.constant 0 : i32
    %c0_i32_2 = arith.constant 0 : i32
    return %c0_i32, %c0_i32_0, %c0_i32_1 : i32, i32, i32
  }
  func.func @transform_4(%arg0: i32) -> (i32, i32, i32) {
    %c0_i32 = arith.constant 0 : i32
    %c0_i32_0 = arith.constant 0 : i32
    %c0_i32_1 = arith.constant 0 : i32
    %c0_i32_2 = arith.constant 0 : i32
    return %c0_i32, %c0_i32_0, %c0_i32_1 : i32, i32, i32
  }
  func.func @transform_5(%arg0: i32) -> (i32, i32, i32) {
    %c0_i32 = arith.constant 0 : i32
    %c0_i32_0 = arith.constant 0 : i32
    %c0_i32_1 = arith.constant 0 : i32
    return %arg0, %c0_i32, %c0_i32_0 : i32, i32, i32
  }
}

</mosaic_0001>

<llo_original>
// kernel: tile.13
$region0: #{tile.13}
  #allocation0 [shape = 's32[1]{0}', space=sflag, size = 0x4, scoped, tag = 'scoped memory for tile.13']
  %s0 = inlined_call_operand.vmem [shape: f32[32], index: 0, kind: input, shape index: {}]
  %s1 = inlined_call_operand.vmem [shape: f32[2,32], index: 1, kind: output, shape index: {}]
  // Predicated region
  $region2: #{tile.13} parent=0 // pred_check
    _
  $region3: #{tile.13} parent=0 // pred_check_branch
    %3 = sbr.rel (0) target = $region5
  $region4: #{tile.13} parent=0 // pred_region
    _
  $region5: #{tile.13} parent=0 // pred_fallthru
    _
  %v4 = vld [vmem:[%s0] ss:$0 sm:$0xff]
  %5 = vst [vmem:[%s1] sm:$0x3] %v4

// kernel: tile.18
$region0: #{tile.18}
  %s0 = inlined_call_operand.vmem [shape: f32[2,32], index: 0, kind: input, shape index: {}]
  %s1 = inlined_call_operand.vmem [shape: f32[1,1,64], index: 1, kind: output, shape index: {}]
  $region1: #{tile.18} parent=0
    #allocation0 [shape = 'u8[4096]{0}', space=vmem, size = 0x1000, scoped, tag = 'scoped mem for output reshape']
    #allocation1 [shape = 'u8[4096]{0}', space=vmem, size = 0x1000, scoped, tag = 'scoped mem for input reshape']
    %s3 = sshllo.u32 0, 2
    %v4 = vld [vmem:[%s0] sm:%s3]
    %5 = vst [vmem:[#allocation1] sm:%s3] %v4
    %v6 = vld [vmem:[#allocation1] sm:$0x1]
    %vm7 = vcmask 261120
    %8 = vst.msk [vmem:[#allocation0] sm:$0x1] %vm7, %v6
    %s9 = scalar_lea.vmem [#allocation1], 1
    %v10 = vld [vmem:[%s9] sm:$0x1]
    %11 = vrot.lane.b32.xlu0 %v10, 32
    %v12 = vpop.permute.xlu0 %11
    %vm13 = vcmask 523520
    %14 = vst.msk [vmem:[#allocation0] sm:$0x1] %vm13, %v12
    %s16 = sshllo.u32 0, 1
    %v18 = vld [vmem:[#allocation0] sm:%s16]
    %s19 = sshllo.u32 0, 1
    %20 = vst [vmem:[%s1] sm:%s19] %v18

// kernel: _lambda_.9
$region0: #{_lambda_.9}
  #allocation0 [shape = 'u32[]', space=smem, size = 0x4, offset = 0x4, fixed_abs, tag = 'smem constant byte address 0x4 - core index']
  #allocation1 [shape = 'u32[144,128]{1,0:T(1,128)}', space=vmem, size = 0x12000, scoped, tag = 'internal scratch']
  %s0 = inlined_call_operand.vmem [shape: bf16[2,8,8,8], index: 0, kind: input, shape index: {}]
  %s1 = inlined_call_operand.vmem [shape: bf16[3,24,8], index: 1, kind: input, shape index: {}]
  %s2 = inlined_call_operand.vmem [shape: f32[1,8], index: 2, kind: input, shape index: {}]
  %s3 = inlined_call_operand.vmem [shape: f32[1,1,8], index: 3, kind: input, shape index: {}]
  %s4 = inlined_call_operand.vmem [shape: f32[1,1,8], index: 4, kind: input, shape index: {}]
  %s5 = inlined_call_operand.vmem [shape: f32[2,64,8], index: 5, kind: output, shape index: {}]
  %s6 = sld [smem:[#allocation0]]
  $region53: #{_lambda_.9} parent=0
    _
  %s8 = ssub.s32 1, %s6
  %s9 = scalar_select 0, %s8, %s6
  loop: start=0, step=1, limit=4
  $region2: #{_lambda_.9} parent=0 // loop_pre_header
    _
  $region3: #{_lambda_.9} parent=0 // loop_header
    %s11 = sphi 0, %s15
    %p12 = scmp.ge.s32.totalorder %s11, 4
    %s21 = sphi 0, %s23
    %s24 = sphi 0, %s21
    %s25 = sphi 0, %s24
    %s41 = sphi 0, %s25
    %s45 = sphi 0, %s45
    %s47 = sphi 0, %s45
    %s48 = sphi 0, %s47
    %s62 = sphi 0, %s48
    %s66 = sphi 0, %s66
    %s68 = sphi 0, %s66
    %s69 = sphi 0, %s68
    %s83 = sphi 0, %s69
    %s87 = sphi 0, %s87
    %s89 = sphi 0, %s87
    %s90 = sphi 0, %s89
    %s104 = sphi 0, %s90
    %s108 = sphi 0, %s108
    %s110 = sphi 0, %s108
    %s111 = sphi 0, %s110
    %s125 = sphi 0, %s111
    %s131 = sphi 0, %s133
    %s134 = sphi 0, %s131
    %s135 = sphi 0, %s134
    %s151 = sphi 0, %s135
  $region4: #{_lambda_.9} parent=0 // loop_header_branch
    %14 = sbr.rel (%p12) target = $region8
  $region5: #{_lambda_.9} parent=0 // loop_body
    %s16 = ssub.s32 %s11, 1
    %s17 = ssub.s32 %s11, 2
    %s18 = sadd.s32 %s11, 1
    %s19 = ssub.s32 %s11, %s18
    %p20 = scmp.eq.s32.totalorder %s19, 0
    %s22 = sadd.s32 %s21, 1
    %s23 = scalar_select %p20, %s21, %s22
    %p26 = pneg %p20
    %p27 = scmp.eq.s32.totalorder %s11, 1
    %p28 = por %p26, %p27
    %p29 = scmp.ne.s32.totalorder %s21, %s24
    %p30 = scmp.eq.s32.totalorder %s11, 0
    %p31 = por %p29, %p30
    %p32 = scmp.ne.s32.totalorder %s21, %s24
    %p33 = scmp.eq.s32.totalorder %s16, 1
    %p34 = por %p32, %p33
    %p35 = scmp.ne.s32.totalorder %s24, %s25
    %p36 = scmp.eq.s32.totalorder %s16, 0
    %p37 = por %p35, %p36
    %p38 = scmp.ne.s32.totalorder %s24, %s25
    %p39 = scmp.eq.s32.totalorder %s17, 1
    %p40 = por %p38, %p39
    %p42 = scmp.ne.s32.totalorder %s25, %s41
    %p43 = scmp.eq.s32.totalorder %s17, 0
    %p44 = por %p42, %p43
    %s46 = sadd.s32 %s45, 1
    %p49 = scmp.eq.s32.totalorder %s11, 1
    %p50 = scmp.ne.s32.totalorder %s45, %s47
    %p51 = scmp.eq.s32.totalorder %s11, 0
    %p52 = por %p50, %p51
    %p53 = scmp.ne.s32.totalorder %s45, %s47
    %p54 = scmp.eq.s32.totalorder %s16, 1
    %p55 = por %p53, %p54
    %p56 = scmp.ne.s32.totalorder %s47, %s48
    %p57 = scmp.eq.s32.totalorder %s16, 0
    %p58 = por %p56, %p57
    %p59 = scmp.ne.s32.totalorder %s47, %s48
    %p60 = scmp.eq.s32.totalorder %s17, 1
    %p61 = por %p59, %p60
    %p63 = scmp.ne.s32.totalorder %s48, %s62
    %p64 = scmp.eq.s32.totalorder %s17, 0
    %p65 = por %p63, %p64
    %s67 = sadd.s32 %s66, 1
    %p70 = scmp.eq.s32.totalorder %s11, 1
    %p71 = scmp.ne.s32.totalorder %s66, %s68
    %p72 = scmp.eq.s32.totalorder %s11, 0
    %p73 = por %p71, %p72
    %p74 = scmp.ne.s32.totalorder %s66, %s68
    %p75 = scmp.eq.s32.totalorder %s16, 1
    %p76 = por %p74, %p75
    %p77 = scmp.ne.s32.totalorder %s68, %s69
    %p78 = scmp.eq.s32.totalorder %s16, 0
    %p79 = por %p77, %p78
    %p80 = scmp.ne.s32.totalorder %s68, %s69
    %p81 = scmp.eq.s32.totalorder %s17, 1
    %p82 = por %p80, %p81
    %p84 = scmp.ne.s32.totalorder %s69, %s83
    %p85 = scmp.eq.s32.totalorder %s17, 0
    %p86 = por %p84, %p85
    %s88 = sadd.s32 %s87, 1
    %p91 = scmp.eq.s32.totalorder %s11, 1
    %p92 = scmp.ne.s32.totalorder %s87, %s89
    %p93 = scmp.eq.s32.totalorder %s11, 0
    %p94 = por %p92, %p93
    %p95 = scmp.ne.s32.totalorder %s87, %s89
    %p96 = scmp.eq.s32.totalorder %s16, 1
    %p97 = por %p95, %p96
    %p98 = scmp.ne.s32.totalorder %s89, %s90
    %p99 = scmp.eq.s32.totalorder %s16, 0
    %p100 = por %p98, %p99
    %p101 = scmp.ne.s32.totalorder %s89, %s90
    %p102 = scmp.eq.s32.totalorder %s17, 1
    %p103 = por %p101, %p102
    %p105 = scmp.ne.s32.totalorder %s90, %s104
    %p106 = scmp.eq.s32.totalorder %s17, 0
    %p107 = por %p105, %p106
    %s109 = sadd.s32 %s108, 1
    %p112 = scmp.eq.s32.totalorder %s11, 1
    %p113 = scmp.ne.s32.totalorder %s108, %s110
    %p114 = scmp.eq.s32.totalorder %s11, 0
    %p115 = por %p113, %p114
    %p116 = scmp.ne.s32.totalorder %s108, %s110
    %p117 = scmp.eq.s32.totalorder %s16, 1
    %p118 = por %p116, %p117
    %p119 = scmp.ne.s32.totalorder %s110, %s111
    %p120 = scmp.eq.s32.totalorder %s16, 0
    %p121 = por %p119, %p120
    %p122 = scmp.ne.s32.totalorder %s110, %s111
    %p123 = scmp.eq.s32.totalorder %s17, 1
    %p124 = por %p122, %p123
    %p126 = scmp.ne.s32.totalorder %s111, %s125
    %p127 = scmp.eq.s32.totalorder %s17, 0
    %p128 = por %p126, %p127
    %s129 = ssub.s32 %s11, %s18
    %p130 = scmp.eq.s32.totalorder %s129, 0
    %s132 = sadd.s32 %s131, 1
    %s133 = scalar_select %p130, %s131, %s132
    %p136 = pneg %p130
    %p137 = scmp.eq.s32.totalorder %s11, 1
    %p138 = por %p136, %p137
    %p139 = scmp.ne.s32.totalorder %s131, %s134
    %p140 = scmp.eq.s32.totalorder %s11, 0
    %p141 = por %p139, %p140
    %p142 = scmp.ne.s32.totalorder %s131, %s134
    %p143 = scmp.eq.s32.totalorder %s16, 1
    %p144 = por %p142, %p143
    %p145 = scmp.ne.s32.totalorder %s134, %s135
    %p146 = scmp.eq.s32.totalorder %s16, 0
    %p147 = por %p145, %p146
    %p148 = scmp.ne.s32.totalorder %s134, %s135
    %p149 = scmp.eq.s32.totalorder %s17, 1
    %p150 = por %p148, %p149
    %p152 = scmp.ne.s32.totalorder %s135, %s151
    %p153 = scmp.eq.s32.totalorder %s17, 0
    %p154 = por %p152, %p153
    %p155 = scmp.le.s32.totalorder 1, %s11
    %p156 = scmp.lt.s32.totalorder %s11, 3
    %p157 = pnand %p155, %p156
    %p158 = pneg %p157
    // Predicated region
    $region9: #{_lambda_.9} parent=5 // pred_check
      _
    $region10: #{_lambda_.9} parent=5 // pred_check_branch
      %160 = sbr.rel (%p157) target = $region12
    $region11: #{_lambda_.9} parent=5 // pred_region
      %s161 = ssub.s32 %s11, 1
      // Predicated region
      $region13: #{_lambda_.9} parent=11 // pred_check
        %p162 = pneg %p58
      $region14: #{_lambda_.9} parent=11 // pred_check_branch
        %164 = sbr.rel (%p162) target = $region16
      $region15: #{_lambda_.9} parent=11 // pred_region
        _
      $region16: #{_lambda_.9} parent=11 // pred_fallthru
        _
      // Predicated region
      $region17: #{_lambda_.9} parent=11 // pred_check
        %p165 = pneg %p79
      $region18: #{_lambda_.9} parent=11 // pred_check_branch
        %167 = sbr.rel (%p165) target = $region20
      $region19: #{_lambda_.9} parent=11 // pred_region
        _
      $region20: #{_lambda_.9} parent=11 // pred_fallthru
        _
      // Predicated region
      $region21: #{_lambda_.9} parent=11 // pred_check
        %p168 = pneg %p100
      $region22: #{_lambda_.9} parent=11 // pred_check_branch
        %170 = sbr.rel (%p168) target = $region24
      $region23: #{_lambda_.9} parent=11 // pred_region
        _
      $region24: #{_lambda_.9} parent=11 // pred_fallthru
        _
      // Predicated region
      $region25: #{_lambda_.9} parent=11 // pred_check
        %p171 = pneg %p121
      $region26: #{_lambda_.9} parent=11 // pred_check_branch
        %173 = sbr.rel (%p171) target = $region28
      $region27: #{_lambda_.9} parent=11 // pred_region
        _
      $region28: #{_lambda_.9} parent=11 // pred_fallthru
        _
    $region12: #{_lambda_.9} parent=5 // pred_fallthru
      _
    %p174 = scmp.lt.s32.totalorder %s11, 2
    // Predicated region
    $region29: #{_lambda_.9} parent=5 // pred_check
      %p175 = pneg %p174
    $region30: #{_lambda_.9} parent=5 // pred_check_branch
      %177 = sbr.rel (%p175) target = $region32
    $region31: #{_lambda_.9} parent=5 // pred_region
      // Predicated region
      $region33: #{_lambda_.9} parent=31 // pred_check
        %p178 = pneg %p31
      $region34: #{_lambda_.9} parent=31 // pred_check_branch
        %180 = sbr.rel (%p178) target = $region36
      $region35: #{_lambda_.9} parent=31 // pred_region
        %p181 = scmp.lt.s32.totalorder %s11, 1
        %s182 = scalar_select %p181, %s11, 1
        %s183 = smul.addr %s182, 8
        %s184 = smul.addr %s183, 4
        %s185 = scalar_lea.vmem %s0, %s184
      $region36: #{_lambda_.9} parent=31 // pred_fallthru
        _
    $region32: #{_lambda_.9} parent=5 // pred_fallthru
      _
    %p186 = scmp.le.s32.totalorder 1, %s11
    %p187 = scmp.lt.s32.totalorder %s11, 3
    %p188 = pnand %p186, %p187
    %p189 = pneg %p188
    // Predicated region
    $region37: #{_lambda_.9} parent=5 // pred_check
      _
    $region38: #{_lambda_.9} parent=5 // pred_check_branch
      %191 = sbr.rel (%p188) target = $region40
    $region39: #{_lambda_.9} parent=5 // pred_region
      %s192 = ssub.s32 %s11, 1
      %p193 = scmp.lt.s32.totalorder %s16, 1
      %s194 = scalar_select %p193, %s16, 1
      %s195 = smul.addr %s194, 8
      %s196 = smul.addr %s195, 4
      %s197 = scalar_lea.vmem %s0, %s196
      %p198 = pneg %p37
      %p199 = pneg %p34
      %p200 = pneg %p58
      %p201 = pneg %p55
      %p202 = pneg %p79
      %p203 = pneg %p76
      %p204 = pneg %p100
      %p205 = pneg %p97
      %p206 = pneg %p121
      %p207 = pneg %p118
      %p208 = pneg %p147
      %p209 = pneg %p144
      %p210 = scmp.lt.s32.totalorder %s16, 1
      %s211 = scalar_select %p210, %s16, 1
      %s212 = smul.addr %s211, 8
      %s213 = smul.addr %s212, 8
      %s214 = scalar_lea.vmem %s5, %s213
      %p215 = scmp.lt.s32.totalorder %s16, 1
      %s216 = scalar_select %p215, %s16, 1
      %s217 = smul.addr %s216, 8
      %s218 = smul.addr %s217, 4
      %s219 = scalar_lea.vmem %s0, %s218
      %p220 = scmp.lt.s32.totalorder %s16, 1
      %s221 = scalar_select %p220, %s16, 1
      %s222 = smul.addr %s221, 8
      %s223 = smul.addr %s222, 8
      %s224 = scalar_lea.vmem %s5, %s223
      %v226 = vld [vmem:[%s219] sm:$0xf]
      %v227 = vld [vmem:[%s219 + $0x4] sm:$0xf]
      %v228 = vld [vmem:[%s219 + $0x8] sm:$0xf]
      %v229 = vld [vmem:[%s219 + $0xc] sm:$0xf]
      %v230 = vld [vmem:[%s219 + $0x10] sm:$0xf]
      %v231 = vld [vmem:[%s219 + $0x14] sm:$0xf]
      %v232 = vld [vmem:[%s219 + $0x18] sm:$0xf]
      %v233 = vld [vmem:[%s219 + $0x1c] sm:$0xf]
      %v234 = vunpack.c.l.bf16 %v226
      %v235 = vunpack.c.l.bf16 %v227
      %v236 = vunpack.c.l.bf16 %v228
      %v237 = vunpack.c.l.bf16 %v229
      %v238 = vunpack.c.l.bf16 %v230
      %v239 = vunpack.c.l.bf16 %v231
      %v240 = vunpack.c.l.bf16 %v232
      %v241 = vunpack.c.l.bf16 %v233
      %v242 = vld [vmem:[%s3] sm:$0x1]
      %v244 = vlaneseq
      %v245 = vshrl.u32 %v244, 7
      %v246 = vsub.s32 0, %v245
      %v247 = vrot.slane %v242, %v246
      %v249 = vmul.f32 %v234, %v247
      %v250 = vmul.f32 %v235, %v247
      %v251 = vmul.f32 %v236, %v247
      %v252 = vmul.f32 %v237, %v247
      %v253 = vmul.f32 %v238, %v247
      %v254 = vmul.f32 %v239, %v247
      %v255 = vmul.f32 %v240, %v247
      %v256 = vmul.f32 %v241, %v247
      %v257 = vld [vmem:[%s4] sm:$0x1]
      %v259 = vlaneseq
      %v260 = vshrl.u32 %v259, 7
      %v261 = vsub.s32 0, %v260
      %v262 = vrot.slane %v257, %v261
      %v264 = vadd.f32 %v249, %v262
      %v265 = vadd.f32 %v250, %v262
      %v266 = vadd.f32 %v251, %v262
      %v267 = vadd.f32 %v252, %v262
      %v268 = vadd.f32 %v253, %v262
      %v269 = vadd.f32 %v254, %v262
      %v270 = vadd.f32 %v255, %v262
      %v271 = vadd.f32 %v256, %v262
      %vm272 = vcmp.ge.f32.partialorder %v264, 0.0
      %vm273 = vcmp.ge.f32.partialorder %v265, 0.0
      %vm274 = vcmp.ge.f32.partialorder %v266, 0.0
      %vm275 = vcmp.ge.f32.partialorder %v267, 0.0
      %vm276 = vcmp.ge.f32.partialorder %v268, 0.0
      %vm277 = vcmp.ge.f32.partialorder %v269, 0.0
      %vm278 = vcmp.ge.f32.partialorder %v270, 0.0
      %vm279 = vcmp.ge.f32.partialorder %v271, 0.0
      %v280 = vmul.f32 %v264, 0.2
      %v281 = vmul.f32 %v265, 0.2
      %v282 = vmul.f32 %v266, 0.2
      %v283 = vmul.f32 %v267, 0.2
      %v284 = vmul.f32 %v268, 0.2
      %v285 = vmul.f32 %v269, 0.2
      %v286 = vmul.f32 %v270, 0.2
      %v287 = vmul.f32 %v271, 0.2
      %v288 = vsel %vm272, %v264, %v280
      %v289 = vsel %vm273, %v265, %v281
      %v290 = vsel %vm274, %v266, %v282
      %v291 = vsel %vm275, %v267, %v283
      %v292 = vsel %vm276, %v268, %v284
      %v293 = vsel %vm277, %v269, %v285
      %v294 = vsel %vm278, %v270, %v286
      %v295 = vsel %vm279, %v271, %v287
      %v305 = vrot.slane 0.0, 7
      %v306 = vrot.slane %v288, 7
      %v307 = vrot.slane %v289, 7
      %v308 = vrot.slane %v290, 7
      %v309 = vrot.slane %v291, 7
      %v310 = vrot.slane %v292, 7
      %v311 = vrot.slane %v293, 7
      %v312 = vrot.slane %v294, 7
      %v313 = vrot.slane %v295, 7
      %vm323 = vcmask 1040384
      %v324 = vsel %vm323, 0.0, %v305
      %v325 = vsel %vm323, 0.0, %v306
      %v326 = vsel %vm323, 0.0, %v307
      %v327 = vsel %vm323, 0.0, %v308
      %v328 = vsel %vm323, 0.0, %v309
      %v329 = vsel %vm323, 0.0, %v310
      %v330 = vsel %vm323, 0.0, %v311
      %v331 = vsel %vm323, 0.0, %v312
      %v332 = vsel %vm323, 0.0, %v313
      %v333 = vrot.slane 0.0, 1
      %v334 = vrot.slane %v288, 1
      %v335 = vrot.slane %v289, 1
      %v336 = vrot.slane %v290, 1
      %v337 = vrot.slane %v291, 1
      %v338 = vrot.slane %v292, 1
      %v339 = vrot.slane %v293, 1
      %v340 = vrot.slane %v294, 1
      %v341 = vrot.slane %v295, 1
      %vm351 = vcmask 1046528
      %v352 = vsel %vm351, %v333, 0.0
      %v353 = vsel %vm351, %v334, 0.0
      %v354 = vsel %vm351, %v335, 0.0
      %v355 = vsel %vm351, %v336, 0.0
      %v356 = vsel %vm351, %v337, 0.0
      %v357 = vsel %vm351, %v338, 0.0
      %v358 = vsel %vm351, %v339, 0.0
      %v359 = vsel %vm351, %v340, 0.0
      %v360 = vsel %vm351, %v341, 0.0
      %361 = vrot.lane.b32.xlu0 0.0, 8
      %v362 = vpop.permute.xlu0 %361
      %363 = vrot.lane.b32.xlu0 %v288, 8
      %v364 = vpop.permute.xlu0 %363
      %365 = vrot.lane.b32.xlu0 %v289, 8
      %v366 = vpop.permute.xlu0 %365
      %367 = vrot.lane.b32.xlu0 %v290, 8
      %v368 = vpop.permute.xlu0 %367
      %369 = vrot.lane.b32.xlu0 %v291, 8
      %v370 = vpop.permute.xlu0 %369
      %371 = vrot.lane.b32.xlu0 %v292, 8
      %v372 = vpop.permute.xlu0 %371
      %373 = vrot.lane.b32.xlu0 %v293, 8
      %v374 = vpop.permute.xlu0 %373
      %375 = vrot.lane.b32.xlu0 %v294, 8
      %v376 = vpop.permute.xlu0 %375
      %377 = vrot.lane.b32.xlu0 %v295, 8
      %v378 = vpop.permute.xlu0 %377
      %397 = vrot.lane.b32.xlu0 %v352, 16
      %v398 = vpop.permute.xlu0 %397
      %399 = vrot.lane.b32.xlu0 %v353, 16
      %v400 = vpop.permute.xlu0 %399
      %401 = vrot.lane.b32.xlu0 %v354, 16
      %v402 = vpop.permute.xlu0 %401
      %403 = vrot.lane.b32.xlu0 %v355, 16
      %v404 = vpop.permute.xlu0 %403
      %405 = vrot.lane.b32.xlu0 %v356, 16
      %v406 = vpop.permute.xlu0 %405
      %407 = vrot.lane.b32.xlu0 %v357, 16
      %v408 = vpop.permute.xlu0 %407
      %409 = vrot.lane.b32.xlu0 %v358, 16
      %v410 = vpop.permute.xlu0 %409
      %411 = vrot.lane.b32.xlu0 %v359, 16
      %v412 = vpop.permute.xlu0 %411
      %413 = vrot.lane.b32.xlu0 %v360, 16
      %v414 = vpop.permute.xlu0 %413
      %vm424 = vcmask 64512
      %v425 = vsel %vm424, %v324, %v362
      %v426 = vsel %vm424, %v325, %v364
      %v427 = vsel %vm424, %v326, %v366
      %v428 = vsel %vm424, %v327, %v368
      %v429 = vsel %vm424, %v328, %v370
      %v430 = vsel %vm424, %v329, %v372
      %v431 = vsel %vm424, %v330, %v374
      %v432 = vsel %vm424, %v331, %v376
      %v433 = vsel %vm424, %v332, %v378
      %vm434 = vcmask 130048
      %v435 = vsel %vm434, %v425, %v398
      %v436 = vsel %vm434, %v426, %v400
      %v437 = vsel %vm434, %v427, %v402
      %v438 = vsel %vm434, %v428, %v404
      %v439 = vsel %vm434, %v429, %v406
      %v440 = vsel %vm434, %v430, %v408
      %v441 = vsel %vm434, %v431, %v410
      %v442 = vsel %vm434, %v432, %v412
      %v443 = vsel %vm434, %v433, %v414
      %v444 = vpack.c.bf16 %v435, %v435
      %v445 = vpack.c.bf16 %v436, %v436
      %v446 = vpack.c.bf16 %v437, %v437
      %v447 = vpack.c.bf16 %v438, %v438
      %v448 = vpack.c.bf16 %v439, %v439
      %v449 = vpack.c.bf16 %v440, %v440
      %v450 = vpack.c.bf16 %v441, %v441
      %v451 = vpack.c.bf16 %v442, %v442
      %v452 = vpack.c.bf16 %v443, %v443
      %v453 = vld [vmem:[%s2] sm:$0x1]
      %v454 = vld [vmem:[%s1] sm:$0xf]
      %v455 = vld [vmem:[%s1 + $0x4] sm:$0xf]
      %v456 = vld [vmem:[%s1 + $0x8] sm:$0xf]
      %v458 = vlaneseq
      %v459 = vshrl.u32 %v458, 7
      %v460 = vsub.s32 0, %v459
      %v461 = vrot.slane %v453, %v460
      %v471 = vunpack.c.l.b16 %v444
      %v472 = vunpack.c.l.b16 %v445
      %v473 = vunpack.c.l.b16 %v446
      %v474 = vunpack.c.l.b16 %v447
      %v475 = vunpack.c.l.b16 %v448
      %v476 = vunpack.c.l.b16 %v449
      %v477 = vunpack.c.l.b16 %v450
      %v478 = vunpack.c.l.b16 %v451
      %v479 = vpack.c.b16 %v472, %v471
      %v480 = vpack.c.b16 %v474, %v473
      %v481 = vpack.c.b16 %v476, %v475
      %v482 = vpack.c.b16 %v478, %v477
      %v486 = vunpack.c.l.b16 %v454
      %v487 = vunpack.c.l.b16 %v455
      %v488 = vunpack.c.l.b16 %v456
      %v489 = vpack.c.b16 %v487, %v486
      %v490 = vpack.c.b16 %v488, %v488
      %vm492 = vcmask 195584
      %v494 = vsel %vm492, %v479, 0
      %v497 = vsel %vm492, %v480, 0
      %v500 = vsel %vm492, %v481, 0
      %v503 = vsel %vm492, %v482, 0
      %vm505 = vcmask 1043456
      %v507 = vsel %vm505, %v490, 0
      %509 = vmatprep.subr.bf16.mxu0 0
      %510 = vmatpush1.bf16.msra.mxu0 %v489
      %511 = vmatprep.subr.bf16.mxu0 0
      %512 = vmatpush1.bf16.msra.mxu0 %v507
      %513 = vmatprep.subr.bf16.mxu0 0
      %514 = vmatpush1.bf16.msra.mxu0 0
      %515 = vmatprep.subr.bf16.mxu0 0
      %516 = vmatpush1.bf16.msra.mxu0 0
      %517 = vmatprep.subr.bf16.mxu0 0
      %518 = vmatpush1.bf16.msra.mxu0 0
      %519 = vmatprep.subr.bf16.mxu0 0
      %520 = vmatpush1.bf16.msra.mxu0 0
      %521 = vmatprep.subr.bf16.mxu0 0
      %522 = vmatpush1.bf16.msra.mxu0 0
      %523 = vmatprep.subr.bf16.mxu0 0
      %524 = vmatpush1.bf16.msra.mxu0 0
      %525 = vmatprep.subr.bf16.mxu0 0
      %526 = vmatpush1.bf16.msra.mxu0 0
      %527 = vmatprep.subr.bf16.mxu0 0
      %528 = vmatpush1.bf16.msra.mxu0 0
      %529 = vmatprep.subr.bf16.mxu0 0
      %530 = vmatpush1.bf16.msra.mxu0 0
      %531 = vmatprep.subr.bf16.mxu0 0
      %532 = vmatpush1.bf16.msra.mxu0 0
      %533 = vmatprep.subr.bf16.mxu0 0
      %534 = vmatpush1.bf16.msra.mxu0 0
      %535 = vmatprep.subr.bf16.mxu0 0
      %536 = vmatpush1.bf16.msra.mxu0 0
      %537 = vmatprep.subr.bf16.mxu0 0
      %538 = vmatpush1.bf16.msra.mxu0 0
      %539 = vmatprep.subr.bf16.mxu0 0
      %540 = vmatpush1.bf16.msra.mxu0 0
      %541 = vmatprep.mubr.bf16.mxu0 0
      %542 = vmatmul.mubr.bf16.gmra.mrb[0].mxu0 %v494
      %v543 = vpop.f32.mrb[0].mxu0
      %v544 = vadd.f32 %v461, %v543
      %v545 = vpop.f32.mrb[0].mxu0
      %v546 = vpop.f32.mrb[0].mxu0
      %v547 = vadd.f32 %v461, %v546
      %v548 = vpop.f32.mrb[0].mxu0
      %549 = vmatprep.mubr.bf16.mxu0 0
      %550 = vmatmul.mubr.bf16.gmra.mrb[0].mxu0 %v497
      %v551 = vpop.f32.mrb[0].mxu0
      %v552 = vadd.f32 %v461, %v551
      %v553 = vpop.f32.mrb[0].mxu0
      %v554 = vpop.f32.mrb[0].mxu0
      %v555 = vadd.f32 %v461, %v554
      %v556 = vpop.f32.mrb[0].mxu0
      %557 = vmatprep.mubr.bf16.mxu0 0
      %558 = vmatmul.mubr.bf16.gmra.mrb[0].mxu0 %v500
      %v559 = vpop.f32.mrb[0].mxu0
      %v560 = vadd.f32 %v461, %v559
      %v561 = vpop.f32.mrb[0].mxu0
      %v562 = vpop.f32.mrb[0].mxu0
      %v563 = vadd.f32 %v461, %v562
      %v564 = vpop.f32.mrb[0].mxu0
      %565 = vmatprep.mubr.bf16.mxu0 0
      %566 = vmatmul.mubr.bf16.gmra.mrb[0].mxu0 %v503
      %v567 = vpop.f32.mrb[0].mxu0
      %v568 = vadd.f32 %v461, %v567
      %v569 = vpop.f32.mrb[0].mxu0
      %v570 = vpop.f32.mrb[0].mxu0
      %v571 = vadd.f32 %v461, %v570
      %v572 = vpop.f32.mrb[0].mxu0
      %573 = vdwg.mxu0
      %s574 = scalar_lea.vmem %s1, 12
      %v575 = vld [vmem:[%s574] sm:$0xf]
      %v576 = vld [vmem:[%s574 + $0x4] sm:$0xf]
      %v577 = vld [vmem:[%s574 + $0x8] sm:$0xf]
      %v579 = vunpack.c.l.b16 %v452
      %v580 = vpack.c.b16 %v473, %v472
      %v581 = vpack.c.b16 %v475, %v474
      %v582 = vpack.c.b16 %v477, %v476
      %v583 = vpack.c.b16 %v579, %v478
      %v587 = vunpack.c.l.b16 %v575
      %v588 = vunpack.c.l.b16 %v576
      %v589 = vunpack.c.l.b16 %v577
      %v590 = vpack.c.b16 %v588, %v587
      %v591 = vpack.c.b16 %v589, %v589
      %v594 = vsel %vm492, %v580, 0
      %v597 = vsel %vm492, %v581, 0
      %v600 = vsel %vm492, %v582, 0
      %v603 = vsel %vm492, %v583, 0
      %v606 = vsel %vm505, %v591, 0
      %608 = vmatprep.subr.bf16.mxu0 0
      %609 = vmatpush1.bf16.msra.mxu0 %v590
      %610 = vmatprep.subr.bf16.mxu0 0
      %611 = vmatpush1.bf16.msra.mxu0 %v606
      %612 = vmatprep.subr.bf16.mxu0 0
      %613 = vmatpush1.bf16.msra.mxu0 0
      %614 = vmatprep.subr.bf16.mxu0 0
      %615 = vmatpush1.bf16.msra.mxu0 0
      %616 = vmatprep.subr.bf16.mxu0 0
      %617 = vmatpush1.bf16.msra.mxu0 0
      %618 = vmatprep.subr.bf16.mxu0 0
      %619 = vmatpush1.bf16.msra.mxu0 0
      %620 = vmatprep.subr.bf16.mxu0 0
      %621 = vmatpush1.bf16.msra.mxu0 0
      %622 = vmatprep.subr.bf16.mxu0 0
      %623 = vmatpush1.bf16.msra.mxu0 0
      %624 = vmatprep.subr.bf16.mxu0 0
      %625 = vmatpush1.bf16.msra.mxu0 0
      %626 = vmatprep.subr.bf16.mxu0 0
      %627 = vmatpush1.bf16.msra.mxu0 0
      %628 = vmatprep.subr.bf16.mxu0 0
      %629 = vmatpush1.bf16.msra.mxu0 0
      %630 = vmatprep.subr.bf16.mxu0 0
      %631 = vmatpush1.bf16.msra.mxu0 0
      %632 = vmatprep.subr.bf16.mxu0 0
      %633 = vmatpush1.bf16.msra.mxu0 0
      %634 = vmatprep.subr.bf16.mxu0 0
      %635 = vmatpush1.bf16.msra.mxu0 0
      %636 = vmatprep.subr.bf16.mxu0 0
      %637 = vmatpush1.bf16.msra.mxu0 0
      %638 = vmatprep.subr.bf16.mxu0 0
      %639 = vmatpush1.bf16.msra.mxu0 0
      %640 = vmatprep.mubr.bf16.mxu0 0
      %641 = vmatmul.mubr.bf16.gmra.mrb[0].mxu0 %v594
      %v642 = vpop.f32.mrb[0].mxu0
      %v643 = vadd.f32 0.0, %v642
      %v644 = vpop.f32.mrb[0].mxu0
      %v645 = vpop.f32.mrb[0].mxu0
      %v646 = vadd.f32 0.0, %v645
      %v647 = vpop.f32.mrb[0].mxu0
      %648 = vmatprep.mubr.bf16.mxu0 0
      %649 = vmatmul.mubr.bf16.gmra.mrb[0].mxu0 %v597
      %v650 = vpop.f32.mrb[0].mxu0
      %v651 = vadd.f32 0.0, %v650
      %v652 = vpop.f32.mrb[0].mxu0
      %v653 = vpop.f32.mrb[0].mxu0
      %v654 = vadd.f32 0.0, %v653
      %v655 = vpop.f32.mrb[0].mxu0
      %656 = vmatprep.mubr.bf16.mxu0 0
      %657 = vmatmul.mubr.bf16.gmra.mrb[0].mxu0 %v600
      %v658 = vpop.f32.mrb[0].mxu0
      %v659 = vadd.f32 0.0, %v658
      %v660 = vpop.f32.mrb[0].mxu0
      %v661 = vpop.f32.mrb[0].mxu0
      %v662 = vadd.f32 0.0, %v661
      %v663 = vpop.f32.mrb[0].mxu0
      %664 = vmatprep.mubr.bf16.mxu0 0
      %665 = vmatmul.mubr.bf16.gmra.mrb[0].mxu0 %v603
      %v666 = vpop.f32.mrb[0].mxu0
      %v667 = vadd.f32 0.0, %v666
      %v668 = vpop.f32.mrb[0].mxu0
      %v669 = vpop.f32.mrb[0].mxu0
      %v670 = vadd.f32 0.0, %v669
      %v671 = vpop.f32.mrb[0].mxu0
      %672 = vdwg.mxu0
      %v673 = vadd.f32 %v544, %v643
      %v674 = vadd.f32 %v547, %v646
      %v675 = vadd.f32 %v552, %v651
      %v676 = vadd.f32 %v555, %v654
      %v677 = vadd.f32 %v560, %v659
      %v678 = vadd.f32 %v563, %v662
      %v679 = vadd.f32 %v568, %v667
      %v680 = vadd.f32 %v571, %v670
      %s681 = scalar_lea.vmem %s1, 24
      %v682 = vld [vmem:[%s681] sm:$0xf]
      %v683 = vld [vmem:[%s681 + $0x4] sm:$0xf]
      %v684 = vld [vmem:[%s681 + $0x8] sm:$0xf]
      %v685 = vpack.c.b16 %v471, %v579
      %v689 = vunpack.c.l.b16 %v682
      %v690 = vunpack.c.l.b16 %v683
      %v691 = vunpack.c.l.b16 %v684
      %v692 = vpack.c.b16 %v690, %v689
      %v693 = vpack.c.b16 %v691, %v691
      %v696 = vsel %vm492, %v685, 0
      %v699 = vsel %vm505, %v693, 0
      %701 = vmatprep.subr.bf16.mxu0 0
      %702 = vmatpush1.bf16.msra.mxu0 %v692
      %703 = vmatprep.subr.bf16.mxu0 0
      %704 = vmatpush1.bf16.msra.mxu0 %v699
      %705 = vmatprep.subr.bf16.mxu0 0
      %706 = vmatpush1.bf16.msra.mxu0 0
      %707 = vmatprep.subr.bf16.mxu0 0
      %708 = vmatpush1.bf16.msra.mxu0 0
      %709 = vmatprep.subr.bf16.mxu0 0
      %710 = vmatpush1.bf16.msra.mxu0 0
      %711 = vmatprep.subr.bf16.mxu0 0
      %712 = vmatpush1.bf16.msra.mxu0 0
      %713 = vmatprep.subr.bf16.mxu0 0
      %714 = vmatpush1.bf16.msra.mxu0 0
      %715 = vmatprep.subr.bf16.mxu0 0
      %716 = vmatpush1.bf16.msra.mxu0 0
      %717 = vmatprep.subr.bf16.mxu0 0
      %718 = vmatpush1.bf16.msra.mxu0 0
      %719 = vmatprep.subr.bf16.mxu0 0
      %720 = vmatpush1.bf16.msra.mxu0 0
      %721 = vmatprep.subr.bf16.mxu0 0
      %722 = vmatpush1.bf16.msra.mxu0 0
      %723 = vmatprep.subr.bf16.mxu0 0
      %724 = vmatpush1.bf16.msra.mxu0 0
      %725 = vmatprep.subr.bf16.mxu0 0
      %726 = vmatpush1.bf16.msra.mxu0 0
      %727 = vmatprep.subr.bf16.mxu0 0
      %728 = vmatpush1.bf16.msra.mxu0 0
      %729 = vmatprep.subr.bf16.mxu0 0
      %730 = vmatpush1.bf16.msra.mxu0 0
      %731 = vmatprep.subr.bf16.mxu0 0
      %732 = vmatpush1.bf16.msra.mxu0 0
      %733 = vmatprep.mubr.bf16.mxu0 0
      %734 = vmatmul.mubr.bf16.gmra.mrb[0].mxu0 %v497
      %v735 = vpop.f32.mrb[0].mxu0
      %v736 = vadd.f32 0.0, %v735
      %v737 = vpop.f32.mrb[0].mxu0
      %v738 = vpop.f32.mrb[0].mxu0
      %v739 = vadd.f32 0.0, %v738
      %v740 = vpop.f32.mrb[0].mxu0
      %741 = vmatprep.mubr.bf16.mxu0 0
      %742 = vmatmul.mubr.bf16.gmra.mrb[0].mxu0 %v500
      %v743 = vpop.f32.mrb[0].mxu0
      %v744 = vadd.f32 0.0, %v743
      %v745 = vpop.f32.mrb[0].mxu0
      %v746 = vpop.f32.mrb[0].mxu0
      %v747 = vadd.f32 0.0, %v746
      %v748 = vpop.f32.mrb[0].mxu0
      %749 = vmatprep.mubr.bf16.mxu0 0
      %750 = vmatmul.mubr.bf16.gmra.mrb[0].mxu0 %v503
      %v751 = vpop.f32.mrb[0].mxu0
      %v752 = vadd.f32 0.0, %v751
      %v753 = vpop.f32.mrb[0].mxu0
      %v754 = vpop.f32.mrb[0].mxu0
      %v755 = vadd.f32 0.0, %v754
      %v756 = vpop.f32.mrb[0].mxu0
      %757 = vmatprep.mubr.bf16.mxu0 0
      %758 = vmatmul.mubr.bf16.gmra.mrb[0].mxu0 %v696
      %v759 = vpop.f32.mrb[0].mxu0
      %v760 = vadd.f32 0.0, %v759
      %v761 = vpop.f32.mrb[0].mxu0
      %v762 = vpop.f32.mrb[0].mxu0
      %v763 = vadd.f32 0.0, %v762
      %v764 = vpop.f32.mrb[0].mxu0
      %765 = vdwg.mxu0
      %v766 = vadd.f32 %v673, %v736
      %v767 = vadd.f32 %v674, %v739
      %v768 = vadd.f32 %v675, %v744
      %v769 = vadd.f32 %v676, %v747
      %v770 = vadd.f32 %v677, %v752
      %v771 = vadd.f32 %v678, %v755
      %v772 = vadd.f32 %v679, %v760
      %v773 = vadd.f32 %v680, %v763
      %774 = vst.msk [vmem:[%s224] sm:$0xff] %vm424, %v766
      %775 = vst.msk [vmem:[%s224 + $0x8] sm:$0xff] %vm424, %v767
      %776 = vst.msk [vmem:[%s224 + $0x10] sm:$0xff] %vm424, %v768
      %777 = vst.msk [vmem:[%s224 + $0x18] sm:$0xff] %vm424, %v769
      %778 = vst.msk [vmem:[%s224 + $0x20] sm:$0xff] %vm424, %v770
      %779 = vst.msk [vmem:[%s224 + $0x28] sm:$0xff] %vm424, %v771
      %780 = vst.msk [vmem:[%s224 + $0x30] sm:$0xff] %vm424, %v772
      %781 = vst.msk [vmem:[%s224 + $0x38] sm:$0xff] %vm424, %v773
      %p782 = scmp.lt.s32.totalorder %s16, 1
      %s783 = scalar_select %p782, %s16, 1
      %s784 = smul.addr %s783, 8
      %s785 = smul.addr %s784, 8
      %s786 = scalar_lea.vmem %s5, %s785
      // Predicated region
      $region41: #{_lambda_.9} parent=39 // pred_check
        %p787 = pneg %p144
      $region42: #{_lambda_.9} parent=39 // pred_check_branch
        %789 = sbr.rel (%p787) target = $region44
      $region43: #{_lambda_.9} parent=39 // pred_region
        _
      $region44: #{_lambda_.9} parent=39 // pred_fallthru
        _
    $region40: #{_lambda_.9} parent=5 // pred_fallthru
      _
    %p790 = scmp.le.s32.totalorder 2, %s11
    // Predicated region
    $region45: #{_lambda_.9} parent=5 // pred_check
      %p791 = pneg %p790
    $region46: #{_lambda_.9} parent=5 // pred_check_branch
      %793 = sbr.rel (%p791) target = $region48
    $region47: #{_lambda_.9} parent=5 // pred_region
      %s794 = ssub.s32 %s11, 2
      // Predicated region
      $region49: #{_lambda_.9} parent=47 // pred_check
        %p795 = pneg %p150
      $region50: #{_lambda_.9} parent=47 // pred_check_branch
        %797 = sbr.rel (%p795) target = $region52
      $region51: #{_lambda_.9} parent=47 // pred_region
        %p798 = scmp.lt.s32.totalorder %s17, 1
        %s799 = scalar_select %p798, %s17, 1
        %s800 = smul.addr %s799, 8
        %s801 = smul.addr %s800, 8
        %s802 = scalar_lea.vmem %s5, %s801
      $region52: #{_lambda_.9} parent=47 // pred_fallthru
        _
    $region48: #{_lambda_.9} parent=5 // pred_fallthru
      _
  $region6: #{_lambda_.9} parent=0 // loop_footer
    %s15 = sadd.s32 1, %s11
  $region7: #{_lambda_.9} parent=0 // loop_footer_branch
    %10 = sbr.rel target = $region3
  $region8: #{_lambda_.9} parent=0 // loop_exit
    _

// kernel: _lambda_.8
$region0: #{_lambda_.8}
  #allocation0 [shape = 'u32[]', space=smem, size = 0x4, offset = 0x4, fixed_abs, tag = 'smem constant byte address 0x4 - core index']
  #allocation1 [shape = 'u32[144,128]{1,0:T(1,128)}', space=vmem, size = 0x12000, scoped, tag = 'internal scratch']
  %s0 = inlined_call_operand.vmem [shape: bf16[2,16,8,64], index: 0, kind: input, shape index: {}]
  %s1 = inlined_call_operand.vmem [shape: bf16[3,96,8], index: 1, kind: input, shape index: {}]
  %s2 = inlined_call_operand.vmem [shape: f32[1,8], index: 2, kind: input, shape index: {}]
  %s3 = inlined_call_operand.vmem [shape: f32[1,1,64], index: 3, kind: input, shape index: {}]
  %s4 = inlined_call_operand.vmem [shape: f32[1,1,64], index: 4, kind: input, shape index: {}]
  %s5 = inlined_call_operand.vmem [shape: bf16[2,64,8], index: 5, kind: output, shape index: {0}]
  %s6 = inlined_call_operand.vmem [shape: f32[2,1,8], index: 6, kind: output, shape index: {1}]
  %s7 = inlined_call_operand.vmem [shape: f32[2,1,8], index: 7, kind: output, shape index: {2}]
  %8 = xla_tuple %s5, %s6, %s7
  %s9 = sld [smem:[#allocation0]]
  $region69: #{_lambda_.8} parent=0
    _
  %s11 = ssub.s32 1, %s9
  %s12 = scalar_select 0, %s11, %s9
  loop: start=0, step=1, limit=4
  $region2: #{_lambda_.8} parent=0 // loop_pre_header
    _
  $region3: #{_lambda_.8} parent=0 // loop_header
    %s14 = sphi 0, %s18
    %p15 = scmp.ge.s32.totalorder %s14, 4
    %s24 = sphi 0, %s26
    %s27 = sphi 0, %s24
    %s28 = sphi 0, %s27
    %s44 = sphi 0, %s28
    %s48 = sphi 0, %s48
    %s50 = sphi 0, %s48
    %s51 = sphi 0, %s50
    %s65 = sphi 0, %s51
    %s69 = sphi 0, %s69
    %s71 = sphi 0, %s69
    %s72 = sphi 0, %s71
    %s86 = sphi 0, %s72
    %s90 = sphi 0, %s90
    %s92 = sphi 0, %s90
    %s93 = sphi 0, %s92
    %s107 = sphi 0, %s93
    %s111 = sphi 0, %s111
    %s113 = sphi 0, %s111
    %s114 = sphi 0, %s113
    %s128 = sphi 0, %s114
    %s134 = sphi 0, %s136
    %s137 = sphi 0, %s134
    %s138 = sphi 0, %s137
    %s154 = sphi 0, %s138
    %s160 = sphi 0, %s162
    %s163 = sphi 0, %s160
    %s164 = sphi 0, %s163
    %s180 = sphi 0, %s164
    %s186 = sphi 0, %s188
    %s189 = sphi 0, %s186
    %s190 = sphi 0, %s189
    %s206 = sphi 0, %s190
  $region4: #{_lambda_.8} parent=0 // loop_header_branch
    %17 = sbr.rel (%p15) target = $region8
  $region5: #{_lambda_.8} parent=0 // loop_body
    %s19 = ssub.s32 %s14, 1
    %s20 = ssub.s32 %s14, 2
    %s21 = sadd.s32 %s14, 1
    %s22 = ssub.s32 %s14, %s21
    %p23 = scmp.eq.s32.totalorder %s22, 0
    %s25 = sadd.s32 %s24, 1
    %s26 = scalar_select %p23, %s24, %s25
    %p29 = pneg %p23
    %p30 = scmp.eq.s32.totalorder %s14, 1
    %p31 = por %p29, %p30
    %p32 = scmp.ne.s32.totalorder %s24, %s27
    %p33 = scmp.eq.s32.totalorder %s14, 0
    %p34 = por %p32, %p33
    %p35 = scmp.ne.s32.totalorder %s24, %s27
    %p36 = scmp.eq.s32.totalorder %s19, 1
    %p37 = por %p35, %p36
    %p38 = scmp.ne.s32.totalorder %s27, %s28
    %p39 = scmp.eq.s32.totalorder %s19, 0
    %p40 = por %p38, %p39
    %p41 = scmp.ne.s32.totalorder %s27, %s28
    %p42 = scmp.eq.s32.totalorder %s20, 1
    %p43 = por %p41, %p42
    %p45 = scmp.ne.s32.totalorder %s28, %s44
    %p46 = scmp.eq.s32.totalorder %s20, 0
    %p47 = por %p45, %p46
    %s49 = sadd.s32 %s48, 1
    %p52 = scmp.eq.s32.totalorder %s14, 1
    %p53 = scmp.ne.s32.totalorder %s48, %s50
    %p54 = scmp.eq.s32.totalorder %s14, 0
    %p55 = por %p53, %p54
    %p56 = scmp.ne.s32.totalorder %s48, %s50
    %p57 = scmp.eq.s32.totalorder %s19, 1
    %p58 = por %p56, %p57
    %p59 = scmp.ne.s32.totalorder %s50, %s51
    %p60 = scmp.eq.s32.totalorder %s19, 0
    %p61 = por %p59, %p60
    %p62 = scmp.ne.s32.totalorder %s50, %s51
    %p63 = scmp.eq.s32.totalorder %s20, 1
    %p64 = por %p62, %p63
    %p66 = scmp.ne.s32.totalorder %s51, %s65
    %p67 = scmp.eq.s32.totalorder %s20, 0
    %p68 = por %p66, %p67
    %s70 = sadd.s32 %s69, 1
    %p73 = scmp.eq.s32.totalorder %s14, 1
    %p74 = scmp.ne.s32.totalorder %s69, %s71
    %p75 = scmp.eq.s32.totalorder %s14, 0
    %p76 = por %p74, %p75
    %p77 = scmp.ne.s32.totalorder %s69, %s71
    %p78 = scmp.eq.s32.totalorder %s19, 1
    %p79 = por %p77, %p78
    %p80 = scmp.ne.s32.totalorder %s71, %s72
    %p81 = scmp.eq.s32.totalorder %s19, 0
    %p82 = por %p80, %p81
    %p83 = scmp.ne.s32.totalorder %s71, %s72
    %p84 = scmp.eq.s32.totalorder %s20, 1
    %p85 = por %p83, %p84
    %p87 = scmp.ne.s32.totalorder %s72, %s86
    %p88 = scmp.eq.s32.totalorder %s20, 0
    %p89 = por %p87, %p88
    %s91 = sadd.s32 %s90, 1
    %p94 = scmp.eq.s32.totalorder %s14, 1
    %p95 = scmp.ne.s32.totalorder %s90, %s92
    %p96 = scmp.eq.s32.totalorder %s14, 0
    %p97 = por %p95, %p96
    %p98 = scmp.ne.s32.totalorder %s90, %s92
    %p99 = scmp.eq.s32.totalorder %s19, 1
    %p100 = por %p98, %p99
    %p101 = scmp.ne.s32.totalorder %s92, %s93
    %p102 = scmp.eq.s32.totalorder %s19, 0
    %p103 = por %p101, %p102
    %p104 = scmp.ne.s32.totalorder %s92, %s93
    %p105 = scmp.eq.s32.totalorder %s20, 1
    %p106 = por %p104, %p105
    %p108 = scmp.ne.s32.totalorder %s93, %s107
    %p109 = scmp.eq.s32.totalorder %s20, 0
    %p110 = por %p108, %p109
    %s112 = sadd.s32 %s111, 1
    %p115 = scmp.eq.s32.totalorder %s14, 1
    %p116 = scmp.ne.s32.totalorder %s111, %s113
    %p117 = scmp.eq.s32.totalorder %s14, 0
    %p118 = por %p116, %p117
    %p119 = scmp.ne.s32.totalorder %s111, %s113
    %p120 = scmp.eq.s32.totalorder %s19, 1
    %p121 = por %p119, %p120
    %p122 = scmp.ne.s32.totalorder %s113, %s114
    %p123 = scmp.eq.s32.totalorder %s19, 0
    %p124 = por %p122, %p123
    %p125 = scmp.ne.s32.totalorder %s113, %s114
    %p126 = scmp.eq.s32.totalorder %s20, 1
    %p127 = por %p125, %p126
    %p129 = scmp.ne.s32.totalorder %s114, %s128
    %p130 = scmp.eq.s32.totalorder %s20, 0
    %p131 = por %p129, %p130
    %s132 = ssub.s32 %s14, %s21
    %p133 = scmp.eq.s32.totalorder %s132, 0
    %s135 = sadd.s32 %s134, 1
    %s136 = scalar_select %p133, %s134, %s135
    %p139 = pneg %p133
    %p140 = scmp.eq.s32.totalorder %s14, 1
    %p141 = por %p139, %p140
    %p142 = scmp.ne.s32.totalorder %s134, %s137
    %p143 = scmp.eq.s32.totalorder %s14, 0
    %p144 = por %p142, %p143
    %p145 = scmp.ne.s32.totalorder %s134, %s137
    %p146 = scmp.eq.s32.totalorder %s19, 1
    %p147 = por %p145, %p146
    %p148 = scmp.ne.s32.totalorder %s137, %s138
    %p149 = scmp.eq.s32.totalorder %s19, 0
    %p150 = por %p148, %p149
    %p151 = scmp.ne.s32.totalorder %s137, %s138
    %p152 = scmp.eq.s32.totalorder %s20, 1
    %p153 = por %p151, %p152
    %p155 = scmp.ne.s32.totalorder %s138, %s154
    %p156 = scmp.eq.s32.totalorder %s20, 0
    %p157 = por %p155, %p156
    %s158 = ssub.s32 %s14, %s21
    %p159 = scmp.eq.s32.totalorder %s158, 0
    %s161 = sadd.s32 %s160, 1
    %s162 = scalar_select %p159, %s160, %s161
    %p165 = pneg %p159
    %p166 = scmp.eq.s32.totalorder %s14, 1
    %p167 = por %p165, %p166
    %p168 = scmp.ne.s32.totalorder %s160, %s163
    %p169 = scmp.eq.s32.totalorder %s14, 0
    %p170 = por %p168, %p169
    %p171 = scmp.ne.s32.totalorder %s160, %s163
    %p172 = scmp.eq.s32.totalorder %s19, 1
    %p173 = por %p171, %p172
    %p174 = scmp.ne.s32.totalorder %s163, %s164
    %p175 = scmp.eq.s32.totalorder %s19, 0
    %p176 = por %p174, %p175
    %p177 = scmp.ne.s32.totalorder %s163, %s164
    %p178 = scmp.eq.s32.totalorder %s20, 1
    %p179 = por %p177, %p178
    %p181 = scmp.ne.s32.totalorder %s164, %s180
    %p182 = scmp.eq.s32.totalorder %s20, 0
    %p183 = por %p181, %p182
    %s184 = ssub.s32 %s14, %s21
    %p185 = scmp.eq.s32.totalorder %s184, 0
    %s187 = sadd.s32 %s186, 1
    %s188 = scalar_select %p185, %s186, %s187
    %p191 = pneg %p185
    %p192 = scmp.eq.s32.totalorder %s14, 1
    %p193 = por %p191, %p192
    %p194 = scmp.ne.s32.totalorder %s186, %s189
    %p195 = scmp.eq.s32.totalorder %s14, 0
    %p196 = por %p194, %p195
    %p197 = scmp.ne.s32.totalorder %s186, %s189
    %p198 = scmp.eq.s32.totalorder %s19, 1
    %p199 = por %p197, %p198
    %p200 = scmp.ne.s32.totalorder %s189, %s190
    %p201 = scmp.eq.s32.totalorder %s19, 0
    %p202 = por %p200, %p201
    %p203 = scmp.ne.s32.totalorder %s189, %s190
    %p204 = scmp.eq.s32.totalorder %s20, 1
    %p205 = por %p203, %p204
    %p207 = scmp.ne.s32.totalorder %s190, %s206
    %p208 = scmp.eq.s32.totalorder %s20, 0
    %p209 = por %p207, %p208
    %p210 = scmp.le.s32.totalorder 1, %s14
    %p211 = scmp.lt.s32.totalorder %s14, 3
    %p212 = pnand %p210, %p211
    %p213 = pneg %p212
    // Predicated region
    $region9: #{_lambda_.8} parent=5 // pred_check
      _
    $region10: #{_lambda_.8} parent=5 // pred_check_branch
      %215 = sbr.rel (%p212) target = $region12
    $region11: #{_lambda_.8} parent=5 // pred_region
      %s216 = ssub.s32 %s14, 1
      // Predicated region
      $region13: #{_lambda_.8} parent=11 // pred_check
        %p217 = pneg %p61
      $region14: #{_lambda_.8} parent=11 // pred_check_branch
        %219 = sbr.rel (%p217) target = $region16
      $region15: #{_lambda_.8} parent=11 // pred_region
        _
      $region16: #{_lambda_.8} parent=11 // pred_fallthru
        _
      // Predicated region
      $region17: #{_lambda_.8} parent=11 // pred_check
        %p220 = pneg %p82
      $region18: #{_lambda_.8} parent=11 // pred_check_branch
        %222 = sbr.rel (%p220) target = $region20
      $region19: #{_lambda_.8} parent=11 // pred_region
        _
      $region20: #{_lambda_.8} parent=11 // pred_fallthru
        _
      // Predicated region
      $region21: #{_lambda_.8} parent=11 // pred_check
        %p223 = pneg %p103
      $region22: #{_lambda_.8} parent=11 // pred_check_branch
        %225 = sbr.rel (%p223) target = $region24
      $region23: #{_lambda_.8} parent=11 // pred_region
        _
      $region24: #{_lambda_.8} parent=11 // pred_fallthru
        _
      // Predicated region
      $region25: #{_lambda_.8} parent=11 // pred_check
        %p226 = pneg %p124
      $region26: #{_lambda_.8} parent=11 // pred_check_branch
        %228 = sbr.rel (%p226) target = $region28
      $region27: #{_lambda_.8} parent=11 // pred_region
        _
      $region28: #{_lambda_.8} parent=11 // pred_fallthru
        _
    $region12: #{_lambda_.8} parent=5 // pred_fallthru
      _
    %p229 = scmp.lt.s32.totalorder %s14, 2
    // Predicated region
    $region29: #{_lambda_.8} parent=5 // pred_check
      %p230 = pneg %p229
    $region30: #{_lambda_.8} parent=5 // pred_check_branch
      %232 = sbr.rel (%p230) target = $region32
    $region31: #{_lambda_.8} parent=5 // pred_region
      // Predicated region
      $region33: #{_lambda_.8} parent=31 // pred_check
        %p233 = pneg %p34
      $region34: #{_lambda_.8} parent=31 // pred_check_branch
        %235 = sbr.rel (%p233) target = $region36
      $region35: #{_lambda_.8} parent=31 // pred_region
        %p236 = scmp.lt.s32.totalorder %s14, 1
        %s237 = scalar_select %p236, %s14, 1
        %s238 = smul.addr %s237, 16
        %s239 = smul.addr %s238, 4
        %s240 = scalar_lea.vmem %s0, %s239
      $region36: #{_lambda_.8} parent=31 // pred_fallthru
        _
    $region32: #{_lambda_.8} parent=5 // pred_fallthru
      _
    %p241 = scmp.le.s32.totalorder 1, %s14
    %p242 = scmp.lt.s32.totalorder %s14, 3
    %p243 = pnand %p241, %p242
    %p244 = pneg %p243
    // Predicated region
    $region37: #{_lambda_.8} parent=5 // pred_check
      _
    $region38: #{_lambda_.8} parent=5 // pred_check_branch
      %246 = sbr.rel (%p243) target = $region40
    $region39: #{_lambda_.8} parent=5 // pred_region
      %s247 = ssub.s32 %s14, 1
      %p248 = scmp.lt.s32.totalorder %s19, 1
      %s249 = scalar_select %p248, %s19, 1
      %s250 = smul.addr %s249, 16
      %s251 = smul.addr %s250, 4
      %s252 = scalar_lea.vmem %s0, %s251
      %p253 = pneg %p40
      %p254 = pneg %p37
      %p255 = pneg %p61
      %p256 = pneg %p58
      %p257 = pneg %p82
      %p258 = pneg %p79
      %p259 = pneg %p103
      %p260 = pneg %p100
      %p261 = pneg %p124
      %p262 = pneg %p121
      %p263 = pneg %p150
      %p264 = pneg %p147
      %p265 = scmp.lt.s32.totalorder %s19, 1
      %s266 = scalar_select %p265, %s19, 1
      %s267 = smul.addr %s266, 8
      %s268 = smul.addr %s267, 4
      %s269 = scalar_lea.vmem %s5, %s268
      %p270 = pneg %p176
      %p271 = pneg %p173
      %p272 = scmp.lt.s32.totalorder %s19, 1
      %s273 = scalar_select %p272, %s19, 1
      %s274 = scalar_lea.vmem %s6, %s273
      %p275 = pneg %p202
      %p276 = pneg %p199
      %p277 = scmp.lt.s32.totalorder %s19, 1
      %s278 = scalar_select %p277, %s19, 1
      %s279 = scalar_lea.vmem %s7, %s278
      %p280 = scmp.lt.s32.totalorder %s19, 1
      %s281 = scalar_select %p280, %s19, 1
      %s282 = smul.addr %s281, 16
      %s283 = smul.addr %s282, 4
      %s284 = scalar_lea.vmem %s0, %s283
      %p285 = scmp.lt.s32.totalorder %s19, 1
      %s286 = scalar_select %p285, %s19, 1
      %s287 = smul.addr %s286, 8
      %s288 = smul.addr %s287, 4
      %s289 = scalar_lea.vmem %s5, %s288
      %p290 = scmp.lt.s32.totalorder %s19, 1
      %s291 = scalar_select %p290, %s19, 1
      %s292 = scalar_lea.vmem %s6, %s291
      %p293 = scmp.lt.s32.totalorder %s19, 1
      %s294 = scalar_select %p293, %s19, 1
      %s295 = scalar_lea.vmem %s7, %s294
      %v297 = vld [vmem:[%s284] sm:$0xf]
      %v298 = vld [vmem:[%s284 + $0x4] sm:$0xf]
      %v299 = vld [vmem:[%s284 + $0x8] sm:$0xf]
      %v300 = vld [vmem:[%s284 + $0xc] sm:$0xf]
      %v301 = vld [vmem:[%s284 + $0x10] sm:$0xf]
      %v302 = vld [vmem:[%s284 + $0x14] sm:$0xf]
      %v303 = vld [vmem:[%s284 + $0x18] sm:$0xf]
      %v304 = vld [vmem:[%s284 + $0x1c] sm:$0xf]
      %v305 = vld [vmem:[%s284 + $0x20] sm:$0xf]
      %v306 = vld [vmem:[%s284 + $0x24] sm:$0xf]
      %v307 = vld [vmem:[%s284 + $0x28] sm:$0xf]
      %v308 = vld [vmem:[%s284 + $0x2c] sm:$0xf]
      %v309 = vld [vmem:[%s284 + $0x30] sm:$0xf]
      %v310 = vld [vmem:[%s284 + $0x34] sm:$0xf]
      %v311 = vld [vmem:[%s284 + $0x38] sm:$0xf]
      %v312 = vld [vmem:[%s284 + $0x3c] sm:$0xf]
      %v313 = vunpack.c.l.bf16 %v297
      %v314 = vunpack.c.l.bf16 %v298
      %v315 = vunpack.c.l.bf16 %v299
      %v316 = vunpack.c.l.bf16 %v300
      %v317 = vunpack.c.l.bf16 %v301
      %v318 = vunpack.c.l.bf16 %v302
      %v319 = vunpack.c.l.bf16 %v303
      %v320 = vunpack.c.l.bf16 %v304
      %v321 = vunpack.c.l.bf16 %v305
      %v322 = vunpack.c.l.bf16 %v306
      %v323 = vunpack.c.l.bf16 %v307
      %v324 = vunpack.c.l.bf16 %v308
      %v325 = vunpack.c.l.bf16 %v309
      %v326 = vunpack.c.l.bf16 %v310
      %v327 = vunpack.c.l.bf16 %v311
      %v328 = vunpack.c.l.bf16 %v312
      %v329 = vld [vmem:[%s3] sm:$0x1]
      %v331 = vlaneseq
      %v332 = vshrl.u32 %v331, 7
      %v333 = vsub.s32 0, %v332
      %v334 = vrot.slane %v329, %v333
      %v336 = vmul.f32 %v313, %v334
      %v337 = vmul.f32 %v314, %v334
      %v338 = vmul.f32 %v315, %v334
      %v339 = vmul.f32 %v316, %v334
      %v340 = vmul.f32 %v317, %v334
      %v341 = vmul.f32 %v318, %v334
      %v342 = vmul.f32 %v319, %v334
      %v343 = vmul.f32 %v320, %v334
      %v344 = vmul.f32 %v321, %v334
      %v345 = vmul.f32 %v322, %v334
      %v346 = vmul.f32 %v323, %v334
      %v347 = vmul.f32 %v324, %v334
      %v348 = vmul.f32 %v325, %v334
      %v349 = vmul.f32 %v326, %v334
      %v350 = vmul.f32 %v327, %v334
      %v351 = vmul.f32 %v328, %v334
      %v352 = vld [vmem:[%s4] sm:$0x1]
      %v354 = vlaneseq
      %v355 = vshrl.u32 %v354, 7
      %v356 = vsub.s32 0, %v355
      %v357 = vrot.slane %v352, %v356
      %v359 = vadd.f32 %v336, %v357
      %v360 = vadd.f32 %v337, %v357
      %v361 = vadd.f32 %v338, %v357
      %v362 = vadd.f32 %v339, %v357
      %v363 = vadd.f32 %v340, %v357
      %v364 = vadd.f32 %v341, %v357
      %v365 = vadd.f32 %v342, %v357
      %v366 = vadd.f32 %v343, %v357
      %v367 = vadd.f32 %v344, %v357
      %v368 = vadd.f32 %v345, %v357
      %v369 = vadd.f32 %v346, %v357
      %v370 = vadd.f32 %v347, %v357
      %v371 = vadd.f32 %v348, %v357
      %v372 = vadd.f32 %v349, %v357
      %v373 = vadd.f32 %v350, %v357
      %v374 = vadd.f32 %v351, %v357
      %vm375 = vcmp.ge.f32.partialorder %v359, 0.0
      %vm376 = vcmp.ge.f32.partialorder %v360, 0.0
      %vm377 = vcmp.ge.f32.partialorder %v361, 0.0
      %vm378 = vcmp.ge.f32.partialorder %v362, 0.0
      %vm379 = vcmp.ge.f32.partialorder %v363, 0.0
      %vm380 = vcmp.ge.f32.partialorder %v364, 0.0
      %vm381 = vcmp.ge.f32.partialorder %v365, 0.0
      %vm382 = vcmp.ge.f32.partialorder %v366, 0.0
      %vm383 = vcmp.ge.f32.partialorder %v367, 0.0
      %vm384 = vcmp.ge.f32.partialorder %v368, 0.0
      %vm385 = vcmp.ge.f32.partialorder %v369, 0.0
      %vm386 = vcmp.ge.f32.partialorder %v370, 0.0
      %vm387 = vcmp.ge.f32.partialorder %v371, 0.0
      %vm388 = vcmp.ge.f32.partialorder %v372, 0.0
      %vm389 = vcmp.ge.f32.partialorder %v373, 0.0
      %vm390 = vcmp.ge.f32.partialorder %v374, 0.0
      %v391 = vmul.f32 %v359, 0.2
      %v392 = vmul.f32 %v360, 0.2
      %v393 = vmul.f32 %v361, 0.2
      %v394 = vmul.f32 %v362, 0.2
      %v395 = vmul.f32 %v363, 0.2
      %v396 = vmul.f32 %v364, 0.2
      %v397 = vmul.f32 %v365, 0.2
      %v398 = vmul.f32 %v366, 0.2
      %v399 = vmul.f32 %v367, 0.2
      %v400 = vmul.f32 %v368, 0.2
      %v401 = vmul.f32 %v369, 0.2
      %v402 = vmul.f32 %v370, 0.2
      %v403 = vmul.f32 %v371, 0.2
      %v404 = vmul.f32 %v372, 0.2
      %v405 = vmul.f32 %v373, 0.2
      %v406 = vmul.f32 %v374, 0.2
      %v407 = vsel %vm375, %v359, %v391
      %v408 = vsel %vm376, %v360, %v392
      %v409 = vsel %vm377, %v361, %v393
      %v410 = vsel %vm378, %v362, %v394
      %v411 = vsel %vm379, %v363, %v395
      %v412 = vsel %vm380, %v364, %v396
      %v413 = vsel %vm381, %v365, %v397
      %v414 = vsel %vm382, %v366, %v398
      %v415 = vsel %vm383, %v367, %v399
      %v416 = vsel %vm384, %v368, %v400
      %v417 = vsel %vm385, %v369, %v401
      %v418 = vsel %vm386, %v370, %v402
      %v419 = vsel %vm387, %v371, %v403
      %v420 = vsel %vm388, %v372, %v404
      %v421 = vsel %vm389, %v373, %v405
      %v422 = vsel %vm390, %v374, %v406
      %v423 = vadd.f32 %v407, %v408
      %v424 = vadd.f32 %v409, %v410
      %v425 = vadd.f32 %v411, %v412
      %v426 = vadd.f32 %v413, %v414
      %v427 = vadd.f32 %v415, %v416
      %v428 = vadd.f32 %v417, %v418
      %v429 = vadd.f32 %v419, %v420
      %v430 = vadd.f32 %v421, %v422
      %439 = vrot.lane.b32.xlu0 %v423, 96
      %v440 = vpop.permute.xlu0 %439
      %441 = vrot.lane.b32.xlu0 %v424, 96
      %v442 = vpop.permute.xlu0 %441
      %443 = vrot.lane.b32.xlu0 %v425, 96
      %v444 = vpop.permute.xlu0 %443
      %445 = vrot.lane.b32.xlu0 %v426, 96
      %v446 = vpop.permute.xlu0 %445
      %447 = vrot.lane.b32.xlu0 %v427, 96
      %v448 = vpop.permute.xlu0 %447
      %449 = vrot.lane.b32.xlu0 %v428, 96
      %v450 = vpop.permute.xlu0 %449
      %451 = vrot.lane.b32.xlu0 %v429, 96
      %v452 = vpop.permute.xlu0 %451
      %453 = vrot.lane.b32.xlu0 %v430, 96
      %v454 = vpop.permute.xlu0 %453
      %v463 = vadd.f32 %v423, %v440
      %v464 = vadd.f32 %v424, %v442
      %v465 = vadd.f32 %v425, %v444
      %v466 = vadd.f32 %v426, %v446
      %v467 = vadd.f32 %v427, %v448
      %v468 = vadd.f32 %v428, %v450
      %v469 = vadd.f32 %v429, %v452
      %v470 = vadd.f32 %v430, %v454
      %v471 = vmul.f32 %v463, 0.25
      %v472 = vmul.f32 %v464, 0.25
      %v473 = vmul.f32 %v465, 0.25
      %v474 = vmul.f32 %v466, 0.25
      %v475 = vmul.f32 %v467, 0.25
      %v476 = vmul.f32 %v468, 0.25
      %v477 = vmul.f32 %v469, 0.25
      %v478 = vmul.f32 %v470, 0.25
      %v488 = vrot.slane 0.0, 7
      %v489 = vrot.slane %v471, 7
      %v490 = vrot.slane %v472, 7
      %v491 = vrot.slane %v473, 7
      %v492 = vrot.slane %v474, 7
      %v493 = vrot.slane %v475, 7
      %v494 = vrot.slane %v476, 7
      %v495 = vrot.slane %v477, 7
      %v496 = vrot.slane %v478, 7
      %vm506 = vcmask 1040384
      %v507 = vsel %vm506, 0.0, %v488
      %v508 = vsel %vm506, 0.0, %v489
      %v509 = vsel %vm506, 0.0, %v490
      %v510 = vsel %vm506, 0.0, %v491
      %v511 = vsel %vm506, 0.0, %v492
      %v512 = vsel %vm506, 0.0, %v493
      %v513 = vsel %vm506, 0.0, %v494
      %v514 = vsel %vm506, 0.0, %v495
      %v515 = vsel %vm506, 0.0, %v496
      %v516 = vrot.slane 0.0, 1
      %v517 = vrot.slane %v471, 1
      %v518 = vrot.slane %v472, 1
      %v519 = vrot.slane %v473, 1
      %v520 = vrot.slane %v474, 1
      %v521 = vrot.slane %v475, 1
      %v522 = vrot.slane %v476, 1
      %v523 = vrot.slane %v477, 1
      %v524 = vrot.slane %v478, 1
      %vm534 = vcmask 1046528
      %v535 = vsel %vm534, %v516, 0.0
      %v536 = vsel %vm534, %v517, 0.0
      %v537 = vsel %vm534, %v518, 0.0
      %v538 = vsel %vm534, %v519, 0.0
      %v539 = vsel %vm534, %v520, 0.0
      %v540 = vsel %vm534, %v521, 0.0
      %v541 = vsel %vm534, %v522, 0.0
      %v542 = vsel %vm534, %v523, 0.0
      %v543 = vsel %vm534, %v524, 0.0
      %544 = vrot.lane.b32.xlu0 0.0, 32
      %v545 = vpop.permute.xlu0 %544
      %546 = vrot.lane.b32.xlu0 %v471, 32
      %v547 = vpop.permute.xlu0 %546
      %548 = vrot.lane.b32.xlu0 %v472, 32
      %v549 = vpop.permute.xlu0 %548
      %550 = vrot.lane.b32.xlu0 %v473, 32
      %v551 = vpop.permute.xlu0 %550
      %552 = vrot.lane.b32.xlu0 %v474, 32
      %v553 = vpop.permute.xlu0 %552
      %554 = vrot.lane.b32.xlu0 %v475, 32
      %v555 = vpop.permute.xlu0 %554
      %556 = vrot.lane.b32.xlu0 %v476, 32
      %v557 = vpop.permute.xlu0 %556
      %558 = vrot.lane.b32.xlu0 %v477, 32
      %v559 = vpop.permute.xlu0 %558
      %560 = vrot.lane.b32.xlu0 %v478, 32
      %v561 = vpop.permute.xlu0 %560
      %580 = vrot.lane.b32.xlu0 %v535, 64
      %v581 = vpop.permute.xlu0 %580
      %582 = vrot.lane.b32.xlu0 %v536, 64
      %v583 = vpop.permute.xlu0 %582
      %584 = vrot.lane.b32.xlu0 %v537, 64
      %v585 = vpop.permute.xlu0 %584
      %586 = vrot.lane.b32.xlu0 %v538, 64
      %v587 = vpop.permute.xlu0 %586
      %588 = vrot.lane.b32.xlu0 %v539, 64
      %v589 = vpop.permute.xlu0 %588
      %590 = vrot.lane.b32.xlu0 %v540, 64
      %v591 = vpop.permute.xlu0 %590
      %592 = vrot.lane.b32.xlu0 %v541, 64
      %v593 = vpop.permute.xlu0 %592
      %594 = vrot.lane.b32.xlu0 %v542, 64
      %v595 = vpop.permute.xlu0 %594
      %596 = vrot.lane.b32.xlu0 %v543, 64
      %v597 = vpop.permute.xlu0 %596
      %vm607 = vcmask 261120
      %v608 = vsel %vm607, %v507, %v545
      %v609 = vsel %vm607, %v508, %v547
      %v610 = vsel %vm607, %v509, %v549
      %v611 = vsel %vm607, %v510, %v551
      %v612 = vsel %vm607, %v511, %v553
      %v613 = vsel %vm607, %v512, %v555
      %v614 = vsel %vm607, %v513, %v557
      %v615 = vsel %vm607, %v514, %v559
      %v616 = vsel %vm607, %v515, %v561
      %vm617 = vcmask 523264
      %v618 = vsel %vm617, %v608, %v581
      %v619 = vsel %vm617, %v609, %v583
      %v620 = vsel %vm617, %v610, %v585
      %v621 = vsel %vm617, %v611, %v587
      %v622 = vsel %vm617, %v612, %v589
      %v623 = vsel %vm617, %v613, %v591
      %v624 = vsel %vm617, %v614, %v593
      %v625 = vsel %vm617, %v615, %v595
      %v626 = vsel %vm617, %v616, %v597
      %v627 = vpack.c.bf16 %v618, %v618
      %v628 = vpack.c.bf16 %v619, %v619
      %v629 = vpack.c.bf16 %v620, %v620
      %v630 = vpack.c.bf16 %v621, %v621
      %v631 = vpack.c.bf16 %v622, %v622
      %v632 = vpack.c.bf16 %v623, %v623
      %v633 = vpack.c.bf16 %v624, %v624
      %v634 = vpack.c.bf16 %v625, %v625
      %v635 = vpack.c.bf16 %v626, %v626
      %v636 = vld [vmem:[%s2] sm:$0x1]
      %v637 = vld [vmem:[%s1] sm:$0xf]
      %v638 = vld [vmem:[%s1 + $0x4] sm:$0xf]
      %v639 = vld [vmem:[%s1 + $0x8] sm:$0xf]
      %v640 = vld [vmem:[%s1 + $0xc] sm:$0xf]
      %v641 = vld [vmem:[%s1 + $0x10] sm:$0xf]
      %v642 = vld [vmem:[%s1 + $0x14] sm:$0xf]
      %v643 = vld [vmem:[%s1 + $0x18] sm:$0xf]
      %v644 = vld [vmem:[%s1 + $0x1c] sm:$0xf]
      %v645 = vld [vmem:[%s1 + $0x20] sm:$0xf]
      %v646 = vld [vmem:[%s1 + $0x24] sm:$0xf]
      %v647 = vld [vmem:[%s1 + $0x28] sm:$0xf]
      %v648 = vld [vmem:[%s1 + $0x2c] sm:$0xf]
      %v650 = vlaneseq
      %v651 = vshrl.u32 %v650, 7
      %v652 = vsub.s32 0, %v651
      %v653 = vrot.slane %v636, %v652
      %v663 = vunpack.c.l.b16 %v627
      %v664 = vunpack.c.l.b16 %v628
      %v665 = vunpack.c.l.b16 %v629
      %v666 = vunpack.c.l.b16 %v630
      %v667 = vunpack.c.l.b16 %v631
      %v668 = vunpack.c.l.b16 %v632
      %v669 = vunpack.c.l.b16 %v633
      %v670 = vunpack.c.l.b16 %v634
      %v671 = vpack.c.b16 %v664, %v663
      %v672 = vpack.c.b16 %v666, %v665
      %v673 = vpack.c.b16 %v668, %v667
      %v674 = vpack.c.b16 %v670, %v669
      %v687 = vunpack.c.l.b16 %v637
      %v688 = vunpack.c.l.b16 %v638
      %v689 = vunpack.c.l.b16 %v639
      %v690 = vunpack.c.l.b16 %v640
      %v691 = vunpack.c.l.b16 %v641
      %v692 = vunpack.c.l.b16 %v642
      %v693 = vunpack.c.l.b16 %v643
      %v694 = vunpack.c.l.b16 %v644
      %v695 = vunpack.c.l.b16 %v645
      %v696 = vunpack.c.l.b16 %v646
      %v697 = vunpack.c.l.b16 %v647
      %v698 = vunpack.c.l.b16 %v648
      %v699 = vpack.c.b16 %v688, %v687
      %v700 = vpack.c.b16 %v690, %v689
      %v701 = vpack.c.b16 %v692, %v691
      %v702 = vpack.c.b16 %v694, %v693
      %v703 = vpack.c.b16 %v696, %v695
      %v704 = vpack.c.b16 %v698, %v697
      %vm711 = vcmask 785408
      %v713 = vsel %vm711, %v671, 0
      %v716 = vsel %vm711, %v672, 0
      %v719 = vsel %vm711, %v673, 0
      %v722 = vsel %vm711, %v674, 0
      %724 = vmatprep.subr.bf16.mxu0 0
      %725 = vmatpush1.bf16.msra.mxu0 %v699
      %726 = vmatprep.subr.bf16.mxu0 0
      %727 = vmatpush1.bf16.msra.mxu0 %v700
      %728 = vmatprep.subr.bf16.mxu0 0
      %729 = vmatpush1.bf16.msra.mxu0 %v701
      %730 = vmatprep.subr.bf16.mxu0 0
      %731 = vmatpush1.bf16.msra.mxu0 %v702
      %732 = vmatprep.subr.bf16.mxu0 0
      %733 = vmatpush1.bf16.msra.mxu0 %v703
      %734 = vmatprep.subr.bf16.mxu0 0
      %735 = vmatpush1.bf16.msra.mxu0 %v704
      %736 = vmatprep.subr.bf16.mxu0 0
      %737 = vmatpush1.bf16.msra.mxu0 0
      %738 = vmatprep.subr.bf16.mxu0 0
      %739 = vmatpush1.bf16.msra.mxu0 0
      %740 = vmatprep.subr.bf16.mxu0 0
      %741 = vmatpush1.bf16.msra.mxu0 0
      %742 = vmatprep.subr.bf16.mxu0 0
      %743 = vmatpush1.bf16.msra.mxu0 0
      %744 = vmatprep.subr.bf16.mxu0 0
      %745 = vmatpush1.bf16.msra.mxu0 0
      %746 = vmatprep.subr.bf16.mxu0 0
      %747 = vmatpush1.bf16.msra.mxu0 0
      %748 = vmatprep.subr.bf16.mxu0 0
      %749 = vmatpush1.bf16.msra.mxu0 0
      %750 = vmatprep.subr.bf16.mxu0 0
      %751 = vmatpush1.bf16.msra.mxu0 0
      %752 = vmatprep.subr.bf16.mxu0 0
      %753 = vmatpush1.bf16.msra.mxu0 0
      %754 = vmatprep.subr.bf16.mxu0 0
      %755 = vmatpush1.bf16.msra.mxu0 0
      %756 = vmatprep.mubr.bf16.mxu0 0
      %757 = vmatmul.mubr.bf16.gmra.mrb[0].mxu0 %v713
      %v758 = vpop.f32.mrb[0].mxu0
      %v759 = vadd.f32 %v653, %v758
      %v760 = vpop.f32.mrb[0].mxu0
      %v761 = vpop.f32.mrb[0].mxu0
      %v762 = vadd.f32 %v653, %v761
      %v763 = vpop.f32.mrb[0].mxu0
      %764 = vmatprep.mubr.bf16.mxu0 0
      %765 = vmatmul.mubr.bf16.gmra.mrb[0].mxu0 %v716
      %v766 = vpop.f32.mrb[0].mxu0
      %v767 = vadd.f32 %v653, %v766
      %v768 = vpop.f32.mrb[0].mxu0
      %v769 = vpop.f32.mrb[0].mxu0
      %v770 = vadd.f32 %v653, %v769
      %v771 = vpop.f32.mrb[0].mxu0
      %772 = vmatprep.mubr.bf16.mxu0 0
      %773 = vmatmul.mubr.bf16.gmra.mrb[0].mxu0 %v719
      %v774 = vpop.f32.mrb[0].mxu0
      %v775 = vadd.f32 %v653, %v774
      %v776 = vpop.f32.mrb[0].mxu0
      %v777 = vpop.f32.mrb[0].mxu0
      %v778 = vadd.f32 %v653, %v777
      %v779 = vpop.f32.mrb[0].mxu0
      %780 = vmatprep.mubr.bf16.mxu0 0
      %781 = vmatmul.mubr.bf16.gmra.mrb[0].mxu0 %v722
      %v782 = vpop.f32.mrb[0].mxu0
      %v783 = vadd.f32 %v653, %v782
      %v784 = vpop.f32.mrb[0].mxu0
      %v785 = vpop.f32.mrb[0].mxu0
      %v786 = vadd.f32 %v653, %v785
      %v787 = vpop.f32.mrb[0].mxu0
      %788 = vdwg.mxu0
      %s789 = scalar_lea.vmem %s1, 48
      %v790 = vld [vmem:[%s789] sm:$0xf]
      %v791 = vld [vmem:[%s789 + $0x4] sm:$0xf]
      %v792 = vld [vmem:[%s789 + $0x8] sm:$0xf]
      %v793 = vld [vmem:[%s789 + $0xc] sm:$0xf]
      %v794 = vld [vmem:[%s789 + $0x10] sm:$0xf]
      %v795 = vld [vmem:[%s789 + $0x14] sm:$0xf]
      %v796 = vld [vmem:[%s789 + $0x18] sm:$0xf]
      %v797 = vld [vmem:[%s789 + $0x1c] sm:$0xf]
      %v798 = vld [vmem:[%s789 + $0x20] sm:$0xf]
      %v799 = vld [vmem:[%s789 + $0x24] sm:$0xf]
      %v800 = vld [vmem:[%s789 + $0x28] sm:$0xf]
      %v801 = vld [vmem:[%s789 + $0x2c] sm:$0xf]
      %v803 = vunpack.c.l.b16 %v635
      %v804 = vpack.c.b16 %v665, %v664
      %v805 = vpack.c.b16 %v667, %v666
      %v806 = vpack.c.b16 %v669, %v668
      %v807 = vpack.c.b16 %v803, %v670
      %v820 = vunpack.c.l.b16 %v790
      %v821 = vunpack.c.l.b16 %v791
      %v822 = vunpack.c.l.b16 %v792
      %v823 = vunpack.c.l.b16 %v793
      %v824 = vunpack.c.l.b16 %v794
      %v825 = vunpack.c.l.b16 %v795
      %v826 = vunpack.c.l.b16 %v796
      %v827 = vunpack.c.l.b16 %v797
      %v828 = vunpack.c.l.b16 %v798
      %v829 = vunpack.c.l.b16 %v799
      %v830 = vunpack.c.l.b16 %v800
      %v831 = vunpack.c.l.b16 %v801
      %v832 = vpack.c.b16 %v821, %v820
      %v833 = vpack.c.b16 %v823, %v822
      %v834 = vpack.c.b16 %v825, %v824
      %v835 = vpack.c.b16 %v827, %v826
      %v836 = vpack.c.b16 %v829, %v828
      %v837 = vpack.c.b16 %v831, %v830
      %v845 = vsel %vm711, %v804, 0
      %v848 = vsel %vm711, %v805, 0
      %v851 = vsel %vm711, %v806, 0
      %v854 = vsel %vm711, %v807, 0
      %856 = vmatprep.subr.bf16.mxu0 0
      %857 = vmatpush1.bf16.msra.mxu0 %v832
      %858 = vmatprep.subr.bf16.mxu0 0
      %859 = vmatpush1.bf16.msra.mxu0 %v833
      %860 = vmatprep.subr.bf16.mxu0 0
      %861 = vmatpush1.bf16.msra.mxu0 %v834
      %862 = vmatprep.subr.bf16.mxu0 0
      %863 = vmatpush1.bf16.msra.mxu0 %v835
      %864 = vmatprep.subr.bf16.mxu0 0
      %865 = vmatpush1.bf16.msra.mxu0 %v836
      %866 = vmatprep.subr.bf16.mxu0 0
      %867 = vmatpush1.bf16.msra.mxu0 %v837
      %868 = vmatprep.subr.bf16.mxu0 0
      %869 = vmatpush1.bf16.msra.mxu0 0
      %870 = vmatprep.subr.bf16.mxu0 0
      %871 = vmatpush1.bf16.msra.mxu0 0
      %872 = vmatprep.subr.bf16.mxu0 0
      %873 = vmatpush1.bf16.msra.mxu0 0
      %874 = vmatprep.subr.bf16.mxu0 0
      %875 = vmatpush1.bf16.msra.mxu0 0
      %876 = vmatprep.subr.bf16.mxu0 0
      %877 = vmatpush1.bf16.msra.mxu0 0
      %878 = vmatprep.subr.bf16.mxu0 0
      %879 = vmatpush1.bf16.msra.mxu0 0
      %880 = vmatprep.subr.bf16.mxu0 0
      %881 = vmatpush1.bf16.msra.mxu0 0
      %882 = vmatprep.subr.bf16.mxu0 0
      %883 = vmatpush1.bf16.msra.mxu0 0
      %884 = vmatprep.subr.bf16.mxu0 0
      %885 = vmatpush1.bf16.msra.mxu0 0
      %886 = vmatprep.subr.bf16.mxu0 0
      %887 = vmatpush1.bf16.msra.mxu0 0
      %888 = vmatprep.mubr.bf16.mxu0 0
      %889 = vmatmul.mubr.bf16.gmra.mrb[0].mxu0 %v845
      %v890 = vpop.f32.mrb[0].mxu0
      %v891 = vadd.f32 0.0, %v890
      %v892 = vpop.f32.mrb[0].mxu0
      %v893 = vpop.f32.mrb[0].mxu0
      %v894 = vadd.f32 0.0, %v893
      %v895 = vpop.f32.mrb[0].mxu0
      %896 = vmatprep.mubr.bf16.mxu0 0
      %897 = vmatmul.mubr.bf16.gmra.mrb[0].mxu0 %v848
      %v898 = vpop.f32.mrb[0].mxu0
      %v899 = vadd.f32 0.0, %v898
      %v900 = vpop.f32.mrb[0].mxu0
      %v901 = vpop.f32.mrb[0].mxu0
      %v902 = vadd.f32 0.0, %v901
      %v903 = vpop.f32.mrb[0].mxu0
      %904 = vmatprep.mubr.bf16.mxu0 0
      %905 = vmatmul.mubr.bf16.gmra.mrb[0].mxu0 %v851
      %v906 = vpop.f32.mrb[0].mxu0
      %v907 = vadd.f32 0.0, %v906
      %v908 = vpop.f32.mrb[0].mxu0
      %v909 = vpop.f32.mrb[0].mxu0
      %v910 = vadd.f32 0.0, %v909
      %v911 = vpop.f32.mrb[0].mxu0
      %912 = vmatprep.mubr.bf16.mxu0 0
      %913 = vmatmul.mubr.bf16.gmra.mrb[0].mxu0 %v854
      %v914 = vpop.f32.mrb[0].mxu0
      %v915 = vadd.f32 0.0, %v914
      %v916 = vpop.f32.mrb[0].mxu0
      %v917 = vpop.f32.mrb[0].mxu0
      %v918 = vadd.f32 0.0, %v917
      %v919 = vpop.f32.mrb[0].mxu0
      %920 = vdwg.mxu0
      %v921 = vadd.f32 %v759, %v891
      %v922 = vadd.f32 %v762, %v894
      %v923 = vadd.f32 %v767, %v899
      %v924 = vadd.f32 %v770, %v902
      %v925 = vadd.f32 %v775, %v907
      %v926 = vadd.f32 %v778, %v910
      %v927 = vadd.f32 %v783, %v915
      %v928 = vadd.f32 %v786, %v918
      %s929 = scalar_lea.vmem %s1, 96
      %v930 = vld [vmem:[%s929] sm:$0xf]
      %v931 = vld [vmem:[%s929 + $0x4] sm:$0xf]
      %v932 = vld [vmem:[%s929 + $0x8] sm:$0xf]
      %v933 = vld [vmem:[%s929 + $0xc] sm:$0xf]
      %v934 = vld [vmem:[%s929 + $0x10] sm:$0xf]
      %v935 = vld [vmem:[%s929 + $0x14] sm:$0xf]
      %v936 = vld [vmem:[%s929 + $0x18] sm:$0xf]
      %v937 = vld [vmem:[%s929 + $0x1c] sm:$0xf]
      %v938 = vld [vmem:[%s929 + $0x20] sm:$0xf]
      %v939 = vld [vmem:[%s929 + $0x24] sm:$0xf]
      %v940 = vld [vmem:[%s929 + $0x28] sm:$0xf]
      %v941 = vld [vmem:[%s929 + $0x2c] sm:$0xf]
      %v942 = vpack.c.b16 %v663, %v803
      %v955 = vunpack.c.l.b16 %v930
      %v956 = vunpack.c.l.b16 %v931
      %v957 = vunpack.c.l.b16 %v932
      %v958 = vunpack.c.l.b16 %v933
      %v959 = vunpack.c.l.b16 %v934
      %v960 = vunpack.c.l.b16 %v935
      %v961 = vunpack.c.l.b16 %v936
      %v962 = vunpack.c.l.b16 %v937
      %v963 = vunpack.c.l.b16 %v938
      %v964 = vunpack.c.l.b16 %v939
      %v965 = vunpack.c.l.b16 %v940
      %v966 = vunpack.c.l.b16 %v941
      %v967 = vpack.c.b16 %v956, %v955
      %v968 = vpack.c.b16 %v958, %v957
      %v969 = vpack.c.b16 %v960, %v959
      %v970 = vpack.c.b16 %v962, %v961
      %v971 = vpack.c.b16 %v964, %v963
      %v972 = vpack.c.b16 %v966, %v965
      %v980 = vsel %vm711, %v942, 0
      %982 = vmatprep.subr.bf16.mxu0 0
      %983 = vmatpush1.bf16.msra.mxu0 %v967
      %984 = vmatprep.subr.bf16.mxu0 0
      %985 = vmatpush1.bf16.msra.mxu0 %v968
      %986 = vmatprep.subr.bf16.mxu0 0
      %987 = vmatpush1.bf16.msra.mxu0 %v969
      %988 = vmatprep.subr.bf16.mxu0 0
      %989 = vmatpush1.bf16.msra.mxu0 %v970
      %990 = vmatprep.subr.bf16.mxu0 0
      %991 = vmatpush1.bf16.msra.mxu0 %v971
      %992 = vmatprep.subr.bf16.mxu0 0
      %993 = vmatpush1.bf16.msra.mxu0 %v972
      %994 = vmatprep.subr.bf16.mxu0 0
      %995 = vmatpush1.bf16.msra.mxu0 0
      %996 = vmatprep.subr.bf16.mxu0 0
      %997 = vmatpush1.bf16.msra.mxu0 0
      %998 = vmatprep.subr.bf16.mxu0 0
      %999 = vmatpush1.bf16.msra.mxu0 0
      %1000 = vmatprep.subr.bf16.mxu0 0
      %1001 = vmatpush1.bf16.msra.mxu0 0
      %1002 = vmatprep.subr.bf16.mxu0 0
      %1003 = vmatpush1.bf16.msra.mxu0 0
      %1004 = vmatprep.subr.bf16.mxu0 0
      %1005 = vmatpush1.bf16.msra.mxu0 0
      %1006 = vmatprep.subr.bf16.mxu0 0
      %1007 = vmatpush1.bf16.msra.mxu0 0
      %1008 = vmatprep.subr.bf16.mxu0 0
      %1009 = vmatpush1.bf16.msra.mxu0 0
      %1010 = vmatprep.subr.bf16.mxu0 0
      %1011 = vmatpush1.bf16.msra.mxu0 0
      %1012 = vmatprep.subr.bf16.mxu0 0
      %1013 = vmatpush1.bf16.msra.mxu0 0
      %1014 = vmatprep.mubr.bf16.mxu0 0
      %1015 = vmatmul.mubr.bf16.gmra.mrb[0].mxu0 %v716
      %v1016 = vpop.f32.mrb[0].mxu0
      %v1017 = vadd.f32 0.0, %v1016
      %v1018 = vpop.f32.mrb[0].mxu0
      %v1019 = vpop.f32.mrb[0].mxu0
      %v1020 = vadd.f32 0.0, %v1019
      %v1021 = vpop.f32.mrb[0].mxu0
      %1022 = vmatprep.mubr.bf16.mxu0 0
      %1023 = vmatmul.mubr.bf16.gmra.mrb[0].mxu0 %v719
      %v1024 = vpop.f32.mrb[0].mxu0
      %v1025 = vadd.f32 0.0, %v1024
      %v1026 = vpop.f32.mrb[0].mxu0
      %v1027 = vpop.f32.mrb[0].mxu0
      %v1028 = vadd.f32 0.0, %v1027
      %v1029 = vpop.f32.mrb[0].mxu0
      %1030 = vmatprep.mubr.bf16.mxu0 0
      %1031 = vmatmul.mubr.bf16.gmra.mrb[0].mxu0 %v722
      %v1032 = vpop.f32.mrb[0].mxu0
      %v1033 = vadd.f32 0.0, %v1032
      %v1034 = vpop.f32.mrb[0].mxu0
      %v1035 = vpop.f32.mrb[0].mxu0
      %v1036 = vadd.f32 0.0, %v1035
      %v1037 = vpop.f32.mrb[0].mxu0
      %1038 = vmatprep.mubr.bf16.mxu0 0
      %1039 = vmatmul.mubr.bf16.gmra.mrb[0].mxu0 %v980
      %v1040 = vpop.f32.mrb[0].mxu0
      %v1041 = vadd.f32 0.0, %v1040
      %v1042 = vpop.f32.mrb[0].mxu0
      %v1043 = vpop.f32.mrb[0].mxu0
      %v1044 = vadd.f32 0.0, %v1043
      %v1045 = vpop.f32.mrb[0].mxu0
      %1046 = vdwg.mxu0
      %v1047 = vadd.f32 %v921, %v1017
      %v1048 = vadd.f32 %v922, %v1020
      %v1049 = vadd.f32 %v923, %v1025
      %v1050 = vadd.f32 %v924, %v1028
      %v1051 = vadd.f32 %v925, %v1033
      %v1052 = vadd.f32 %v926, %v1036
      %v1053 = vadd.f32 %v927, %v1041
      %v1054 = vadd.f32 %v928, %v1044
      %v1055 = vpack.c.bf16 %v1048, %v1047
      %v1056 = vpack.c.bf16 %v1050, %v1049
      %v1057 = vpack.c.bf16 %v1052, %v1051
      %v1058 = vpack.c.bf16 %v1054, %v1053
      %v1063 = vunpack.c.l.b16 %v1055
      %v1064 = vunpack.c.h.b16 %v1055
      %v1065 = vunpack.c.l.b16 %v1056
      %v1066 = vunpack.c.h.b16 %v1056
      %v1067 = vunpack.c.l.b16 %v1057
      %v1068 = vunpack.c.h.b16 %v1057
      %v1069 = vunpack.c.l.b16 %v1058
      %v1070 = vunpack.c.h.b16 %v1058
      %v1071 = vpack.c.b16 %v1063, %v1063
      %v1072 = vpack.c.b16 %v1064, %v1064
      %v1073 = vpack.c.b16 %v1065, %v1065
      %v1074 = vpack.c.b16 %v1066, %v1066
      %v1075 = vpack.c.b16 %v1067, %v1067
      %v1076 = vpack.c.b16 %v1068, %v1068
      %v1077 = vpack.c.b16 %v1069, %v1069
      %v1078 = vpack.c.b16 %v1070, %v1070
      %vm1087 = vcmask 60416
      %1088 = vst.msk [vmem:[%s289] sm:$0xf] %vm1087, %v1071
      %1089 = vst.msk [vmem:[%s289 + $0x4] sm:$0xf] %vm1087, %v1072
      %1090 = vst.msk [vmem:[%s289 + $0x8] sm:$0xf] %vm1087, %v1073
      %1091 = vst.msk [vmem:[%s289 + $0xc] sm:$0xf] %vm1087, %v1074
      %1092 = vst.msk [vmem:[%s289 + $0x10] sm:$0xf] %vm1087, %v1075
      %1093 = vst.msk [vmem:[%s289 + $0x14] sm:$0xf] %vm1087, %v1076
      %1094 = vst.msk [vmem:[%s289 + $0x18] sm:$0xf] %vm1087, %v1077
      %1095 = vst.msk [vmem:[%s289 + $0x1c] sm:$0xf] %vm1087, %v1078
      %vm1096 = vcmask 64512
      %v1097 = vsel %vm1096, %v1047, 0.0
      %v1098 = vsel %vm1096, %v1048, 0.0
      %v1099 = vadd.f32 %v1097, %v1098
      %v1100 = vsel %vm1096, %v1049, 0.0
      %v1101 = vadd.f32 %v1099, %v1100
      %v1102 = vsel %vm1096, %v1050, 0.0
      %v1103 = vadd.f32 %v1101, %v1102
      %v1104 = vsel %vm1096, %v1051, 0.0
      %v1105 = vadd.f32 %v1103, %v1104
      %v1106 = vsel %vm1096, %v1052, 0.0
      %v1107 = vadd.f32 %v1105, %v1106
      %v1108 = vsel %vm1096, %v1053, 0.0
      %v1109 = vadd.f32 %v1107, %v1108
      %v1110 = vsel %vm1096, %v1054, 0.0
      %v1111 = vadd.f32 %v1109, %v1110
      %v1112 = vrot.slane %v1111, 4
      %v1113 = vadd.f32 %v1111, %v1112
      %v1114 = vrot.slane %v1113, 2
      %v1115 = vadd.f32 %v1113, %v1114
      %v1116 = vrot.slane %v1115, 1
      %v1117 = vadd.f32 %v1115, %v1116
      %vm1118 = vcmask 57344
      %1119 = vst.msk [vmem:[%s292] sm:$0x1] %vm1118, %v1117
      %v1120 = vmul.f32 %v1047, %v1047
      %v1121 = vmul.f32 %v1048, %v1048
      %v1122 = vmul.f32 %v1049, %v1049
      %v1123 = vmul.f32 %v1050, %v1050
      %v1124 = vmul.f32 %v1051, %v1051
      %v1125 = vmul.f32 %v1052, %v1052
      %v1126 = vmul.f32 %v1053, %v1053
      %v1127 = vmul.f32 %v1054, %v1054
      %v1128 = vsel %vm1096, %v1120, 0.0
      %v1129 = vsel %vm1096, %v1121, 0.0
      %v1130 = vadd.f32 %v1128, %v1129
      %v1131 = vsel %vm1096, %v1122, 0.0
      %v1132 = vadd.f32 %v1130, %v1131
      %v1133 = vsel %vm1096, %v1123, 0.0
      %v1134 = vadd.f32 %v1132, %v1133
      %v1135 = vsel %vm1096, %v1124, 0.0
      %v1136 = vadd.f32 %v1134, %v1135
      %v1137 = vsel %vm1096, %v1125, 0.0
      %v1138 = vadd.f32 %v1136, %v1137
      %v1139 = vsel %vm1096, %v1126, 0.0
      %v1140 = vadd.f32 %v1138, %v1139
      %v1141 = vsel %vm1096, %v1127, 0.0
      %v1142 = vadd.f32 %v1140, %v1141
      %v1143 = vrot.slane %v1142, 4
      %v1144 = vadd.f32 %v1142, %v1143
      %v1145 = vrot.slane %v1144, 2
      %v1146 = vadd.f32 %v1144, %v1145
      %v1147 = vrot.slane %v1146, 1
      %v1148 = vadd.f32 %v1146, %v1147
      %1149 = vst.msk [vmem:[%s295] sm:$0x1] %vm1118, %v1148
      %p1150 = scmp.lt.s32.totalorder %s19, 1
      %s1151 = scalar_select %p1150, %s19, 1
      %s1152 = smul.addr %s1151, 8
      %s1153 = smul.addr %s1152, 4
      %s1154 = scalar_lea.vmem %s5, %s1153
      %p1155 = scmp.lt.s32.totalorder %s19, 1
      %s1156 = scalar_select %p1155, %s19, 1
      %s1157 = scalar_lea.vmem %s6, %s1156
      %p1158 = scmp.lt.s32.totalorder %s19, 1
      %s1159 = scalar_select %p1158, %s19, 1
      %s1160 = scalar_lea.vmem %s7, %s1159
      // Predicated region
      $region41: #{_lambda_.8} parent=39 // pred_check
        %p1161 = pneg %p147
      $region42: #{_lambda_.8} parent=39 // pred_check_branch
        %1163 = sbr.rel (%p1161) target = $region44
      $region43: #{_lambda_.8} parent=39 // pred_region
        _
      $region44: #{_lambda_.8} parent=39 // pred_fallthru
        _
      // Predicated region
      $region45: #{_lambda_.8} parent=39 // pred_check
        %p1164 = pneg %p173
      $region46: #{_lambda_.8} parent=39 // pred_check_branch
        %1166 = sbr.rel (%p1164) target = $region48
      $region47: #{_lambda_.8} parent=39 // pred_region
        _
      $region48: #{_lambda_.8} parent=39 // pred_fallthru
        _
      // Predicated region
      $region49: #{_lambda_.8} parent=39 // pred_check
        %p1167 = pneg %p199
      $region50: #{_lambda_.8} parent=39 // pred_check_branch
        %1169 = sbr.rel (%p1167) target = $region52
      $region51: #{_lambda_.8} parent=39 // pred_region
        _
      $region52: #{_lambda_.8} parent=39 // pred_fallthru
        _
    $region40: #{_lambda_.8} parent=5 // pred_fallthru
      _
    %p1170 = scmp.le.s32.totalorder 2, %s14
    // Predicated region
    $region53: #{_lambda_.8} parent=5 // pred_check
      %p1171 = pneg %p1170
    $region54: #{_lambda_.8} parent=5 // pred_check_branch
      %1173 = sbr.rel (%p1171) target = $region56
    $region55: #{_lambda_.8} parent=5 // pred_region
      %s1174 = ssub.s32 %s14, 2
      // Predicated region
      $region57: #{_lambda_.8} parent=55 // pred_check
        %p1175 = pneg %p153
      $region58: #{_lambda_.8} parent=55 // pred_check_branch
        %1177 = sbr.rel (%p1175) target = $region60
      $region59: #{_lambda_.8} parent=55 // pred_region
        %p1178 = scmp.lt.s32.totalorder %s20, 1
        %s1179 = scalar_select %p1178, %s20, 1
        %s1180 = smul.addr %s1179, 8
        %s1181 = smul.addr %s1180, 4
        %s1182 = scalar_lea.vmem %s5, %s1181
      $region60: #{_lambda_.8} parent=55 // pred_fallthru
        _
      // Predicated region
      $region61: #{_lambda_.8} parent=55 // pred_check
        %p1183 = pneg %p179
      $region62: #{_lambda_.8} parent=55 // pred_check_branch
        %1185 = sbr.rel (%p1183) target = $region64
      $region63: #{_lambda_.8} parent=55 // pred_region
        %p1186 = scmp.lt.s32.totalorder %s20, 1
        %s1187 = scalar_select %p1186, %s20, 1
        %s1188 = scalar_lea.vmem %s6, %s1187
      $region64: #{_lambda_.8} parent=55 // pred_fallthru
        _
      // Predicated region
      $region65: #{_lambda_.8} parent=55 // pred_check
        %p1189 = pneg %p205
      $region66: #{_lambda_.8} parent=55 // pred_check_branch
        %1191 = sbr.rel (%p1189) target = $region68
      $region67: #{_lambda_.8} parent=55 // pred_region
        %p1192 = scmp.lt.s32.totalorder %s20, 1
        %s1193 = scalar_select %p1192, %s20, 1
        %s1194 = scalar_lea.vmem %s7, %s1193
      $region68: #{_lambda_.8} parent=55 // pred_fallthru
        _
    $region56: #{_lambda_.8} parent=5 // pred_fallthru
      _
  $region6: #{_lambda_.8} parent=0 // loop_footer
    %s18 = sadd.s32 1, %s14
  $region7: #{_lambda_.8} parent=0 // loop_footer_branch
    %13 = sbr.rel target = $region3
  $region8: #{_lambda_.8} parent=0 // loop_exit
    _

// kernel: _lambda_.5
$region0: #{_lambda_.5}
  #allocation0 [shape = 'u32[]', space=smem, size = 0x4, offset = 0x4, fixed_abs, tag = 'smem constant byte address 0x4 - core index']
  #allocation1 [shape = 'u32[144,128]{1,0:T(1,128)}', space=vmem, size = 0x12000, scoped, tag = 'internal scratch']
  %s0 = inlined_call_operand.vmem [shape: f32[2,16,16,4], index: 0, kind: input, shape index: {}]
  %s1 = inlined_call_operand.vmem [shape: bf16[3,12,32], index: 1, kind: input, shape index: {}]
  %s2 = inlined_call_operand.vmem [shape: f32[1,32], index: 2, kind: input, shape index: {}]
  %s3 = inlined_call_operand.vmem [shape: f32[1,1,4], index: 3, kind: input, shape index: {}]
  %s4 = inlined_call_operand.vmem [shape: f32[1,1,4], index: 4, kind: input, shape index: {}]
  %s5 = inlined_call_operand.vmem [shape: bf16[2,256,32], index: 5, kind: output, shape index: {0}]
  %s6 = inlined_call_operand.vmem [shape: f32[2,1,32], index: 6, kind: output, shape index: {1}]
  %s7 = inlined_call_operand.vmem [shape: f32[2,1,32], index: 7, kind: output, shape index: {2}]
  %8 = xla_tuple %s5, %s6, %s7
  %s9 = sld [smem:[#allocation0]]
  $region69: #{_lambda_.5} parent=0
    _
  %s11 = ssub.s32 1, %s9
  %s12 = scalar_select 0, %s11, %s9
  loop: start=0, step=1, limit=4
  $region2: #{_lambda_.5} parent=0 // loop_pre_header
    _
  $region3: #{_lambda_.5} parent=0 // loop_header
    %s14 = sphi 0, %s18
    %p15 = scmp.ge.s32.totalorder %s14, 4
    %s24 = sphi 0, %s26
    %s27 = sphi 0, %s24
    %s28 = sphi 0, %s27
    %s44 = sphi 0, %s28
    %s48 = sphi 0, %s48
    %s50 = sphi 0, %s48
    %s51 = sphi 0, %s50
    %s65 = sphi 0, %s51
    %s69 = sphi 0, %s69
    %s71 = sphi 0, %s69
    %s72 = sphi 0, %s71
    %s86 = sphi 0, %s72
    %s90 = sphi 0, %s90
    %s92 = sphi 0, %s90
    %s93 = sphi 0, %s92
    %s107 = sphi 0, %s93
    %s111 = sphi 0, %s111
    %s113 = sphi 0, %s111
    %s114 = sphi 0, %s113
    %s128 = sphi 0, %s114
    %s134 = sphi 0, %s136
    %s137 = sphi 0, %s134
    %s138 = sphi 0, %s137
    %s154 = sphi 0, %s138
    %s160 = sphi 0, %s162
    %s163 = sphi 0, %s160
    %s164 = sphi 0, %s163
    %s180 = sphi 0, %s164
    %s186 = sphi 0, %s188
    %s189 = sphi 0, %s186
    %s190 = sphi 0, %s189
    %s206 = sphi 0, %s190
  $region4: #{_lambda_.5} parent=0 // loop_header_branch
    %17 = sbr.rel (%p15) target = $region8
  $region5: #{_lambda_.5} parent=0 // loop_body
    %s19 = ssub.s32 %s14, 1
    %s20 = ssub.s32 %s14, 2
    %s21 = sadd.s32 %s14, 1
    %s22 = ssub.s32 %s14, %s21
    %p23 = scmp.eq.s32.totalorder %s22, 0
    %s25 = sadd.s32 %s24, 1
    %s26 = scalar_select %p23, %s24, %s25
    %p29 = pneg %p23
    %p30 = scmp.eq.s32.totalorder %s14, 1
    %p31 = por %p29, %p30
    %p32 = scmp.ne.s32.totalorder %s24, %s27
    %p33 = scmp.eq.s32.totalorder %s14, 0
    %p34 = por %p32, %p33
    %p35 = scmp.ne.s32.totalorder %s24, %s27
    %p36 = scmp.eq.s32.totalorder %s19, 1
    %p37 = por %p35, %p36
    %p38 = scmp.ne.s32.totalorder %s27, %s28
    %p39 = scmp.eq.s32.totalorder %s19, 0
    %p40 = por %p38, %p39
    %p41 = scmp.ne.s32.totalorder %s27, %s28
    %p42 = scmp.eq.s32.totalorder %s20, 1
    %p43 = por %p41, %p42
    %p45 = scmp.ne.s32.totalorder %s28, %s44
    %p46 = scmp.eq.s32.totalorder %s20, 0
    %p47 = por %p45, %p46
    %s49 = sadd.s32 %s48, 1
    %p52 = scmp.eq.s32.totalorder %s14, 1
    %p53 = scmp.ne.s32.totalorder %s48, %s50
    %p54 = scmp.eq.s32.totalorder %s14, 0
    %p55 = por %p53, %p54
    %p56 = scmp.ne.s32.totalorder %s48, %s50
    %p57 = scmp.eq.s32.totalorder %s19, 1
    %p58 = por %p56, %p57
    %p59 = scmp.ne.s32.totalorder %s50, %s51
    %p60 = scmp.eq.s32.totalorder %s19, 0
    %p61 = por %p59, %p60
    %p62 = scmp.ne.s32.totalorder %s50, %s51
    %p63 = scmp.eq.s32.totalorder %s20, 1
    %p64 = por %p62, %p63
    %p66 = scmp.ne.s32.totalorder %s51, %s65
    %p67 = scmp.eq.s32.totalorder %s20, 0
    %p68 = por %p66, %p67
    %s70 = sadd.s32 %s69, 1
    %p73 = scmp.eq.s32.totalorder %s14, 1
    %p74 = scmp.ne.s32.totalorder %s69, %s71
    %p75 = scmp.eq.s32.totalorder %s14, 0
    %p76 = por %p74, %p75
    %p77 = scmp.ne.s32.totalorder %s69, %s71
    %p78 = scmp.eq.s32.totalorder %s19, 1
    %p79 = por %p77, %p78
    %p80 = scmp.ne.s32.totalorder %s71, %s72
    %p81 = scmp.eq.s32.totalorder %s19, 0
    %p82 = por %p80, %p81
    %p83 = scmp.ne.s32.totalorder %s71, %s72
    %p84 = scmp.eq.s32.totalorder %s20, 1
    %p85 = por %p83, %p84
    %p87 = scmp.ne.s32.totalorder %s72, %s86
    %p88 = scmp.eq.s32.totalorder %s20, 0
    %p89 = por %p87, %p88
    %s91 = sadd.s32 %s90, 1
    %p94 = scmp.eq.s32.totalorder %s14, 1
    %p95 = scmp.ne.s32.totalorder %s90, %s92
    %p96 = scmp.eq.s32.totalorder %s14, 0
    %p97 = por %p95, %p96
    %p98 = scmp.ne.s32.totalorder %s90, %s92
    %p99 = scmp.eq.s32.totalorder %s19, 1
    %p100 = por %p98, %p99
    %p101 = scmp.ne.s32.totalorder %s92, %s93
    %p102 = scmp.eq.s32.totalorder %s19, 0
    %p103 = por %p101, %p102
    %p104 = scmp.ne.s32.totalorder %s92, %s93
    %p105 = scmp.eq.s32.totalorder %s20, 1
    %p106 = por %p104, %p105
    %p108 = scmp.ne.s32.totalorder %s93, %s107
    %p109 = scmp.eq.s32.totalorder %s20, 0
    %p110 = por %p108, %p109
    %s112 = sadd.s32 %s111, 1
    %p115 = scmp.eq.s32.totalorder %s14, 1
    %p116 = scmp.ne.s32.totalorder %s111, %s113
    %p117 = scmp.eq.s32.totalorder %s14, 0
    %p118 = por %p116, %p117
    %p119 = scmp.ne.s32.totalorder %s111, %s113
    %p120 = scmp.eq.s32.totalorder %s19, 1
    %p121 = por %p119, %p120
    %p122 = scmp.ne.s32.totalorder %s113, %s114
    %p123 = scmp.eq.s32.totalorder %s19, 0
    %p124 = por %p122, %p123
    %p125 = scmp.ne.s32.totalorder %s113, %s114
    %p126 = scmp.eq.s32.totalorder %s20, 1
    %p127 = por %p125, %p126
    %p129 = scmp.ne.s32.totalorder %s114, %s128
    %p130 = scmp.eq.s32.totalorder %s20, 0
    %p131 = por %p129, %p130
    %s132 = ssub.s32 %s14, %s21
    %p133 = scmp.eq.s32.totalorder %s132, 0
    %s135 = sadd.s32 %s134, 1
    %s136 = scalar_select %p133, %s134, %s135
    %p139 = pneg %p133
    %p140 = scmp.eq.s32.totalorder %s14, 1
    %p141 = por %p139, %p140
    %p142 = scmp.ne.s32.totalorder %s134, %s137
    %p143 = scmp.eq.s32.totalorder %s14, 0
    %p144 = por %p142, %p143
    %p145 = scmp.ne.s32.totalorder %s134, %s137
    %p146 = scmp.eq.s32.totalorder %s19, 1
    %p147 = por %p145, %p146
    %p148 = scmp.ne.s32.totalorder %s137, %s138
    %p149 = scmp.eq.s32.totalorder %s19, 0
    %p150 = por %p148, %p149
    %p151 = scmp.ne.s32.totalorder %s137, %s138
    %p152 = scmp.eq.s32.totalorder %s20, 1
    %p153 = por %p151, %p152
    %p155 = scmp.ne.s32.totalorder %s138, %s154
    %p156 = scmp.eq.s32.totalorder %s20, 0
    %p157 = por %p155, %p156
    %s158 = ssub.s32 %s14, %s21
    %p159 = scmp.eq.s32.totalorder %s158, 0
    %s161 = sadd.s32 %s160, 1
    %s162 = scalar_select %p159, %s160, %s161
    %p165 = pneg %p159
    %p166 = scmp.eq.s32.totalorder %s14, 1
    %p167 = por %p165, %p166
    %p168 = scmp.ne.s32.totalorder %s160, %s163
    %p169 = scmp.eq.s32.totalorder %s14, 0
    %p170 = por %p168, %p169
    %p171 = scmp.ne.s32.totalorder %s160, %s163
    %p172 = scmp.eq.s32.totalorder %s19, 1
    %p173 = por %p171, %p172
    %p174 = scmp.ne.s32.totalorder %s163, %s164
    %p175 = scmp.eq.s32.totalorder %s19, 0
    %p176 = por %p174, %p175
    %p177 = scmp.ne.s32.totalorder %s163, %s164
    %p178 = scmp.eq.s32.totalorder %s20, 1
    %p179 = por %p177, %p178
    %p181 = scmp.ne.s32.totalorder %s164, %s180
    %p182 = scmp.eq.s32.totalorder %s20, 0
    %p183 = por %p181, %p182
    %s184 = ssub.s32 %s14, %s21
    %p185 = scmp.eq.s32.totalorder %s184, 0
    %s187 = sadd.s32 %s186, 1
    %s188 = scalar_select %p185, %s186, %s187
    %p191 = pneg %p185
    %p192 = scmp.eq.s32.totalorder %s14, 1
    %p193 = por %p191, %p192
    %p194 = scmp.ne.s32.totalorder %s186, %s189
    %p195 = scmp.eq.s32.totalorder %s14, 0
    %p196 = por %p194, %p195
    %p197 = scmp.ne.s32.totalorder %s186, %s189
    %p198 = scmp.eq.s32.totalorder %s19, 1
    %p199 = por %p197, %p198
    %p200 = scmp.ne.s32.totalorder %s189, %s190
    %p201 = scmp.eq.s32.totalorder %s19, 0
    %p202 = por %p200, %p201
    %p203 = scmp.ne.s32.totalorder %s189, %s190
    %p204 = scmp.eq.s32.totalorder %s20, 1
    %p205 = por %p203, %p204
    %p207 = scmp.ne.s32.totalorder %s190, %s206
    %p208 = scmp.eq.s32.totalorder %s20, 0
    %p209 = por %p207, %p208
    %p210 = scmp.le.s32.totalorder 1, %s14
    %p211 = scmp.lt.s32.totalorder %s14, 3
    %p212 = pnand %p210, %p211
    %p213 = pneg %p212
    // Predicated region
    $region9: #{_lambda_.5} parent=5 // pred_check
      _
    $region10: #{_lambda_.5} parent=5 // pred_check_branch
      %215 = sbr.rel (%p212) target = $region12
    $region11: #{_lambda_.5} parent=5 // pred_region
      %s216 = ssub.s32 %s14, 1
      // Predicated region
      $region13: #{_lambda_.5} parent=11 // pred_check
        %p217 = pneg %p61
      $region14: #{_lambda_.5} parent=11 // pred_check_branch
        %219 = sbr.rel (%p217) target = $region16
      $region15: #{_lambda_.5} parent=11 // pred_region
        _
      $region16: #{_lambda_.5} parent=11 // pred_fallthru
        _
      // Predicated region
      $region17: #{_lambda_.5} parent=11 // pred_check
        %p220 = pneg %p82
      $region18: #{_lambda_.5} parent=11 // pred_check_branch
        %222 = sbr.rel (%p220) target = $region20
      $region19: #{_lambda_.5} parent=11 // pred_region
        _
      $region20: #{_lambda_.5} parent=11 // pred_fallthru
        _
      // Predicated region
      $region21: #{_lambda_.5} parent=11 // pred_check
        %p223 = pneg %p103
      $region22: #{_lambda_.5} parent=11 // pred_check_branch
        %225 = sbr.rel (%p223) target = $region24
      $region23: #{_lambda_.5} parent=11 // pred_region
        _
      $region24: #{_lambda_.5} parent=11 // pred_fallthru
        _
      // Predicated region
      $region25: #{_lambda_.5} parent=11 // pred_check
        %p226 = pneg %p124
      $region26: #{_lambda_.5} parent=11 // pred_check_branch
        %228 = sbr.rel (%p226) target = $region28
      $region27: #{_lambda_.5} parent=11 // pred_region
        _
      $region28: #{_lambda_.5} parent=11 // pred_fallthru
        _
    $region12: #{_lambda_.5} parent=5 // pred_fallthru
      _
    %p229 = scmp.lt.s32.totalorder %s14, 2
    // Predicated region
    $region29: #{_lambda_.5} parent=5 // pred_check
      %p230 = pneg %p229
    $region30: #{_lambda_.5} parent=5 // pred_check_branch
      %232 = sbr.rel (%p230) target = $region32
    $region31: #{_lambda_.5} parent=5 // pred_region
      // Predicated region
      $region33: #{_lambda_.5} parent=31 // pred_check
        %p233 = pneg %p34
      $region34: #{_lambda_.5} parent=31 // pred_check_branch
        %235 = sbr.rel (%p233) target = $region36
      $region35: #{_lambda_.5} parent=31 // pred_region
        %p236 = scmp.lt.s32.totalorder %s14, 1
        %s237 = scalar_select %p236, %s14, 1
        %s238 = smul.addr %s237, 32
        %s239 = smul.addr %s238, 8
        %s240 = scalar_lea.vmem %s0, %s239
      $region36: #{_lambda_.5} parent=31 // pred_fallthru
        _
    $region32: #{_lambda_.5} parent=5 // pred_fallthru
      _
    %p241 = scmp.le.s32.totalorder 1, %s14
    %p242 = scmp.lt.s32.totalorder %s14, 3
    %p243 = pnand %p241, %p242
    %p244 = pneg %p243
    // Predicated region
    $region37: #{_lambda_.5} parent=5 // pred_check
      _
    $region38: #{_lambda_.5} parent=5 // pred_check_branch
      %246 = sbr.rel (%p243) target = $region40
    $region39: #{_lambda_.5} parent=5 // pred_region
      %s247 = ssub.s32 %s14, 1
      %p248 = scmp.lt.s32.totalorder %s19, 1
      %s249 = scalar_select %p248, %s19, 1
      %s250 = smul.addr %s249, 32
      %s251 = smul.addr %s250, 8
      %s252 = scalar_lea.vmem %s0, %s251
      %p253 = pneg %p40
      %p254 = pneg %p37
      %p255 = pneg %p61
      %p256 = pneg %p58
      %p257 = pneg %p82
      %p258 = pneg %p79
      %p259 = pneg %p103
      %p260 = pneg %p100
      %p261 = pneg %p124
      %p262 = pneg %p121
      %p263 = pneg %p150
      %p264 = pneg %p147
      %p265 = scmp.lt.s32.totalorder %s19, 1
      %s266 = scalar_select %p265, %s19, 1
      %s267 = smul.addr %s266, 32
      %s268 = smul.addr %s267, 4
      %s269 = scalar_lea.vmem %s5, %s268
      %p270 = pneg %p176
      %p271 = pneg %p173
      %p272 = scmp.lt.s32.totalorder %s19, 1
      %s273 = scalar_select %p272, %s19, 1
      %s274 = scalar_lea.vmem %s6, %s273
      %p275 = pneg %p202
      %p276 = pneg %p199
      %p277 = scmp.lt.s32.totalorder %s19, 1
      %s278 = scalar_select %p277, %s19, 1
      %s279 = scalar_lea.vmem %s7, %s278
      %p280 = scmp.lt.s32.totalorder %s19, 1
      %s281 = scalar_select %p280, %s19, 1
      %s282 = smul.addr %s281, 32
      %s283 = smul.addr %s282, 8
      %s284 = scalar_lea.vmem %s0, %s283
      %p285 = scmp.lt.s32.totalorder %s19, 1
      %s286 = scalar_select %p285, %s19, 1
      %s287 = smul.addr %s286, 32
      %s288 = smul.addr %s287, 4
      %s289 = scalar_lea.vmem %s5, %s288
      %p290 = scmp.lt.s32.totalorder %s19, 1
      %s291 = scalar_select %p290, %s19, 1
      %s292 = scalar_lea.vmem %s6, %s291
      %p293 = scmp.lt.s32.totalorder %s19, 1
      %s294 = scalar_select %p293, %s19, 1
      %s295 = scalar_lea.vmem %s7, %s294
      %v297 = vld [vmem:[%s284] sm:$0xff]
      %v298 = vld [vmem:[%s284 + $0x8] sm:$0xff]
      %v299 = vld [vmem:[%s284 + $0x10] sm:$0xff]
      %v300 = vld [vmem:[%s284 + $0x18] sm:$0xff]
      %v301 = vld [vmem:[%s284 + $0x20] sm:$0xff]
      %v302 = vld [vmem:[%s284 + $0x28] sm:$0xff]
      %v303 = vld [vmem:[%s284 + $0x30] sm:$0xff]
      %v304 = vld [vmem:[%s284 + $0x38] sm:$0xff]
      %v305 = vld [vmem:[%s284 + $0x40] sm:$0xff]
      %v306 = vld [vmem:[%s284 + $0x48] sm:$0xff]
      %v307 = vld [vmem:[%s284 + $0x50] sm:$0xff]
      %v308 = vld [vmem:[%s284 + $0x58] sm:$0xff]
      %v309 = vld [vmem:[%s284 + $0x60] sm:$0xff]
      %v310 = vld [vmem:[%s284 + $0x68] sm:$0xff]
      %v311 = vld [vmem:[%s284 + $0x70] sm:$0xff]
      %v312 = vld [vmem:[%s284 + $0x78] sm:$0xff]
      %v313 = vld [vmem:[%s284 + $0x80] sm:$0xff]
      %v314 = vld [vmem:[%s284 + $0x88] sm:$0xff]
      %v315 = vld [vmem:[%s284 + $0x90] sm:$0xff]
      %v316 = vld [vmem:[%s284 + $0x98] sm:$0xff]
      %v317 = vld [vmem:[%s284 + $0xa0] sm:$0xff]
      %v318 = vld [vmem:[%s284 + $0xa8] sm:$0xff]
      %v319 = vld [vmem:[%s284 + $0xb0] sm:$0xff]
      %v320 = vld [vmem:[%s284 + $0xb8] sm:$0xff]
      %v321 = vld [vmem:[%s284 + $0xc0] sm:$0xff]
      %v322 = vld [vmem:[%s284 + $0xc8] sm:$0xff]
      %v323 = vld [vmem:[%s284 + $0xd0] sm:$0xff]
      %v324 = vld [vmem:[%s284 + $0xd8] sm:$0xff]
      %v325 = vld [vmem:[%s284 + $0xe0] sm:$0xff]
      %v326 = vld [vmem:[%s284 + $0xe8] sm:$0xff]
      %v327 = vld [vmem:[%s284 + $0xf0] sm:$0xff]
      %v328 = vld [vmem:[%s284 + $0xf8] sm:$0xff]
      %vm362 = vcmask 1040384
      %v363 = vrot.slane 0.0, 7
      %v364 = vsel %vm362, %v363, %v363
      %v365 = vrot.slane %v297, 7
      %v366 = vrot.slane %v298, 7
      %v367 = vsel %vm362, %v365, %v366
      %v368 = vrot.slane %v299, 7
      %v369 = vrot.slane %v300, 7
      %v370 = vsel %vm362, %v368, %v369
      %v371 = vrot.slane %v301, 7
      %v372 = vrot.slane %v302, 7
      %v373 = vsel %vm362, %v371, %v372
      %v374 = vrot.slane %v303, 7
      %v375 = vrot.slane %v304, 7
      %v376 = vsel %vm362, %v374, %v375
      %v377 = vrot.slane %v305, 7
      %v378 = vrot.slane %v306, 7
      %v379 = vsel %vm362, %v377, %v378
      %v380 = vrot.slane %v307, 7
      %v381 = vrot.slane %v308, 7
      %v382 = vsel %vm362, %v380, %v381
      %v383 = vrot.slane %v309, 7
      %v384 = vrot.slane %v310, 7
      %v385 = vsel %vm362, %v383, %v384
      %v386 = vrot.slane %v311, 7
      %v387 = vrot.slane %v312, 7
      %v388 = vsel %vm362, %v386, %v387
      %v389 = vrot.slane %v313, 7
      %v390 = vrot.slane %v314, 7
      %v391 = vsel %vm362, %v389, %v390
      %v392 = vrot.slane %v315, 7
      %v393 = vrot.slane %v316, 7
      %v394 = vsel %vm362, %v392, %v393
      %v395 = vrot.slane %v317, 7
      %v396 = vrot.slane %v318, 7
      %v397 = vsel %vm362, %v395, %v396
      %v398 = vrot.slane %v319, 7
      %v399 = vrot.slane %v320, 7
      %v400 = vsel %vm362, %v398, %v399
      %v401 = vrot.slane %v321, 7
      %v402 = vrot.slane %v322, 7
      %v403 = vsel %vm362, %v401, %v402
      %v404 = vrot.slane %v323, 7
      %v405 = vrot.slane %v324, 7
      %v406 = vsel %vm362, %v404, %v405
      %v407 = vrot.slane %v325, 7
      %v408 = vrot.slane %v326, 7
      %v409 = vsel %vm362, %v407, %v408
      %v410 = vrot.slane %v327, 7
      %v411 = vrot.slane %v328, 7
      %v412 = vsel %vm362, %v410, %v411
      %v447 = vsel %vm362, 0.0, %v363
      %v448 = vsel %vm362, 0.0, %v365
      %v449 = vsel %vm362, 0.0, %v368
      %v450 = vsel %vm362, 0.0, %v371
      %v451 = vsel %vm362, 0.0, %v374
      %v452 = vsel %vm362, 0.0, %v377
      %v453 = vsel %vm362, 0.0, %v380
      %v454 = vsel %vm362, 0.0, %v383
      %v455 = vsel %vm362, 0.0, %v386
      %v456 = vsel %vm362, 0.0, %v389
      %v457 = vsel %vm362, 0.0, %v392
      %v458 = vsel %vm362, 0.0, %v395
      %v459 = vsel %vm362, 0.0, %v398
      %v460 = vsel %vm362, 0.0, %v401
      %v461 = vsel %vm362, 0.0, %v404
      %v462 = vsel %vm362, 0.0, %v407
      %v463 = vsel %vm362, 0.0, %v410
      %vm464 = vcmask 1046528
      %v465 = vrot.slane 0.0, 1
      %v466 = vsel %vm464, %v465, %v465
      %v467 = vrot.slane %v297, 1
      %v468 = vrot.slane %v298, 1
      %v469 = vsel %vm464, %v467, %v468
      %v470 = vrot.slane %v299, 1
      %v471 = vrot.slane %v300, 1
      %v472 = vsel %vm464, %v470, %v471
      %v473 = vrot.slane %v301, 1
      %v474 = vrot.slane %v302, 1
      %v475 = vsel %vm464, %v473, %v474
      %v476 = vrot.slane %v303, 1
      %v477 = vrot.slane %v304, 1
      %v478 = vsel %vm464, %v476, %v477
      %v479 = vrot.slane %v305, 1
      %v480 = vrot.slane %v306, 1
      %v481 = vsel %vm464, %v479, %v480
      %v482 = vrot.slane %v307, 1
      %v483 = vrot.slane %v308, 1
      %v484 = vsel %vm464, %v482, %v483
      %v485 = vrot.slane %v309, 1
      %v486 = vrot.slane %v310, 1
      %v487 = vsel %vm464, %v485, %v486
      %v488 = vrot.slane %v311, 1
      %v489 = vrot.slane %v312, 1
      %v490 = vsel %vm464, %v488, %v489
      %v491 = vrot.slane %v313, 1
      %v492 = vrot.slane %v314, 1
      %v493 = vsel %vm464, %v491, %v492
      %v494 = vrot.slane %v315, 1
      %v495 = vrot.slane %v316, 1
      %v496 = vsel %vm464, %v494, %v495
      %v497 = vrot.slane %v317, 1
      %v498 = vrot.slane %v318, 1
      %v499 = vsel %vm464, %v497, %v498
      %v500 = vrot.slane %v319, 1
      %v501 = vrot.slane %v320, 1
      %v502 = vsel %vm464, %v500, %v501
      %v503 = vrot.slane %v321, 1
      %v504 = vrot.slane %v322, 1
      %v505 = vsel %vm464, %v503, %v504
      %v506 = vrot.slane %v323, 1
      %v507 = vrot.slane %v324, 1
      %v508 = vsel %vm464, %v506, %v507
      %v509 = vrot.slane %v325, 1
      %v510 = vrot.slane %v326, 1
      %v511 = vsel %vm464, %v509, %v510
      %v512 = vrot.slane %v327, 1
      %v513 = vrot.slane %v328, 1
      %v514 = vsel %vm464, %v512, %v513
      %v532 = vsel %vm464, %v465, 0.0
      %v533 = vsel %vm464, %v468, 0.0
      %v534 = vsel %vm464, %v471, 0.0
      %v535 = vsel %vm464, %v474, 0.0
      %v536 = vsel %vm464, %v477, 0.0
      %v537 = vsel %vm464, %v480, 0.0
      %v538 = vsel %vm464, %v483, 0.0
      %v539 = vsel %vm464, %v486, 0.0
      %v540 = vsel %vm464, %v489, 0.0
      %v541 = vsel %vm464, %v492, 0.0
      %v542 = vsel %vm464, %v495, 0.0
      %v543 = vsel %vm464, %v498, 0.0
      %v544 = vsel %vm464, %v501, 0.0
      %v545 = vsel %vm464, %v504, 0.0
      %v546 = vsel %vm464, %v507, 0.0
      %v547 = vsel %vm464, %v510, 0.0
      %v548 = vsel %vm464, %v513, 0.0
      %549 = vrot.lane.b32.xlu0 0.0, 4
      %v550 = vpop.permute.xlu0 %549
      %551 = vrot.lane.b32.xlu0 %v297, 4
      %v552 = vpop.permute.xlu0 %551
      %553 = vrot.lane.b32.xlu0 %v298, 4
      %v554 = vpop.permute.xlu0 %553
      %555 = vrot.lane.b32.xlu0 %v299, 4
      %v556 = vpop.permute.xlu0 %555
      %557 = vrot.lane.b32.xlu0 %v300, 4
      %v558 = vpop.permute.xlu0 %557
      %559 = vrot.lane.b32.xlu0 %v301, 4
      %v560 = vpop.permute.xlu0 %559
      %561 = vrot.lane.b32.xlu0 %v302, 4
      %v562 = vpop.permute.xlu0 %561
      %563 = vrot.lane.b32.xlu0 %v303, 4
      %v564 = vpop.permute.xlu0 %563
      %565 = vrot.lane.b32.xlu0 %v304, 4
      %v566 = vpop.permute.xlu0 %565
      %567 = vrot.lane.b32.xlu0 %v305, 4
      %v568 = vpop.permute.xlu0 %567
      %569 = vrot.lane.b32.xlu0 %v306, 4
      %v570 = vpop.permute.xlu0 %569
      %571 = vrot.lane.b32.xlu0 %v307, 4
      %v572 = vpop.permute.xlu0 %571
      %573 = vrot.lane.b32.xlu0 %v308, 4
      %v574 = vpop.permute.xlu0 %573
      %575 = vrot.lane.b32.xlu0 %v309, 4
      %v576 = vpop.permute.xlu0 %575
      %577 = vrot.lane.b32.xlu0 %v310, 4
      %v578 = vpop.permute.xlu0 %577
      %579 = vrot.lane.b32.xlu0 %v311, 4
      %v580 = vpop.permute.xlu0 %579
      %581 = vrot.lane.b32.xlu0 %v312, 4
      %v582 = vpop.permute.xlu0 %581
      %583 = vrot.lane.b32.xlu0 %v313, 4
      %v584 = vpop.permute.xlu0 %583
      %585 = vrot.lane.b32.xlu0 %v314, 4
      %v586 = vpop.permute.xlu0 %585
      %587 = vrot.lane.b32.xlu0 %v315, 4
      %v588 = vpop.permute.xlu0 %587
      %589 = vrot.lane.b32.xlu0 %v316, 4
      %v590 = vpop.permute.xlu0 %589
      %591 = vrot.lane.b32.xlu0 %v317, 4
      %v592 = vpop.permute.xlu0 %591
      %593 = vrot.lane.b32.xlu0 %v318, 4
      %v594 = vpop.permute.xlu0 %593
      %595 = vrot.lane.b32.xlu0 %v319, 4
      %v596 = vpop.permute.xlu0 %595
      %597 = vrot.lane.b32.xlu0 %v320, 4
      %v598 = vpop.permute.xlu0 %597
      %599 = vrot.lane.b32.xlu0 %v321, 4
      %v600 = vpop.permute.xlu0 %599
      %601 = vrot.lane.b32.xlu0 %v322, 4
      %v602 = vpop.permute.xlu0 %601
      %603 = vrot.lane.b32.xlu0 %v323, 4
      %v604 = vpop.permute.xlu0 %603
      %605 = vrot.lane.b32.xlu0 %v324, 4
      %v606 = vpop.permute.xlu0 %605
      %607 = vrot.lane.b32.xlu0 %v325, 4
      %v608 = vpop.permute.xlu0 %607
      %609 = vrot.lane.b32.xlu0 %v326, 4
      %v610 = vpop.permute.xlu0 %609
      %611 = vrot.lane.b32.xlu0 %v327, 4
      %v612 = vpop.permute.xlu0 %611
      %613 = vrot.lane.b32.xlu0 %v328, 4
      %v614 = vpop.permute.xlu0 %613
      %665 = vrot.lane.b32.xlu0 %v466, 8
      %v666 = vpop.permute.xlu0 %665
      %667 = vrot.lane.b32.xlu0 %v532, 8
      %v668 = vpop.permute.xlu0 %667
      %669 = vrot.lane.b32.xlu0 %v469, 8
      %v670 = vpop.permute.xlu0 %669
      %671 = vrot.lane.b32.xlu0 %v533, 8
      %v672 = vpop.permute.xlu0 %671
      %673 = vrot.lane.b32.xlu0 %v472, 8
      %v674 = vpop.permute.xlu0 %673
      %675 = vrot.lane.b32.xlu0 %v534, 8
      %v676 = vpop.permute.xlu0 %675
      %677 = vrot.lane.b32.xlu0 %v475, 8
      %v678 = vpop.permute.xlu0 %677
      %679 = vrot.lane.b32.xlu0 %v535, 8
      %v680 = vpop.permute.xlu0 %679
      %681 = vrot.lane.b32.xlu0 %v478, 8
      %v682 = vpop.permute.xlu0 %681
      %683 = vrot.lane.b32.xlu0 %v536, 8
      %v684 = vpop.permute.xlu0 %683
      %685 = vrot.lane.b32.xlu0 %v481, 8
      %v686 = vpop.permute.xlu0 %685
      %687 = vrot.lane.b32.xlu0 %v537, 8
      %v688 = vpop.permute.xlu0 %687
      %689 = vrot.lane.b32.xlu0 %v484, 8
      %v690 = vpop.permute.xlu0 %689
      %691 = vrot.lane.b32.xlu0 %v538, 8
      %v692 = vpop.permute.xlu0 %691
      %693 = vrot.lane.b32.xlu0 %v487, 8
      %v694 = vpop.permute.xlu0 %693
      %695 = vrot.lane.b32.xlu0 %v539, 8
      %v696 = vpop.permute.xlu0 %695
      %697 = vrot.lane.b32.xlu0 %v490, 8
      %v698 = vpop.permute.xlu0 %697
      %699 = vrot.lane.b32.xlu0 %v540, 8
      %v700 = vpop.permute.xlu0 %699
      %701 = vrot.lane.b32.xlu0 %v493, 8
      %v702 = vpop.permute.xlu0 %701
      %703 = vrot.lane.b32.xlu0 %v541, 8
      %v704 = vpop.permute.xlu0 %703
      %705 = vrot.lane.b32.xlu0 %v496, 8
      %v706 = vpop.permute.xlu0 %705
      %707 = vrot.lane.b32.xlu0 %v542, 8
      %v708 = vpop.permute.xlu0 %707
      %709 = vrot.lane.b32.xlu0 %v499, 8
      %v710 = vpop.permute.xlu0 %709
      %711 = vrot.lane.b32.xlu0 %v543, 8
      %v712 = vpop.permute.xlu0 %711
      %713 = vrot.lane.b32.xlu0 %v502, 8
      %v714 = vpop.permute.xlu0 %713
      %715 = vrot.lane.b32.xlu0 %v544, 8
      %v716 = vpop.permute.xlu0 %715
      %717 = vrot.lane.b32.xlu0 %v505, 8
      %v718 = vpop.permute.xlu0 %717
      %719 = vrot.lane.b32.xlu0 %v545, 8
      %v720 = vpop.permute.xlu0 %719
      %721 = vrot.lane.b32.xlu0 %v508, 8
      %v722 = vpop.permute.xlu0 %721
      %723 = vrot.lane.b32.xlu0 %v546, 8
      %v724 = vpop.permute.xlu0 %723
      %725 = vrot.lane.b32.xlu0 %v511, 8
      %v726 = vpop.permute.xlu0 %725
      %727 = vrot.lane.b32.xlu0 %v547, 8
      %v728 = vpop.permute.xlu0 %727
      %729 = vrot.lane.b32.xlu0 %v514, 8
      %v730 = vpop.permute.xlu0 %729
      %731 = vrot.lane.b32.xlu0 %v548, 8
      %v732 = vpop.permute.xlu0 %731
      %vm767 = vcmask 31744
      %v768 = vsel %vm767, %v447, %v550
      %v769 = vsel %vm767, %v364, %v550
      %v770 = vsel %vm767, %v448, %v552
      %v771 = vsel %vm767, %v367, %v554
      %v772 = vsel %vm767, %v449, %v556
      %v773 = vsel %vm767, %v370, %v558
      %v774 = vsel %vm767, %v450, %v560
      %v775 = vsel %vm767, %v373, %v562
      %v776 = vsel %vm767, %v451, %v564
      %v777 = vsel %vm767, %v376, %v566
      %v778 = vsel %vm767, %v452, %v568
      %v779 = vsel %vm767, %v379, %v570
      %v780 = vsel %vm767, %v453, %v572
      %v781 = vsel %vm767, %v382, %v574
      %v782 = vsel %vm767, %v454, %v576
      %v783 = vsel %vm767, %v385, %v578
      %v784 = vsel %vm767, %v455, %v580
      %v785 = vsel %vm767, %v388, %v582
      %v786 = vsel %vm767, %v456, %v584
      %v787 = vsel %vm767, %v391, %v586
      %v788 = vsel %vm767, %v457, %v588
      %v789 = vsel %vm767, %v394, %v590
      %v790 = vsel %vm767, %v458, %v592
      %v791 = vsel %vm767, %v397, %v594
      %v792 = vsel %vm767, %v459, %v596
      %v793 = vsel %vm767, %v400, %v598
      %v794 = vsel %vm767, %v460, %v600
      %v795 = vsel %vm767, %v403, %v602
      %v796 = vsel %vm767, %v461, %v604
      %v797 = vsel %vm767, %v406, %v606
      %v798 = vsel %vm767, %v462, %v608
      %v799 = vsel %vm767, %v409, %v610
      %v800 = vsel %vm767, %v463, %v612
      %v801 = vsel %vm767, %v412, %v614
      %vm802 = vcmask 64512
      %v803 = vsel %vm802, %v768, %v666
      %v804 = vsel %vm802, %v769, %v668
      %v805 = vsel %vm802, %v770, %v670
      %v806 = vsel %vm802, %v771, %v672
      %v807 = vsel %vm802, %v772, %v674
      %v808 = vsel %vm802, %v773, %v676
      %v809 = vsel %vm802, %v774, %v678
      %v810 = vsel %vm802, %v775, %v680
      %v811 = vsel %vm802, %v776, %v682
      %v812 = vsel %vm802, %v777, %v684
      %v813 = vsel %vm802, %v778, %v686
      %v814 = vsel %vm802, %v779, %v688
      %v815 = vsel %vm802, %v780, %v690
      %v816 = vsel %vm802, %v781, %v692
      %v817 = vsel %vm802, %v782, %v694
      %v818 = vsel %vm802, %v783, %v696
      %v819 = vsel %vm802, %v784, %v698
      %v820 = vsel %vm802, %v785, %v700
      %v821 = vsel %vm802, %v786, %v702
      %v822 = vsel %vm802, %v787, %v704
      %v823 = vsel %vm802, %v788, %v706
      %v824 = vsel %vm802, %v789, %v708
      %v825 = vsel %vm802, %v790, %v710
      %v826 = vsel %vm802, %v791, %v712
      %v827 = vsel %vm802, %v792, %v714
      %v828 = vsel %vm802, %v793, %v716
      %v829 = vsel %vm802, %v794, %v718
      %v830 = vsel %vm802, %v795, %v720
      %v831 = vsel %vm802, %v796, %v722
      %v832 = vsel %vm802, %v797, %v724
      %v833 = vsel %vm802, %v798, %v726
      %v834 = vsel %vm802, %v799, %v728
      %v835 = vsel %vm802, %v800, %v730
      %v836 = vsel %vm802, %v801, %v732
      %v837 = vpack.c.bf16 %v804, %v803
      %v838 = vpack.c.bf16 %v806, %v805
      %v839 = vpack.c.bf16 %v808, %v807
      %v840 = vpack.c.bf16 %v810, %v809
      %v841 = vpack.c.bf16 %v812, %v811
      %v842 = vpack.c.bf16 %v814, %v813
      %v843 = vpack.c.bf16 %v816, %v815
      %v844 = vpack.c.bf16 %v818, %v817
      %v845 = vpack.c.bf16 %v820, %v819
      %v846 = vpack.c.bf16 %v822, %v821
      %v847 = vpack.c.bf16 %v824, %v823
      %v848 = vpack.c.bf16 %v826, %v825
      %v849 = vpack.c.bf16 %v828, %v827
      %v850 = vpack.c.bf16 %v830, %v829
      %v851 = vpack.c.bf16 %v832, %v831
      %v852 = vpack.c.bf16 %v834, %v833
      %v853 = vpack.c.bf16 %v836, %v835
      %v854 = vld [vmem:[%s2] sm:$0x1]
      %v855 = vld [vmem:[%s1] sm:$0xf]
      %v856 = vld [vmem:[%s1 + $0x4] sm:$0x3]
      %v858 = vlaneseq
      %v859 = vshrl.u32 %v858, 7
      %v860 = vsub.s32 0, %v859
      %v861 = vrot.slane %v854, %v860
      %v865 = vunpack.c.l.b16 %v855
      %v866 = vunpack.c.l.b16 %v856
      %v867 = vpack.c.b16 %v866, %v865
      %vm868 = vcmask 97280
      %v870 = vsel %vm868, %v837, 0
      %v873 = vsel %vm868, %v838, 0
      %v876 = vsel %vm868, %v839, 0
      %v879 = vsel %vm868, %v840, 0
      %v882 = vsel %vm868, %v841, 0
      %v885 = vsel %vm868, %v842, 0
      %v888 = vsel %vm868, %v843, 0
      %v891 = vsel %vm868, %v844, 0
      %v894 = vsel %vm868, %v845, 0
      %v897 = vsel %vm868, %v846, 0
      %v900 = vsel %vm868, %v847, 0
      %v903 = vsel %vm868, %v848, 0
      %v906 = vsel %vm868, %v849, 0
      %v909 = vsel %vm868, %v850, 0
      %v912 = vsel %vm868, %v851, 0
      %v915 = vsel %vm868, %v852, 0
      %vm917 = vcmask 1045504
      %v919 = vsel %vm917, %v867, 0
      %921 = vmatprep.subr.bf16.mxu0 0
      %922 = vmatpush1.bf16.msra.mxu0 %v919
      %923 = vmatprep.subr.bf16.mxu0 0
      %924 = vmatpush1.bf16.msra.mxu0 0
      %925 = vmatprep.subr.bf16.mxu0 0
      %926 = vmatpush1.bf16.msra.mxu0 0
      %927 = vmatprep.subr.bf16.mxu0 0
      %928 = vmatpush1.bf16.msra.mxu0 0
      %929 = vmatprep.subr.bf16.mxu0 0
      %930 = vmatpush1.bf16.msra.mxu0 0
      %931 = vmatprep.subr.bf16.mxu0 0
      %932 = vmatpush1.bf16.msra.mxu0 0
      %933 = vmatprep.subr.bf16.mxu0 0
      %934 = vmatpush1.bf16.msra.mxu0 0
      %935 = vmatprep.subr.bf16.mxu0 0
      %936 = vmatpush1.bf16.msra.mxu0 0
      %937 = vmatprep.subr.bf16.mxu0 0
      %938 = vmatpush1.bf16.msra.mxu0 0
      %939 = vmatprep.subr.bf16.mxu0 0
      %940 = vmatpush1.bf16.msra.mxu0 0
      %941 = vmatprep.subr.bf16.mxu0 0
      %942 = vmatpush1.bf16.msra.mxu0 0
      %943 = vmatprep.subr.bf16.mxu0 0
      %944 = vmatpush1.bf16.msra.mxu0 0
      %945 = vmatprep.subr.bf16.mxu0 0
      %946 = vmatpush1.bf16.msra.mxu0 0
      %947 = vmatprep.subr.bf16.mxu0 0
      %948 = vmatpush1.bf16.msra.mxu0 0
      %949 = vmatprep.subr.bf16.mxu0 0
      %950 = vmatpush1.bf16.msra.mxu0 0
      %951 = vmatprep.subr.bf16.mxu0 0
      %952 = vmatpush1.bf16.msra.mxu0 0
      %953 = vmatprep.mubr.bf16.mxu0 0
      %954 = vmatmul.mubr.bf16.gmra.mrb[0].mxu0 %v870
      %v955 = vpop.f32.mrb[0].mxu0
      %v956 = vadd.f32 %v861, %v955
      %v957 = vpop.f32.mrb[0].mxu0
      %v958 = vpop.f32.mrb[0].mxu0
      %v959 = vadd.f32 %v861, %v958
      %v960 = vpop.f32.mrb[0].mxu0
      %961 = vmatprep.mubr.bf16.mxu0 0
      %962 = vmatmul.mubr.bf16.gmra.mrb[0].mxu0 %v873
      %v963 = vpop.f32.mrb[0].mxu0
      %v964 = vadd.f32 %v861, %v963
      %v965 = vpop.f32.mrb[0].mxu0
      %v966 = vpop.f32.mrb[0].mxu0
      %v967 = vadd.f32 %v861, %v966
      %v968 = vpop.f32.mrb[0].mxu0
      %969 = vmatprep.mubr.bf16.mxu0 0
      %970 = vmatmul.mubr.bf16.gmra.mrb[0].mxu0 %v876
      %v971 = vpop.f32.mrb[0].mxu0
      %v972 = vadd.f32 %v861, %v971
      %v973 = vpop.f32.mrb[0].mxu0
      %v974 = vpop.f32.mrb[0].mxu0
      %v975 = vadd.f32 %v861, %v974
      %v976 = vpop.f32.mrb[0].mxu0
      %977 = vmatprep.mubr.bf16.mxu0 0
      %978 = vmatmul.mubr.bf16.gmra.mrb[0].mxu0 %v879
      %v979 = vpop.f32.mrb[0].mxu0
      %v980 = vadd.f32 %v861, %v979
      %v981 = vpop.f32.mrb[0].mxu0
      %v982 = vpop.f32.mrb[0].mxu0
      %v983 = vadd.f32 %v861, %v982
      %v984 = vpop.f32.mrb[0].mxu0
      %985 = vmatprep.mubr.bf16.mxu0 0
      %986 = vmatmul.mubr.bf16.gmra.mrb[0].mxu0 %v882
      %v987 = vpop.f32.mrb[0].mxu0
      %v988 = vadd.f32 %v861, %v987
      %v989 = vpop.f32.mrb[0].mxu0
      %v990 = vpop.f32.mrb[0].mxu0
      %v991 = vadd.f32 %v861, %v990
      %v992 = vpop.f32.mrb[0].mxu0
      %993 = vmatprep.mubr.bf16.mxu0 0
      %994 = vmatmul.mubr.bf16.gmra.mrb[0].mxu0 %v885
      %v995 = vpop.f32.mrb[0].mxu0
      %v996 = vadd.f32 %v861, %v995
      %v997 = vpop.f32.mrb[0].mxu0
      %v998 = vpop.f32.mrb[0].mxu0
      %v999 = vadd.f32 %v861, %v998
      %v1000 = vpop.f32.mrb[0].mxu0
      %1001 = vmatprep.mubr.bf16.mxu0 0
      %1002 = vmatmul.mubr.bf16.gmra.mrb[0].mxu0 %v888
      %v1003 = vpop.f32.mrb[0].mxu0
      %v1004 = vadd.f32 %v861, %v1003
      %v1005 = vpop.f32.mrb[0].mxu0
      %v1006 = vpop.f32.mrb[0].mxu0
      %v1007 = vadd.f32 %v861, %v1006
      %v1008 = vpop.f32.mrb[0].mxu0
      %1009 = vmatprep.mubr.bf16.mxu0 0
      %1010 = vmatmul.mubr.bf16.gmra.mrb[0].mxu0 %v891
      %v1011 = vpop.f32.mrb[0].mxu0
      %v1012 = vadd.f32 %v861, %v1011
      %v1013 = vpop.f32.mrb[0].mxu0
      %v1014 = vpop.f32.mrb[0].mxu0
      %v1015 = vadd.f32 %v861, %v1014
      %v1016 = vpop.f32.mrb[0].mxu0
      %1017 = vmatprep.mubr.bf16.mxu0 0
      %1018 = vmatmul.mubr.bf16.gmra.mrb[0].mxu0 %v894
      %v1019 = vpop.f32.mrb[0].mxu0
      %v1020 = vadd.f32 %v861, %v1019
      %v1021 = vpop.f32.mrb[0].mxu0
      %v1022 = vpop.f32.mrb[0].mxu0
      %v1023 = vadd.f32 %v861, %v1022
      %v1024 = vpop.f32.mrb[0].mxu0
      %1025 = vmatprep.mubr.bf16.mxu0 0
      %1026 = vmatmul.mubr.bf16.gmra.mrb[0].mxu0 %v897
      %v1027 = vpop.f32.mrb[0].mxu0
      %v1028 = vadd.f32 %v861, %v1027
      %v1029 = vpop.f32.mrb[0].mxu0
      %v1030 = vpop.f32.mrb[0].mxu0
      %v1031 = vadd.f32 %v861, %v1030
      %v1032 = vpop.f32.mrb[0].mxu0
      %1033 = vmatprep.mubr.bf16.mxu0 0
      %1034 = vmatmul.mubr.bf16.gmra.mrb[0].mxu0 %v900
      %v1035 = vpop.f32.mrb[0].mxu0
      %v1036 = vadd.f32 %v861, %v1035
      %v1037 = vpop.f32.mrb[0].mxu0
      %v1038 = vpop.f32.mrb[0].mxu0
      %v1039 = vadd.f32 %v861, %v1038
      %v1040 = vpop.f32.mrb[0].mxu0
      %1041 = vmatprep.mubr.bf16.mxu0 0
      %1042 = vmatmul.mubr.bf16.gmra.mrb[0].mxu0 %v903
      %v1043 = vpop.f32.mrb[0].mxu0
      %v1044 = vadd.f32 %v861, %v1043
      %v1045 = vpop.f32.mrb[0].mxu0
      %v1046 = vpop.f32.mrb[0].mxu0
      %v1047 = vadd.f32 %v861, %v1046
      %v1048 = vpop.f32.mrb[0].mxu0
      %1049 = vmatprep.mubr.bf16.mxu0 0
      %1050 = vmatmul.mubr.bf16.gmra.mrb[0].mxu0 %v906
      %v1051 = vpop.f32.mrb[0].mxu0
      %v1052 = vadd.f32 %v861, %v1051
      %v1053 = vpop.f32.mrb[0].mxu0
      %v1054 = vpop.f32.mrb[0].mxu0
      %v1055 = vadd.f32 %v861, %v1054
      %v1056 = vpop.f32.mrb[0].mxu0
      %1057 = vmatprep.mubr.bf16.mxu0 0
      %1058 = vmatmul.mubr.bf16.gmra.mrb[0].mxu0 %v909
      %v1059 = vpop.f32.mrb[0].mxu0
      %v1060 = vadd.f32 %v861, %v1059
      %v1061 = vpop.f32.mrb[0].mxu0
      %v1062 = vpop.f32.mrb[0].mxu0
      %v1063 = vadd.f32 %v861, %v1062
      %v1064 = vpop.f32.mrb[0].mxu0
      %1065 = vmatprep.mubr.bf16.mxu0 0
      %1066 = vmatmul.mubr.bf16.gmra.mrb[0].mxu0 %v912
      %v1067 = vpop.f32.mrb[0].mxu0
      %v1068 = vadd.f32 %v861, %v1067
      %v1069 = vpop.f32.mrb[0].mxu0
      %v1070 = vpop.f32.mrb[0].mxu0
      %v1071 = vadd.f32 %v861, %v1070
      %v1072 = vpop.f32.mrb[0].mxu0
      %1073 = vmatprep.mubr.bf16.mxu0 0
      %1074 = vmatmul.mubr.bf16.gmra.mrb[0].mxu0 %v915
      %v1075 = vpop.f32.mrb[0].mxu0
      %v1076 = vadd.f32 %v861, %v1075
      %v1077 = vpop.f32.mrb[0].mxu0
      %v1078 = vpop.f32.mrb[0].mxu0
      %v1079 = vadd.f32 %v861, %v1078
      %v1080 = vpop.f32.mrb[0].mxu0
      %1081 = vdwg.mxu0
      %s1082 = scalar_lea.vmem %s1, 8
      %v1083 = vld [vmem:[%s1082] sm:$0xf]
      %v1084 = vld [vmem:[%s1082 + $0x4] sm:$0x3]
      %v1087 = vunpack.c.l.b16 %v1083
      %v1088 = vunpack.c.l.b16 %v1084
      %v1089 = vpack.c.b16 %v1088, %v1087
      %v1091 = vsel %vm868, %v853, 0
      %v1094 = vsel %vm917, %v1089, 0
      %1096 = vmatprep.subr.bf16.mxu0 0
      %1097 = vmatpush1.bf16.msra.mxu0 %v1094
      %1098 = vmatprep.subr.bf16.mxu0 0
      %1099 = vmatpush1.bf16.msra.mxu0 0
      %1100 = vmatprep.subr.bf16.mxu0 0
      %1101 = vmatpush1.bf16.msra.mxu0 0
      %1102 = vmatprep.subr.bf16.mxu0 0
      %1103 = vmatpush1.bf16.msra.mxu0 0
      %1104 = vmatprep.subr.bf16.mxu0 0
      %1105 = vmatpush1.bf16.msra.mxu0 0
      %1106 = vmatprep.subr.bf16.mxu0 0
      %1107 = vmatpush1.bf16.msra.mxu0 0
      %1108 = vmatprep.subr.bf16.mxu0 0
      %1109 = vmatpush1.bf16.msra.mxu0 0
      %1110 = vmatprep.subr.bf16.mxu0 0
      %1111 = vmatpush1.bf16.msra.mxu0 0
      %1112 = vmatprep.subr.bf16.mxu0 0
      %1113 = vmatpush1.bf16.msra.mxu0 0
      %1114 = vmatprep.subr.bf16.mxu0 0
      %1115 = vmatpush1.bf16.msra.mxu0 0
      %1116 = vmatprep.subr.bf16.mxu0 0
      %1117 = vmatpush1.bf16.msra.mxu0 0
      %1118 = vmatprep.subr.bf16.mxu0 0
      %1119 = vmatpush1.bf16.msra.mxu0 0
      %1120 = vmatprep.subr.bf16.mxu0 0
      %1121 = vmatpush1.bf16.msra.mxu0 0
      %1122 = vmatprep.subr.bf16.mxu0 0
      %1123 = vmatpush1.bf16.msra.mxu0 0
      %1124 = vmatprep.subr.bf16.mxu0 0
      %1125 = vmatpush1.bf16.msra.mxu0 0
      %1126 = vmatprep.subr.bf16.mxu0 0
      %1127 = vmatpush1.bf16.msra.mxu0 0
      %1128 = vmatprep.mubr.bf16.mxu0 0
      %1129 = vmatmul.mubr.bf16.gmra.mrb[0].mxu0 %v873
      %v1130 = vpop.f32.mrb[0].mxu0
      %v1131 = vadd.f32 0.0, %v1130
      %v1132 = vpop.f32.mrb[0].mxu0
      %v1133 = vpop.f32.mrb[0].mxu0
      %v1134 = vadd.f32 0.0, %v1133
      %v1135 = vpop.f32.mrb[0].mxu0
      %1136 = vmatprep.mubr.bf16.mxu0 0
      %1137 = vmatmul.mubr.bf16.gmra.mrb[0].mxu0 %v876
      %v1138 = vpop.f32.mrb[0].mxu0
      %v1139 = vadd.f32 0.0, %v1138
      %v1140 = vpop.f32.mrb[0].mxu0
      %v1141 = vpop.f32.mrb[0].mxu0
      %v1142 = vadd.f32 0.0, %v1141
      %v1143 = vpop.f32.mrb[0].mxu0
      %1144 = vmatprep.mubr.bf16.mxu0 0
      %1145 = vmatmul.mubr.bf16.gmra.mrb[0].mxu0 %v879
      %v1146 = vpop.f32.mrb[0].mxu0
      %v1147 = vadd.f32 0.0, %v1146
      %v1148 = vpop.f32.mrb[0].mxu0
      %v1149 = vpop.f32.mrb[0].mxu0
      %v1150 = vadd.f32 0.0, %v1149
      %v1151 = vpop.f32.mrb[0].mxu0
      %1152 = vmatprep.mubr.bf16.mxu0 0
      %1153 = vmatmul.mubr.bf16.gmra.mrb[0].mxu0 %v882
      %v1154 = vpop.f32.mrb[0].mxu0
      %v1155 = vadd.f32 0.0, %v1154
      %v1156 = vpop.f32.mrb[0].mxu0
      %v1157 = vpop.f32.mrb[0].mxu0
      %v1158 = vadd.f32 0.0, %v1157
      %v1159 = vpop.f32.mrb[0].mxu0
      %1160 = vmatprep.mubr.bf16.mxu0 0
      %1161 = vmatmul.mubr.bf16.gmra.mrb[0].mxu0 %v885
      %v1162 = vpop.f32.mrb[0].mxu0
      %v1163 = vadd.f32 0.0, %v1162
      %v1164 = vpop.f32.mrb[0].mxu0
      %v1165 = vpop.f32.mrb[0].mxu0
      %v1166 = vadd.f32 0.0, %v1165
      %v1167 = vpop.f32.mrb[0].mxu0
      %1168 = vmatprep.mubr.bf16.mxu0 0
      %1169 = vmatmul.mubr.bf16.gmra.mrb[0].mxu0 %v888
      %v1170 = vpop.f32.mrb[0].mxu0
      %v1171 = vadd.f32 0.0, %v1170
      %v1172 = vpop.f32.mrb[0].mxu0
      %v1173 = vpop.f32.mrb[0].mxu0
      %v1174 = vadd.f32 0.0, %v1173
      %v1175 = vpop.f32.mrb[0].mxu0
      %1176 = vmatprep.mubr.bf16.mxu0 0
      %1177 = vmatmul.mubr.bf16.gmra.mrb[0].mxu0 %v891
      %v1178 = vpop.f32.mrb[0].mxu0
      %v1179 = vadd.f32 0.0, %v1178
      %v1180 = vpop.f32.mrb[0].mxu0
      %v1181 = vpop.f32.mrb[0].mxu0
      %v1182 = vadd.f32 0.0, %v1181
      %v1183 = vpop.f32.mrb[0].mxu0
      %1184 = vmatprep.mubr.bf16.mxu0 0
      %1185 = vmatmul.mubr.bf16.gmra.mrb[0].mxu0 %v894
      %v1186 = vpop.f32.mrb[0].mxu0
      %v1187 = vadd.f32 0.0, %v1186
      %v1188 = vpop.f32.mrb[0].mxu0
      %v1189 = vpop.f32.mrb[0].mxu0
      %v1190 = vadd.f32 0.0, %v1189
      %v1191 = vpop.f32.mrb[0].mxu0
      %1192 = vmatprep.mubr.bf16.mxu0 0
      %1193 = vmatmul.mubr.bf16.gmra.mrb[0].mxu0 %v897
      %v1194 = vpop.f32.mrb[0].mxu0
      %v1195 = vadd.f32 0.0, %v1194
      %v1196 = vpop.f32.mrb[0].mxu0
      %v1197 = vpop.f32.mrb[0].mxu0
      %v1198 = vadd.f32 0.0, %v1197
      %v1199 = vpop.f32.mrb[0].mxu0
      %1200 = vmatprep.mubr.bf16.mxu0 0
      %1201 = vmatmul.mubr.bf16.gmra.mrb[0].mxu0 %v900
      %v1202 = vpop.f32.mrb[0].mxu0
      %v1203 = vadd.f32 0.0, %v1202
      %v1204 = vpop.f32.mrb[0].mxu0
      %v1205 = vpop.f32.mrb[0].mxu0
      %v1206 = vadd.f32 0.0, %v1205
      %v1207 = vpop.f32.mrb[0].mxu0
      %1208 = vmatprep.mubr.bf16.mxu0 0
      %1209 = vmatmul.mubr.bf16.gmra.mrb[0].mxu0 %v903
      %v1210 = vpop.f32.mrb[0].mxu0
      %v1211 = vadd.f32 0.0, %v1210
      %v1212 = vpop.f32.mrb[0].mxu0
      %v1213 = vpop.f32.mrb[0].mxu0
      %v1214 = vadd.f32 0.0, %v1213
      %v1215 = vpop.f32.mrb[0].mxu0
      %1216 = vmatprep.mubr.bf16.mxu0 0
      %1217 = vmatmul.mubr.bf16.gmra.mrb[0].mxu0 %v906
      %v1218 = vpop.f32.mrb[0].mxu0
      %v1219 = vadd.f32 0.0, %v1218
      %v1220 = vpop.f32.mrb[0].mxu0
      %v1221 = vpop.f32.mrb[0].mxu0
      %v1222 = vadd.f32 0.0, %v1221
      %v1223 = vpop.f32.mrb[0].mxu0
      %1224 = vmatprep.mubr.bf16.mxu0 0
      %1225 = vmatmul.mubr.bf16.gmra.mrb[0].mxu0 %v909
      %v1226 = vpop.f32.mrb[0].mxu0
      %v1227 = vadd.f32 0.0, %v1226
      %v1228 = vpop.f32.mrb[0].mxu0
      %v1229 = vpop.f32.mrb[0].mxu0
      %v1230 = vadd.f32 0.0, %v1229
      %v1231 = vpop.f32.mrb[0].mxu0
      %1232 = vmatprep.mubr.bf16.mxu0 0
      %1233 = vmatmul.mubr.bf16.gmra.mrb[0].mxu0 %v912
      %v1234 = vpop.f32.mrb[0].mxu0
      %v1235 = vadd.f32 0.0, %v1234
      %v1236 = vpop.f32.mrb[0].mxu0
      %v1237 = vpop.f32.mrb[0].mxu0
      %v1238 = vadd.f32 0.0, %v1237
      %v1239 = vpop.f32.mrb[0].mxu0
      %1240 = vmatprep.mubr.bf16.mxu0 0
      %1241 = vmatmul.mubr.bf16.gmra.mrb[0].mxu0 %v915
      %v1242 = vpop.f32.mrb[0].mxu0
      %v1243 = vadd.f32 0.0, %v1242
      %v1244 = vpop.f32.mrb[0].mxu0
      %v1245 = vpop.f32.mrb[0].mxu0
      %v1246 = vadd.f32 0.0, %v1245
      %v1247 = vpop.f32.mrb[0].mxu0
      %1248 = vmatprep.mubr.bf16.mxu0 0
      %1249 = vmatmul.mubr.bf16.gmra.mrb[0].mxu0 %v1091
      %v1250 = vpop.f32.mrb[0].mxu0
      %v1251 = vadd.f32 0.0, %v1250
      %v1252 = vpop.f32.mrb[0].mxu0
      %v1253 = vpop.f32.mrb[0].mxu0
      %v1254 = vadd.f32 0.0, %v1253
      %v1255 = vpop.f32.mrb[0].mxu0
      %1256 = vdwg.mxu0
      %v1257 = vadd.f32 %v956, %v1131
      %v1258 = vadd.f32 %v959, %v1134
      %v1259 = vadd.f32 %v964, %v1139
      %v1260 = vadd.f32 %v967, %v1142
      %v1261 = vadd.f32 %v972, %v1147
      %v1262 = vadd.f32 %v975, %v1150
      %v1263 = vadd.f32 %v980, %v1155
      %v1264 = vadd.f32 %v983, %v1158
      %v1265 = vadd.f32 %v988, %v1163
      %v1266 = vadd.f32 %v991, %v1166
      %v1267 = vadd.f32 %v996, %v1171
      %v1268 = vadd.f32 %v999, %v1174
      %v1269 = vadd.f32 %v1004, %v1179
      %v1270 = vadd.f32 %v1007, %v1182
      %v1271 = vadd.f32 %v1012, %v1187
      %v1272 = vadd.f32 %v1015, %v1190
      %v1273 = vadd.f32 %v1020, %v1195
      %v1274 = vadd.f32 %v1023, %v1198
      %v1275 = vadd.f32 %v1028, %v1203
      %v1276 = vadd.f32 %v1031, %v1206
      %v1277 = vadd.f32 %v1036, %v1211
      %v1278 = vadd.f32 %v1039, %v1214
      %v1279 = vadd.f32 %v1044, %v1219
      %v1280 = vadd.f32 %v1047, %v1222
      %v1281 = vadd.f32 %v1052, %v1227
      %v1282 = vadd.f32 %v1055, %v1230
      %v1283 = vadd.f32 %v1060, %v1235
      %v1284 = vadd.f32 %v1063, %v1238
      %v1285 = vadd.f32 %v1068, %v1243
      %v1286 = vadd.f32 %v1071, %v1246
      %v1287 = vadd.f32 %v1076, %v1251
      %v1288 = vadd.f32 %v1079, %v1254
      %s1289 = scalar_lea.vmem %s1, 16
      %v1290 = vld [vmem:[%s1289] sm:$0xf]
      %v1291 = vld [vmem:[%s1289 + $0x4] sm:$0x3]
      %v1294 = vunpack.c.l.b16 %v1290
      %v1295 = vunpack.c.l.b16 %v1291
      %v1296 = vpack.c.b16 %v1295, %v1294
      %v1298 = vsel %vm917, %v1296, 0
      %1300 = vmatprep.subr.bf16.mxu0 0
      %1301 = vmatpush1.bf16.msra.mxu0 %v1298
      %1302 = vmatprep.subr.bf16.mxu0 0
      %1303 = vmatpush1.bf16.msra.mxu0 0
      %1304 = vmatprep.subr.bf16.mxu0 0
      %1305 = vmatpush1.bf16.msra.mxu0 0
      %1306 = vmatprep.subr.bf16.mxu0 0
      %1307 = vmatpush1.bf16.msra.mxu0 0
      %1308 = vmatprep.subr.bf16.mxu0 0
      %1309 = vmatpush1.bf16.msra.mxu0 0
      %1310 = vmatprep.subr.bf16.mxu0 0
      %1311 = vmatpush1.bf16.msra.mxu0 0
      %1312 = vmatprep.subr.bf16.mxu0 0
      %1313 = vmatpush1.bf16.msra.mxu0 0
      %1314 = vmatprep.subr.bf16.mxu0 0
      %1315 = vmatpush1.bf16.msra.mxu0 0
      %1316 = vmatprep.subr.bf16.mxu0 0
      %1317 = vmatpush1.bf16.msra.mxu0 0
      %1318 = vmatprep.subr.bf16.mxu0 0
      %1319 = vmatpush1.bf16.msra.mxu0 0
      %1320 = vmatprep.subr.bf16.mxu0 0
      %1321 = vmatpush1.bf16.msra.mxu0 0
      %1322 = vmatprep.subr.bf16.mxu0 0
      %1323 = vmatpush1.bf16.msra.mxu0 0
      %1324 = vmatprep.subr.bf16.mxu0 0
      %1325 = vmatpush1.bf16.msra.mxu0 0
      %1326 = vmatprep.subr.bf16.mxu0 0
      %1327 = vmatpush1.bf16.msra.mxu0 0
      %1328 = vmatprep.subr.bf16.mxu0 0
      %1329 = vmatpush1.bf16.msra.mxu0 0
      %1330 = vmatprep.subr.bf16.mxu0 0
      %1331 = vmatpush1.bf16.msra.mxu0 0
      %1332 = vmatprep.mubr.bf16.mxu0 0
      %1333 = vmatmul.mubr.bf16.gmra.mrb[0].mxu0 %v876
      %v1334 = vpop.f32.mrb[0].mxu0
      %v1335 = vadd.f32 0.0, %v1334
      %v1336 = vpop.f32.mrb[0].mxu0
      %v1337 = vpop.f32.mrb[0].mxu0
      %v1338 = vadd.f32 0.0, %v1337
      %v1339 = vpop.f32.mrb[0].mxu0
      %1340 = vmatprep.mubr.bf16.mxu0 0
      %1341 = vmatmul.mubr.bf16.gmra.mrb[0].mxu0 %v879
      %v1342 = vpop.f32.mrb[0].mxu0
      %v1343 = vadd.f32 0.0, %v1342
      %v1344 = vpop.f32.mrb[0].mxu0
      %v1345 = vpop.f32.mrb[0].mxu0
      %v1346 = vadd.f32 0.0, %v1345
      %v1347 = vpop.f32.mrb[0].mxu0
      %1348 = vmatprep.mubr.bf16.mxu0 0
      %1349 = vmatmul.mubr.bf16.gmra.mrb[0].mxu0 %v882
      %v1350 = vpop.f32.mrb[0].mxu0
      %v1351 = vadd.f32 0.0, %v1350
      %v1352 = vpop.f32.mrb[0].mxu0
      %v1353 = vpop.f32.mrb[0].mxu0
      %v1354 = vadd.f32 0.0, %v1353
      %v1355 = vpop.f32.mrb[0].mxu0
      %1356 = vmatprep.mubr.bf16.mxu0 0
      %1357 = vmatmul.mubr.bf16.gmra.mrb[0].mxu0 %v885
      %v1358 = vpop.f32.mrb[0].mxu0
      %v1359 = vadd.f32 0.0, %v1358
      %v1360 = vpop.f32.mrb[0].mxu0
      %v1361 = vpop.f32.mrb[0].mxu0
      %v1362 = vadd.f32 0.0, %v1361
      %v1363 = vpop.f32.mrb[0].mxu0
      %1364 = vmatprep.mubr.bf16.mxu0 0
      %1365 = vmatmul.mubr.bf16.gmra.mrb[0].mxu0 %v888
      %v1366 = vpop.f32.mrb[0].mxu0
      %v1367 = vadd.f32 0.0, %v1366
      %v1368 = vpop.f32.mrb[0].mxu0
      %v1369 = vpop.f32.mrb[0].mxu0
      %v1370 = vadd.f32 0.0, %v1369
      %v1371 = vpop.f32.mrb[0].mxu0
      %1372 = vmatprep.mubr.bf16.mxu0 0
      %1373 = vmatmul.mubr.bf16.gmra.mrb[0].mxu0 %v891
      %v1374 = vpop.f32.mrb[0].mxu0
      %v1375 = vadd.f32 0.0, %v1374
      %v1376 = vpop.f32.mrb[0].mxu0
      %v1377 = vpop.f32.mrb[0].mxu0
      %v1378 = vadd.f32 0.0, %v1377
      %v1379 = vpop.f32.mrb[0].mxu0
      %1380 = vmatprep.mubr.bf16.mxu0 0
      %1381 = vmatmul.mubr.bf16.gmra.mrb[0].mxu0 %v894
      %v1382 = vpop.f32.mrb[0].mxu0
      %v1383 = vadd.f32 0.0, %v1382
      %v1384 = vpop.f32.mrb[0].mxu0
      %v1385 = vpop.f32.mrb[0].mxu0
      %v1386 = vadd.f32 0.0, %v1385
      %v1387 = vpop.f32.mrb[0].mxu0
      %1388 = vmatprep.mubr.bf16.mxu0 0
      %1389 = vmatmul.mubr.bf16.gmra.mrb[0].mxu0 %v897
      %v1390 = vpop.f32.mrb[0].mxu0
      %v1391 = vadd.f32 0.0, %v1390
      %v1392 = vpop.f32.mrb[0].mxu0
      %v1393 = vpop.f32.mrb[0].mxu0
      %v1394 = vadd.f32 0.0, %v1393
      %v1395 = vpop.f32.mrb[0].mxu0
      %1396 = vmatprep.mubr.bf16.mxu0 0
      %1397 = vmatmul.mubr.bf16.gmra.mrb[0].mxu0 %v900
      %v1398 = vpop.f32.mrb[0].mxu0
      %v1399 = vadd.f32 0.0, %v1398
      %v1400 = vpop.f32.mrb[0].mxu0
      %v1401 = vpop.f32.mrb[0].mxu0
      %v1402 = vadd.f32 0.0, %v1401
      %v1403 = vpop.f32.mrb[0].mxu0
      %1404 = vmatprep.mubr.bf16.mxu0 0
      %1405 = vmatmul.mubr.bf16.gmra.mrb[0].mxu0 %v903
      %v1406 = vpop.f32.mrb[0].mxu0
      %v1407 = vadd.f32 0.0, %v1406
      %v1408 = vpop.f32.mrb[0].mxu0
      %v1409 = vpop.f32.mrb[0].mxu0
      %v1410 = vadd.f32 0.0, %v1409
      %v1411 = vpop.f32.mrb[0].mxu0
      %1412 = vmatprep.mubr.bf16.mxu0 0
      %1413 = vmatmul.mubr.bf16.gmra.mrb[0].mxu0 %v906
      %v1414 = vpop.f32.mrb[0].mxu0
      %v1415 = vadd.f32 0.0, %v1414
      %v1416 = vpop.f32.mrb[0].mxu0
      %v1417 = vpop.f32.mrb[0].mxu0
      %v1418 = vadd.f32 0.0, %v1417
      %v1419 = vpop.f32.mrb[0].mxu0
      %1420 = vmatprep.mubr.bf16.mxu0 0
      %1421 = vmatmul.mubr.bf16.gmra.mrb[0].mxu0 %v909
      %v1422 = vpop.f32.mrb[0].mxu0
      %v1423 = vadd.f32 0.0, %v1422
      %v1424 = vpop.f32.mrb[0].mxu0
      %v1425 = vpop.f32.mrb[0].mxu0
      %v1426 = vadd.f32 0.0, %v1425
      %v1427 = vpop.f32.mrb[0].mxu0
      %1428 = vmatprep.mubr.bf16.mxu0 0
      %1429 = vmatmul.mubr.bf16.gmra.mrb[0].mxu0 %v912
      %v1430 = vpop.f32.mrb[0].mxu0
      %v1431 = vadd.f32 0.0, %v1430
      %v1432 = vpop.f32.mrb[0].mxu0
      %v1433 = vpop.f32.mrb[0].mxu0
      %v1434 = vadd.f32 0.0, %v1433
      %v1435 = vpop.f32.mrb[0].mxu0
      %1436 = vmatprep.mubr.bf16.mxu0 0
      %1437 = vmatmul.mubr.bf16.gmra.mrb[0].mxu0 %v915
      %v1438 = vpop.f32.mrb[0].mxu0
      %v1439 = vadd.f32 0.0, %v1438
      %v1440 = vpop.f32.mrb[0].mxu0
      %v1441 = vpop.f32.mrb[0].mxu0
      %v1442 = vadd.f32 0.0, %v1441
      %v1443 = vpop.f32.mrb[0].mxu0
      %1444 = vmatprep.mubr.bf16.mxu0 0
      %1445 = vmatmul.mubr.bf16.gmra.mrb[0].mxu0 %v1091
      %v1446 = vpop.f32.mrb[0].mxu0
      %v1447 = vadd.f32 0.0, %v1446
      %v1448 = vpop.f32.mrb[0].mxu0
      %v1449 = vpop.f32.mrb[0].mxu0
      %v1450 = vadd.f32 0.0, %v1449
      %v1451 = vpop.f32.mrb[0].mxu0
      %1452 = vmatprep.mubr.bf16.mxu0 0
      %1453 = vmatmul.mubr.bf16.gmra.mrb[0].mxu0 %v870
      %v1454 = vpop.f32.mrb[0].mxu0
      %v1455 = vadd.f32 0.0, %v1454
      %v1456 = vpop.f32.mrb[0].mxu0
      %v1457 = vpop.f32.mrb[0].mxu0
      %v1458 = vadd.f32 0.0, %v1457
      %v1459 = vpop.f32.mrb[0].mxu0
      %1460 = vdwg.mxu0
      %v1461 = vadd.f32 %v1257, %v1335
      %v1462 = vadd.f32 %v1258, %v1338
      %v1463 = vadd.f32 %v1259, %v1343
      %v1464 = vadd.f32 %v1260, %v1346
      %v1465 = vadd.f32 %v1261, %v1351
      %v1466 = vadd.f32 %v1262, %v1354
      %v1467 = vadd.f32 %v1263, %v1359
      %v1468 = vadd.f32 %v1264, %v1362
      %v1469 = vadd.f32 %v1265, %v1367
      %v1470 = vadd.f32 %v1266, %v1370
      %v1471 = vadd.f32 %v1267, %v1375
      %v1472 = vadd.f32 %v1268, %v1378
      %v1473 = vadd.f32 %v1269, %v1383
      %v1474 = vadd.f32 %v1270, %v1386
      %v1475 = vadd.f32 %v1271, %v1391
      %v1476 = vadd.f32 %v1272, %v1394
      %v1477 = vadd.f32 %v1273, %v1399
      %v1478 = vadd.f32 %v1274, %v1402
      %v1479 = vadd.f32 %v1275, %v1407
      %v1480 = vadd.f32 %v1276, %v1410
      %v1481 = vadd.f32 %v1277, %v1415
      %v1482 = vadd.f32 %v1278, %v1418
      %v1483 = vadd.f32 %v1279, %v1423
      %v1484 = vadd.f32 %v1280, %v1426
      %v1485 = vadd.f32 %v1281, %v1431
      %v1486 = vadd.f32 %v1282, %v1434
      %v1487 = vadd.f32 %v1283, %v1439
      %v1488 = vadd.f32 %v1284, %v1442
      %v1489 = vadd.f32 %v1285, %v1447
      %v1490 = vadd.f32 %v1286, %v1450
      %v1491 = vadd.f32 %v1287, %v1455
      %v1492 = vadd.f32 %v1288, %v1458
      %v1493 = vpack.c.bf16 %v1462, %v1461
      %v1494 = vpack.c.bf16 %v1464, %v1463
      %v1495 = vpack.c.bf16 %v1466, %v1465
      %v1496 = vpack.c.bf16 %v1468, %v1467
      %v1497 = vpack.c.bf16 %v1470, %v1469
      %v1498 = vpack.c.bf16 %v1472, %v1471
      %v1499 = vpack.c.bf16 %v1474, %v1473
      %v1500 = vpack.c.bf16 %v1476, %v1475
      %v1501 = vpack.c.bf16 %v1478, %v1477
      %v1502 = vpack.c.bf16 %v1480, %v1479
      %v1503 = vpack.c.bf16 %v1482, %v1481
      %v1504 = vpack.c.bf16 %v1484, %v1483
      %v1505 = vpack.c.bf16 %v1486, %v1485
      %v1506 = vpack.c.bf16 %v1488, %v1487
      %v1507 = vpack.c.bf16 %v1490, %v1489
      %v1508 = vpack.c.bf16 %v1492, %v1491
      %v1525 = vunpack.c.l.b16 %v1493
      %v1526 = vunpack.c.h.b16 %v1493
      %v1527 = vunpack.c.l.b16 %v1494
      %v1528 = vunpack.c.h.b16 %v1494
      %v1529 = vunpack.c.l.b16 %v1495
      %v1530 = vunpack.c.h.b16 %v1495
      %v1531 = vunpack.c.l.b16 %v1496
      %v1532 = vunpack.c.h.b16 %v1496
      %v1533 = vunpack.c.l.b16 %v1497
      %v1534 = vunpack.c.h.b16 %v1497
      %v1535 = vunpack.c.l.b16 %v1498
      %v1536 = vunpack.c.h.b16 %v1498
      %v1537 = vunpack.c.l.b16 %v1499
      %v1538 = vunpack.c.h.b16 %v1499
      %v1539 = vunpack.c.l.b16 %v1500
      %v1540 = vunpack.c.h.b16 %v1500
      %v1541 = vunpack.c.l.b16 %v1501
      %v1542 = vunpack.c.h.b16 %v1501
      %v1543 = vunpack.c.l.b16 %v1502
      %v1544 = vunpack.c.h.b16 %v1502
      %v1545 = vunpack.c.l.b16 %v1503
      %v1546 = vunpack.c.h.b16 %v1503
      %v1547 = vunpack.c.l.b16 %v1504
      %v1548 = vunpack.c.h.b16 %v1504
      %v1549 = vunpack.c.l.b16 %v1505
      %v1550 = vunpack.c.h.b16 %v1505
      %v1551 = vunpack.c.l.b16 %v1506
      %v1552 = vunpack.c.h.b16 %v1506
      %v1553 = vunpack.c.l.b16 %v1507
      %v1554 = vunpack.c.h.b16 %v1507
      %v1555 = vunpack.c.l.b16 %v1508
      %v1556 = vunpack.c.h.b16 %v1508
      %v1557 = vpack.c.b16 %v1525, %v1525
      %v1558 = vpack.c.b16 %v1526, %v1526
      %v1559 = vpack.c.b16 %v1527, %v1527
      %v1560 = vpack.c.b16 %v1528, %v1528
      %v1561 = vpack.c.b16 %v1529, %v1529
      %v1562 = vpack.c.b16 %v1530, %v1530
      %v1563 = vpack.c.b16 %v1531, %v1531
      %v1564 = vpack.c.b16 %v1532, %v1532
      %v1565 = vpack.c.b16 %v1533, %v1533
      %v1566 = vpack.c.b16 %v1534, %v1534
      %v1567 = vpack.c.b16 %v1535, %v1535
      %v1568 = vpack.c.b16 %v1536, %v1536
      %v1569 = vpack.c.b16 %v1537, %v1537
      %v1570 = vpack.c.b16 %v1538, %v1538
      %v1571 = vpack.c.b16 %v1539, %v1539
      %v1572 = vpack.c.b16 %v1540, %v1540
      %v1573 = vpack.c.b16 %v1541, %v1541
      %v1574 = vpack.c.b16 %v1542, %v1542
      %v1575 = vpack.c.b16 %v1543, %v1543
      %v1576 = vpack.c.b16 %v1544, %v1544
      %v1577 = vpack.c.b16 %v1545, %v1545
      %v1578 = vpack.c.b16 %v1546, %v1546
      %v1579 = vpack.c.b16 %v1547, %v1547
      %v1580 = vpack.c.b16 %v1548, %v1548
      %v1581 = vpack.c.b16 %v1549, %v1549
      %v1582 = vpack.c.b16 %v1550, %v1550
      %v1583 = vpack.c.b16 %v1551, %v1551
      %v1584 = vpack.c.b16 %v1552, %v1552
      %v1585 = vpack.c.b16 %v1553, %v1553
      %v1586 = vpack.c.b16 %v1554, %v1554
      %v1587 = vpack.c.b16 %v1555, %v1555
      %v1588 = vpack.c.b16 %v1556, %v1556
      %vm1621 = vcmask 257024
      %1622 = vst.msk [vmem:[%s289] sm:$0xf] %vm1621, %v1557
      %1623 = vst.msk [vmem:[%s289 + $0x4] sm:$0xf] %vm1621, %v1558
      %1624 = vst.msk [vmem:[%s289 + $0x8] sm:$0xf] %vm1621, %v1559
      %1625 = vst.msk [vmem:[%s289 + $0xc] sm:$0xf] %vm1621, %v1560
      %1626 = vst.msk [vmem:[%s289 + $0x10] sm:$0xf] %vm1621, %v1561
      %1627 = vst.msk [vmem:[%s289 + $0x14] sm:$0xf] %vm1621, %v1562
      %1628 = vst.msk [vmem:[%s289 + $0x18] sm:$0xf] %vm1621, %v1563
      %1629 = vst.msk [vmem:[%s289 + $0x1c] sm:$0xf] %vm1621, %v1564
      %1630 = vst.msk [vmem:[%s289 + $0x20] sm:$0xf] %vm1621, %v1565
      %1631 = vst.msk [vmem:[%s289 + $0x24] sm:$0xf] %vm1621, %v1566
      %1632 = vst.msk [vmem:[%s289 + $0x28] sm:$0xf] %vm1621, %v1567
      %1633 = vst.msk [vmem:[%s289 + $0x2c] sm:$0xf] %vm1621, %v1568
      %1634 = vst.msk [vmem:[%s289 + $0x30] sm:$0xf] %vm1621, %v1569
      %1635 = vst.msk [vmem:[%s289 + $0x34] sm:$0xf] %vm1621, %v1570
      %1636 = vst.msk [vmem:[%s289 + $0x38] sm:$0xf] %vm1621, %v1571
      %1637 = vst.msk [vmem:[%s289 + $0x3c] sm:$0xf] %vm1621, %v1572
      %1638 = vst.msk [vmem:[%s289 + $0x40] sm:$0xf] %vm1621, %v1573
      %1639 = vst.msk [vmem:[%s289 + $0x44] sm:$0xf] %vm1621, %v1574
      %1640 = vst.msk [vmem:[%s289 + $0x48] sm:$0xf] %vm1621, %v1575
      %1641 = vst.msk [vmem:[%s289 + $0x4c] sm:$0xf] %vm1621, %v1576
      %1642 = vst.msk [vmem:[%s289 + $0x50] sm:$0xf] %vm1621, %v1577
      %1643 = vst.msk [vmem:[%s289 + $0x54] sm:$0xf] %vm1621, %v1578
      %1644 = vst.msk [vmem:[%s289 + $0x58] sm:$0xf] %vm1621, %v1579
      %1645 = vst.msk [vmem:[%s289 + $0x5c] sm:$0xf] %vm1621, %v1580
      %1646 = vst.msk [vmem:[%s289 + $0x60] sm:$0xf] %vm1621, %v1581
      %1647 = vst.msk [vmem:[%s289 + $0x64] sm:$0xf] %vm1621, %v1582
      %1648 = vst.msk [vmem:[%s289 + $0x68] sm:$0xf] %vm1621, %v1583
      %1649 = vst.msk [vmem:[%s289 + $0x6c] sm:$0xf] %vm1621, %v1584
      %1650 = vst.msk [vmem:[%s289 + $0x70] sm:$0xf] %vm1621, %v1585
      %1651 = vst.msk [vmem:[%s289 + $0x74] sm:$0xf] %vm1621, %v1586
      %1652 = vst.msk [vmem:[%s289 + $0x78] sm:$0xf] %vm1621, %v1587
      %1653 = vst.msk [vmem:[%s289 + $0x7c] sm:$0xf] %vm1621, %v1588
      %vm1654 = vcmask 261120
      %v1655 = vsel %vm1654, %v1461, 0.0
      %v1656 = vsel %vm1654, %v1462, 0.0
      %v1657 = vadd.f32 %v1655, %v1656
      %v1658 = vsel %vm1654, %v1463, 0.0
      %v1659 = vadd.f32 %v1657, %v1658
      %v1660 = vsel %vm1654, %v1464, 0.0
      %v1661 = vadd.f32 %v1659, %v1660
      %v1662 = vsel %vm1654, %v1465, 0.0
      %v1663 = vadd.f32 %v1661, %v1662
      %v1664 = vsel %vm1654, %v1466, 0.0
      %v1665 = vadd.f32 %v1663, %v1664
      %v1666 = vsel %vm1654, %v1467, 0.0
      %v1667 = vadd.f32 %v1665, %v1666
      %v1668 = vsel %vm1654, %v1468, 0.0
      %v1669 = vadd.f32 %v1667, %v1668
      %v1670 = vsel %vm1654, %v1469, 0.0
      %v1671 = vadd.f32 %v1669, %v1670
      %v1672 = vsel %vm1654, %v1470, 0.0
      %v1673 = vadd.f32 %v1671, %v1672
      %v1674 = vsel %vm1654, %v1471, 0.0
      %v1675 = vadd.f32 %v1673, %v1674
      %v1676 = vsel %vm1654, %v1472, 0.0
      %v1677 = vadd.f32 %v1675, %v1676
      %v1678 = vsel %vm1654, %v1473, 0.0
      %v1679 = vadd.f32 %v1677, %v1678
      %v1680 = vsel %vm1654, %v1474, 0.0
      %v1681 = vadd.f32 %v1679, %v1680
      %v1682 = vsel %vm1654, %v1475, 0.0
      %v1683 = vadd.f32 %v1681, %v1682
      %v1684 = vsel %vm1654, %v1476, 0.0
      %v1685 = vadd.f32 %v1683, %v1684
      %v1686 = vsel %vm1654, %v1477, 0.0
      %v1687 = vadd.f32 %v1685, %v1686
      %v1688 = vsel %vm1654, %v1478, 0.0
      %v1689 = vadd.f32 %v1687, %v1688
      %v1690 = vsel %vm1654, %v1479, 0.0
      %v1691 = vadd.f32 %v1689, %v1690
      %v1692 = vsel %vm1654, %v1480, 0.0
      %v1693 = vadd.f32 %v1691, %v1692
      %v1694 = vsel %vm1654, %v1481, 0.0
      %v1695 = vadd.f32 %v1693, %v1694
      %v1696 = vsel %vm1654, %v1482, 0.0
      %v1697 = vadd.f32 %v1695, %v1696
      %v1698 = vsel %vm1654, %v1483, 0.0
      %v1699 = vadd.f32 %v1697, %v1698
      %v1700 = vsel %vm1654, %v1484, 0.0
      %v1701 = vadd.f32 %v1699, %v1700
      %v1702 = vsel %vm1654, %v1485, 0.0
      %v1703 = vadd.f32 %v1701, %v1702
      %v1704 = vsel %vm1654, %v1486, 0.0
      %v1705 = vadd.f32 %v1703, %v1704
      %v1706 = vsel %vm1654, %v1487, 0.0
      %v1707 = vadd.f32 %v1705, %v1706
      %v1708 = vsel %vm1654, %v1488, 0.0
      %v1709 = vadd.f32 %v1707, %v1708
      %v1710 = vsel %vm1654, %v1489, 0.0
      %v1711 = vadd.f32 %v1709, %v1710
      %v1712 = vsel %vm1654, %v1490, 0.0
      %v1713 = vadd.f32 %v1711, %v1712
      %v1714 = vsel %vm1654, %v1491, 0.0
      %v1715 = vadd.f32 %v1713, %v1714
      %v1716 = vsel %vm1654, %v1492, 0.0
      %v1717 = vadd.f32 %v1715, %v1716
      %v1718 = vrot.slane %v1717, 4
      %v1719 = vadd.f32 %v1717, %v1718
      %v1720 = vrot.slane %v1719, 2
      %v1721 = vadd.f32 %v1719, %v1720
      %v1722 = vrot.slane %v1721, 1
      %v1723 = vadd.f32 %v1721, %v1722
      %vm1724 = vcmask 253952
      %1725 = vst.msk [vmem:[%s292] sm:$0x1] %vm1724, %v1723
      %v1726 = vmul.f32 %v1461, %v1461
      %v1727 = vmul.f32 %v1462, %v1462
      %v1728 = vmul.f32 %v1463, %v1463
      %v1729 = vmul.f32 %v1464, %v1464
      %v1730 = vmul.f32 %v1465, %v1465
      %v1731 = vmul.f32 %v1466, %v1466
      %v1732 = vmul.f32 %v1467, %v1467
      %v1733 = vmul.f32 %v1468, %v1468
      %v1734 = vmul.f32 %v1469, %v1469
      %v1735 = vmul.f32 %v1470, %v1470
      %v1736 = vmul.f32 %v1471, %v1471
      %v1737 = vmul.f32 %v1472, %v1472
      %v1738 = vmul.f32 %v1473, %v1473
      %v1739 = vmul.f32 %v1474, %v1474
      %v1740 = vmul.f32 %v1475, %v1475
      %v1741 = vmul.f32 %v1476, %v1476
      %v1742 = vmul.f32 %v1477, %v1477
      %v1743 = vmul.f32 %v1478, %v1478
      %v1744 = vmul.f32 %v1479, %v1479
      %v1745 = vmul.f32 %v1480, %v1480
      %v1746 = vmul.f32 %v1481, %v1481
      %v1747 = vmul.f32 %v1482, %v1482
      %v1748 = vmul.f32 %v1483, %v1483
      %v1749 = vmul.f32 %v1484, %v1484
      %v1750 = vmul.f32 %v1485, %v1485
      %v1751 = vmul.f32 %v1486, %v1486
      %v1752 = vmul.f32 %v1487, %v1487
      %v1753 = vmul.f32 %v1488, %v1488
      %v1754 = vmul.f32 %v1489, %v1489
      %v1755 = vmul.f32 %v1490, %v1490
      %v1756 = vmul.f32 %v1491, %v1491
      %v1757 = vmul.f32 %v1492, %v1492
      %v1758 = vsel %vm1654, %v1726, 0.0
      %v1759 = vsel %vm1654, %v1727, 0.0
      %v1760 = vadd.f32 %v1758, %v1759
      %v1761 = vsel %vm1654, %v1728, 0.0
      %v1762 = vadd.f32 %v1760, %v1761
      %v1763 = vsel %vm1654, %v1729, 0.0
      %v1764 = vadd.f32 %v1762, %v1763
      %v1765 = vsel %vm1654, %v1730, 0.0
      %v1766 = vadd.f32 %v1764, %v1765
      %v1767 = vsel %vm1654, %v1731, 0.0
      %v1768 = vadd.f32 %v1766, %v1767
      %v1769 = vsel %vm1654, %v1732, 0.0
      %v1770 = vadd.f32 %v1768, %v1769
      %v1771 = vsel %vm1654, %v1733, 0.0
      %v1772 = vadd.f32 %v1770, %v1771
      %v1773 = vsel %vm1654, %v1734, 0.0
      %v1774 = vadd.f32 %v1772, %v1773
      %v1775 = vsel %vm1654, %v1735, 0.0
      %v1776 = vadd.f32 %v1774, %v1775
      %v1777 = vsel %vm1654, %v1736, 0.0
      %v1778 = vadd.f32 %v1776, %v1777
      %v1779 = vsel %vm1654, %v1737, 0.0
      %v1780 = vadd.f32 %v1778, %v1779
      %v1781 = vsel %vm1654, %v1738, 0.0
      %v1782 = vadd.f32 %v1780, %v1781
      %v1783 = vsel %vm1654, %v1739, 0.0
      %v1784 = vadd.f32 %v1782, %v1783
      %v1785 = vsel %vm1654, %v1740, 0.0
      %v1786 = vadd.f32 %v1784, %v1785
      %v1787 = vsel %vm1654, %v1741, 0.0
      %v1788 = vadd.f32 %v1786, %v1787
      %v1789 = vsel %vm1654, %v1742, 0.0
      %v1790 = vadd.f32 %v1788, %v1789
      %v1791 = vsel %vm1654, %v1743, 0.0
      %v1792 = vadd.f32 %v1790, %v1791
      %v1793 = vsel %vm1654, %v1744, 0.0
      %v1794 = vadd.f32 %v1792, %v1793
      %v1795 = vsel %vm1654, %v1745, 0.0
      %v1796 = vadd.f32 %v1794, %v1795
      %v1797 = vsel %vm1654, %v1746, 0.0
      %v1798 = vadd.f32 %v1796, %v1797
      %v1799 = vsel %vm1654, %v1747, 0.0
      %v1800 = vadd.f32 %v1798, %v1799
      %v1801 = vsel %vm1654, %v1748, 0.0
      %v1802 = vadd.f32 %v1800, %v1801
      %v1803 = vsel %vm1654, %v1749, 0.0
      %v1804 = vadd.f32 %v1802, %v1803
      %v1805 = vsel %vm1654, %v1750, 0.0
      %v1806 = vadd.f32 %v1804, %v1805
      %v1807 = vsel %vm1654, %v1751, 0.0
      %v1808 = vadd.f32 %v1806, %v1807
      %v1809 = vsel %vm1654, %v1752, 0.0
      %v1810 = vadd.f32 %v1808, %v1809
      %v1811 = vsel %vm1654, %v1753, 0.0
      %v1812 = vadd.f32 %v1810, %v1811
      %v1813 = vsel %vm1654, %v1754, 0.0
      %v1814 = vadd.f32 %v1812, %v1813
      %v1815 = vsel %vm1654, %v1755, 0.0
      %v1816 = vadd.f32 %v1814, %v1815
      %v1817 = vsel %vm1654, %v1756, 0.0
      %v1818 = vadd.f32 %v1816, %v1817
      %v1819 = vsel %vm1654, %v1757, 0.0
      %v1820 = vadd.f32 %v1818, %v1819
      %v1821 = vrot.slane %v1820, 4
      %v1822 = vadd.f32 %v1820, %v1821
      %v1823 = vrot.slane %v1822, 2
      %v1824 = vadd.f32 %v1822, %v1823
      %v1825 = vrot.slane %v1824, 1
      %v1826 = vadd.f32 %v1824, %v1825
      %1827 = vst.msk [vmem:[%s295] sm:$0x1] %vm1724, %v1826
      %p1828 = scmp.lt.s32.totalorder %s19, 1
      %s1829 = scalar_select %p1828, %s19, 1
      %s1830 = smul.addr %s1829, 32
      %s1831 = smul.addr %s1830, 4
      %s1832 = scalar_lea.vmem %s5, %s1831
      %p1833 = scmp.lt.s32.totalorder %s19, 1
      %s1834 = scalar_select %p1833, %s19, 1
      %s1835 = scalar_lea.vmem %s6, %s1834
      %p1836 = scmp.lt.s32.totalorder %s19, 1
      %s1837 = scalar_select %p1836, %s19, 1
      %s1838 = scalar_lea.vmem %s7, %s1837
      // Predicated region
      $region41: #{_lambda_.5} parent=39 // pred_check
        %p1839 = pneg %p147
      $region42: #{_lambda_.5} parent=39 // pred_check_branch
        %1841 = sbr.rel (%p1839) target = $region44
      $region43: #{_lambda_.5} parent=39 // pred_region
        _
      $region44: #{_lambda_.5} parent=39 // pred_fallthru
        _
      // Predicated region
      $region45: #{_lambda_.5} parent=39 // pred_check
        %p1842 = pneg %p173
      $region46: #{_lambda_.5} parent=39 // pred_check_branch
        %1844 = sbr.rel (%p1842) target = $region48
      $region47: #{_lambda_.5} parent=39 // pred_region
        _
      $region48: #{_lambda_.5} parent=39 // pred_fallthru
        _
      // Predicated region
      $region49: #{_lambda_.5} parent=39 // pred_check
        %p1845 = pneg %p199
      $region50: #{_lambda_.5} parent=39 // pred_check_branch
        %1847 = sbr.rel (%p1845) target = $region52
      $region51: #{_lambda_.5} parent=39 // pred_region
        _
      $region52: #{_lambda_.5} parent=39 // pred_fallthru
        _
    $region40: #{_lambda_.5} parent=5 // pred_fallthru
      _
    %p1848 = scmp.le.s32.totalorder 2, %s14
    // Predicated region
    $region53: #{_lambda_.5} parent=5 // pred_check
      %p1849 = pneg %p1848
    $region54: #{_lambda_.5} parent=5 // pred_check_branch
      %1851 = sbr.rel (%p1849) target = $region56
    $region55: #{_lambda_.5} parent=5 // pred_region
      %s1852 = ssub.s32 %s14, 2
      // Predicated region
      $region57: #{_lambda_.5} parent=55 // pred_check
        %p1853 = pneg %p153
      $region58: #{_lambda_.5} parent=55 // pred_check_branch
        %1855 = sbr.rel (%p1853) target = $region60
      $region59: #{_lambda_.5} parent=55 // pred_region
        %p1856 = scmp.lt.s32.totalorder %s20, 1
        %s1857 = scalar_select %p1856, %s20, 1
        %s1858 = smul.addr %s1857, 32
        %s1859 = smul.addr %s1858, 4
        %s1860 = scalar_lea.vmem %s5, %s1859
      $region60: #{_lambda_.5} parent=55 // pred_fallthru
        _
      // Predicated region
      $region61: #{_lambda_.5} parent=55 // pred_check
        %p1861 = pneg %p179
      $region62: #{_lambda_.5} parent=55 // pred_check_branch
        %1863 = sbr.rel (%p1861) target = $region64
      $region63: #{_lambda_.5} parent=55 // pred_region
        %p1864 = scmp.lt.s32.totalorder %s20, 1
        %s1865 = scalar_select %p1864, %s20, 1
        %s1866 = scalar_lea.vmem %s6, %s1865
      $region64: #{_lambda_.5} parent=55 // pred_fallthru
        _
      // Predicated region
      $region65: #{_lambda_.5} parent=55 // pred_check
        %p1867 = pneg %p205
      $region66: #{_lambda_.5} parent=55 // pred_check_branch
        %1869 = sbr.rel (%p1867) target = $region68
      $region67: #{_lambda_.5} parent=55 // pred_region
        %p1870 = scmp.lt.s32.totalorder %s20, 1
        %s1871 = scalar_select %p1870, %s20, 1
        %s1872 = scalar_lea.vmem %s7, %s1871
      $region68: #{_lambda_.5} parent=55 // pred_fallthru
        _
    $region56: #{_lambda_.5} parent=5 // pred_fallthru
      _
  $region6: #{_lambda_.5} parent=0 // loop_footer
    %s18 = sadd.s32 1, %s14
  $region7: #{_lambda_.5} parent=0 // loop_footer_branch
    %13 = sbr.rel target = $region3
  $region8: #{_lambda_.5} parent=0 // loop_exit
    _

// kernel: _lambda_.6
$region0: #{_lambda_.6}
  #allocation0 [shape = 'u32[]', space=smem, size = 0x4, offset = 0x4, fixed_abs, tag = 'smem constant byte address 0x4 - core index']
  #allocation1 [shape = 'u32[144,128]{1,0:T(1,128)}', space=vmem, size = 0x12000, scoped, tag = 'internal scratch']
  %s0 = inlined_call_operand.vmem [shape: bf16[2,16,16,32], index: 0, kind: input, shape index: {}]
  %s1 = inlined_call_operand.vmem [shape: bf16[3,96,32], index: 1, kind: input, shape index: {}]
  %s2 = inlined_call_operand.vmem [shape: f32[1,32], index: 2, kind: input, shape index: {}]
  %s3 = inlined_call_operand.vmem [shape: f32[1,1,32], index: 3, kind: input, shape index: {}]
  %s4 = inlined_call_operand.vmem [shape: f32[1,1,32], index: 4, kind: input, shape index: {}]
  %s5 = inlined_call_operand.vmem [shape: bf16[2,256,32], index: 5, kind: output, shape index: {0}]
  %s6 = inlined_call_operand.vmem [shape: f32[2,1,32], index: 6, kind: output, shape index: {1}]
  %s7 = inlined_call_operand.vmem [shape: f32[2,1,32], index: 7, kind: output, shape index: {2}]
  %8 = xla_tuple %s5, %s6, %s7
  %s9 = sld [smem:[#allocation0]]
  $region69: #{_lambda_.6} parent=0
    _
  %s11 = ssub.s32 1, %s9
  %s12 = scalar_select 0, %s11, %s9
  loop: start=0, step=1, limit=4
  $region2: #{_lambda_.6} parent=0 // loop_pre_header
    _
  $region3: #{_lambda_.6} parent=0 // loop_header
    %s14 = sphi 0, %s18
    %p15 = scmp.ge.s32.totalorder %s14, 4
    %s24 = sphi 0, %s26
    %s27 = sphi 0, %s24
    %s28 = sphi 0, %s27
    %s44 = sphi 0, %s28
    %s48 = sphi 0, %s48
    %s50 = sphi 0, %s48
    %s51 = sphi 0, %s50
    %s65 = sphi 0, %s51
    %s69 = sphi 0, %s69
    %s71 = sphi 0, %s69
    %s72 = sphi 0, %s71
    %s86 = sphi 0, %s72
    %s90 = sphi 0, %s90
    %s92 = sphi 0, %s90
    %s93 = sphi 0, %s92
    %s107 = sphi 0, %s93
    %s111 = sphi 0, %s111
    %s113 = sphi 0, %s111
    %s114 = sphi 0, %s113
    %s128 = sphi 0, %s114
    %s134 = sphi 0, %s136
    %s137 = sphi 0, %s134
    %s138 = sphi 0, %s137
    %s154 = sphi 0, %s138
    %s160 = sphi 0, %s162
    %s163 = sphi 0, %s160
    %s164 = sphi 0, %s163
    %s180 = sphi 0, %s164
    %s186 = sphi 0, %s188
    %s189 = sphi 0, %s186
    %s190 = sphi 0, %s189
    %s206 = sphi 0, %s190
  $region4: #{_lambda_.6} parent=0 // loop_header_branch
    %17 = sbr.rel (%p15) target = $region8
  $region5: #{_lambda_.6} parent=0 // loop_body
    %s19 = ssub.s32 %s14, 1
    %s20 = ssub.s32 %s14, 2
    %s21 = sadd.s32 %s14, 1
    %s22 = ssub.s32 %s14, %s21
    %p23 = scmp.eq.s32.totalorder %s22, 0
    %s25 = sadd.s32 %s24, 1
    %s26 = scalar_select %p23, %s24, %s25
    %p29 = pneg %p23
    %p30 = scmp.eq.s32.totalorder %s14, 1
    %p31 = por %p29, %p30
    %p32 = scmp.ne.s32.totalorder %s24, %s27
    %p33 = scmp.eq.s32.totalorder %s14, 0
    %p34 = por %p32, %p33
    %p35 = scmp.ne.s32.totalorder %s24, %s27
    %p36 = scmp.eq.s32.totalorder %s19, 1
    %p37 = por %p35, %p36
    %p38 = scmp.ne.s32.totalorder %s27, %s28
    %p39 = scmp.eq.s32.totalorder %s19, 0
    %p40 = por %p38, %p39
    %p41 = scmp.ne.s32.totalorder %s27, %s28
    %p42 = scmp.eq.s32.totalorder %s20, 1
    %p43 = por %p41, %p42
    %p45 = scmp.ne.s32.totalorder %s28, %s44
    %p46 = scmp.eq.s32.totalorder %s20, 0
    %p47 = por %p45, %p46
    %s49 = sadd.s32 %s48, 1
    %p52 = scmp.eq.s32.totalorder %s14, 1
    %p53 = scmp.ne.s32.totalorder %s48, %s50
    %p54 = scmp.eq.s32.totalorder %s14, 0
    %p55 = por %p53, %p54
    %p56 = scmp.ne.s32.totalorder %s48, %s50
    %p57 = scmp.eq.s32.totalorder %s19, 1
    %p58 = por %p56, %p57
    %p59 = scmp.ne.s32.totalorder %s50, %s51
    %p60 = scmp.eq.s32.totalorder %s19, 0
    %p61 = por %p59, %p60
    %p62 = scmp.ne.s32.totalorder %s50, %s51
    %p63 = scmp.eq.s32.totalorder %s20, 1
    %p64 = por %p62, %p63
    %p66 = scmp.ne.s32.totalorder %s51, %s65
    %p67 = scmp.eq.s32.totalorder %s20, 0
    %p68 = por %p66, %p67
    %s70 = sadd.s32 %s69, 1
    %p73 = scmp.eq.s32.totalorder %s14, 1
    %p74 = scmp.ne.s32.totalorder %s69, %s71
    %p75 = scmp.eq.s32.totalorder %s14, 0
    %p76 = por %p74, %p75
    %p77 = scmp.ne.s32.totalorder %s69, %s71
    %p78 = scmp.eq.s32.totalorder %s19, 1
    %p79 = por %p77, %p78
    %p80 = scmp.ne.s32.totalorder %s71, %s72
    %p81 = scmp.eq.s32.totalorder %s19, 0
    %p82 = por %p80, %p81
    %p83 = scmp.ne.s32.totalorder %s71, %s72
    %p84 = scmp.eq.s32.totalorder %s20, 1
    %p85 = por %p83, %p84
    %p87 = scmp.ne.s32.totalorder %s72, %s86
    %p88 = scmp.eq.s32.totalorder %s20, 0
    %p89 = por %p87, %p88
    %s91 = sadd.s32 %s90, 1
    %p94 = scmp.eq.s32.totalorder %s14, 1
    %p95 = scmp.ne.s32.totalorder %s90, %s92
    %p96 = scmp.eq.s32.totalorder %s14, 0
    %p97 = por %p95, %p96
    %p98 = scmp.ne.s32.totalorder %s90, %s92
    %p99 = scmp.eq.s32.totalorder %s19, 1
    %p100 = por %p98, %p99
    %p101 = scmp.ne.s32.totalorder %s92, %s93
    %p102 = scmp.eq.s32.totalorder %s19, 0
    %p103 = por %p101, %p102
    %p104 = scmp.ne.s32.totalorder %s92, %s93
    %p105 = scmp.eq.s32.totalorder %s20, 1
    %p106 = por %p104, %p105
    %p108 = scmp.ne.s32.totalorder %s93, %s107
    %p109 = scmp.eq.s32.totalorder %s20, 0
    %p110 = por %p108, %p109
    %s112 = sadd.s32 %s111, 1
    %p115 = scmp.eq.s32.totalorder %s14, 1
    %p116 = scmp.ne.s32.totalorder %s111, %s113
    %p117 = scmp.eq.s32.totalorder %s14, 0
    %p118 = por %p116, %p117
    %p119 = scmp.ne.s32.totalorder %s111, %s113
    %p120 = scmp.eq.s32.totalorder %s19, 1
    %p121 = por %p119, %p120
    %p122 = scmp.ne.s32.totalorder %s113, %s114
    %p123 = scmp.eq.s32.totalorder %s19, 0
    %p124 = por %p122, %p123
    %p125 = scmp.ne.s32.totalorder %s113, %s114
    %p126 = scmp.eq.s32.totalorder %s20, 1
    %p127 = por %p125, %p126
    %p129 = scmp.ne.s32.totalorder %s114, %s128
    %p130 = scmp.eq.s32.totalorder %s20, 0
    %p131 = por %p129, %p130
    %s132 = ssub.s32 %s14, %s21
    %p133 = scmp.eq.s32.totalorder %s132, 0
    %s135 = sadd.s32 %s134, 1
    %s136 = scalar_select %p133, %s134, %s135
    %p139 = pneg %p133
    %p140 = scmp.eq.s32.totalorder %s14, 1
    %p141 = por %p139, %p140
    %p142 = scmp.ne.s32.totalorder %s134, %s137
    %p143 = scmp.eq.s32.totalorder %s14, 0
    %p144 = por %p142, %p143
    %p145 = scmp.ne.s32.totalorder %s134, %s137
    %p146 = scmp.eq.s32.totalorder %s19, 1
    %p147 = por %p145, %p146
    %p148 = scmp.ne.s32.totalorder %s137, %s138
    %p149 = scmp.eq.s32.totalorder %s19, 0
    %p150 = por %p148, %p149
    %p151 = scmp.ne.s32.totalorder %s137, %s138
    %p152 = scmp.eq.s32.totalorder %s20, 1
    %p153 = por %p151, %p152
    %p155 = scmp.ne.s32.totalorder %s138, %s154
    %p156 = scmp.eq.s32.totalorder %s20, 0
    %p157 = por %p155, %p156
    %s158 = ssub.s32 %s14, %s21
    %p159 = scmp.eq.s32.totalorder %s158, 0
    %s161 = sadd.s32 %s160, 1
    %s162 = scalar_select %p159, %s160, %s161
    %p165 = pneg %p159
    %p166 = scmp.eq.s32.totalorder %s14, 1
    %p167 = por %p165, %p166
    %p168 = scmp.ne.s32.totalorder %s160, %s163
    %p169 = scmp.eq.s32.totalorder %s14, 0
    %p170 = por %p168, %p169
    %p171 = scmp.ne.s32.totalorder %s160, %s163
    %p172 = scmp.eq.s32.totalorder %s19, 1
    %p173 = por %p171, %p172
    %p174 = scmp.ne.s32.totalorder %s163, %s164
    %p175 = scmp.eq.s32.totalorder %s19, 0
    %p176 = por %p174, %p175
    %p177 = scmp.ne.s32.totalorder %s163, %s164
    %p178 = scmp.eq.s32.totalorder %s20, 1
    %p179 = por %p177, %p178
    %p181 = scmp.ne.s32.totalorder %s164, %s180
    %p182 = scmp.eq.s32.totalorder %s20, 0
    %p183 = por %p181, %p182
    %s184 = ssub.s32 %s14, %s21
    %p185 = scmp.eq.s32.totalorder %s184, 0
    %s187 = sadd.s32 %s186, 1
    %s188 = scalar_select %p185, %s186, %s187
    %p191 = pneg %p185
    %p192 = scmp.eq.s32.totalorder %s14, 1
    %p193 = por %p191, %p192
    %p194 = scmp.ne.s32.totalorder %s186, %s189
    %p195 = scmp.eq.s32.totalorder %s14, 0
    %p196 = por %p194, %p195
    %p197 = scmp.ne.s32.totalorder %s186, %s189
    %p198 = scmp.eq.s32.totalorder %s19, 1
    %p199 = por %p197, %p198
    %p200 = scmp.ne.s32.totalorder %s189, %s190
    %p201 = scmp.eq.s32.totalorder %s19, 0
    %p202 = por %p200, %p201
    %p203 = scmp.ne.s32.totalorder %s189, %s190
    %p204 = scmp.eq.s32.totalorder %s20, 1
    %p205 = por %p203, %p204
    %p207 = scmp.ne.s32.totalorder %s190, %s206
    %p208 = scmp.eq.s32.totalorder %s20, 0
    %p209 = por %p207, %p208
    %p210 = scmp.le.s32.totalorder 1, %s14
    %p211 = scmp.lt.s32.totalorder %s14, 3
    %p212 = pnand %p210, %p211
    %p213 = pneg %p212
    // Predicated region
    $region9: #{_lambda_.6} parent=5 // pred_check
      _
    $region10: #{_lambda_.6} parent=5 // pred_check_branch
      %215 = sbr.rel (%p212) target = $region12
    $region11: #{_lambda_.6} parent=5 // pred_region
      %s216 = ssub.s32 %s14, 1
      // Predicated region
      $region13: #{_lambda_.6} parent=11 // pred_check
        %p217 = pneg %p61
      $region14: #{_lambda_.6} parent=11 // pred_check_branch
        %219 = sbr.rel (%p217) target = $region16
      $region15: #{_lambda_.6} parent=11 // pred_region
        _
      $region16: #{_lambda_.6} parent=11 // pred_fallthru
        _
      // Predicated region
      $region17: #{_lambda_.6} parent=11 // pred_check
        %p220 = pneg %p82
      $region18: #{_lambda_.6} parent=11 // pred_check_branch
        %222 = sbr.rel (%p220) target = $region20
      $region19: #{_lambda_.6} parent=11 // pred_region
        _
      $region20: #{_lambda_.6} parent=11 // pred_fallthru
        _
      // Predicated region
      $region21: #{_lambda_.6} parent=11 // pred_check
        %p223 = pneg %p103
      $region22: #{_lambda_.6} parent=11 // pred_check_branch
        %225 = sbr.rel (%p223) target = $region24
      $region23: #{_lambda_.6} parent=11 // pred_region
        _
      $region24: #{_lambda_.6} parent=11 // pred_fallthru
        _
      // Predicated region
      $region25: #{_lambda_.6} parent=11 // pred_check
        %p226 = pneg %p124
      $region26: #{_lambda_.6} parent=11 // pred_check_branch
        %228 = sbr.rel (%p226) target = $region28
      $region27: #{_lambda_.6} parent=11 // pred_region
        _
      $region28: #{_lambda_.6} parent=11 // pred_fallthru
        _
    $region12: #{_lambda_.6} parent=5 // pred_fallthru
      _
    %p229 = scmp.lt.s32.totalorder %s14, 2
    // Predicated region
    $region29: #{_lambda_.6} parent=5 // pred_check
      %p230 = pneg %p229
    $region30: #{_lambda_.6} parent=5 // pred_check_branch
      %232 = sbr.rel (%p230) target = $region32
    $region31: #{_lambda_.6} parent=5 // pred_region
      // Predicated region
      $region33: #{_lambda_.6} parent=31 // pred_check
        %p233 = pneg %p34
      $region34: #{_lambda_.6} parent=31 // pred_check_branch
        %235 = sbr.rel (%p233) target = $region36
      $region35: #{_lambda_.6} parent=31 // pred_region
        %p236 = scmp.lt.s32.totalorder %s14, 1
        %s237 = scalar_select %p236, %s14, 1
        %s238 = smul.addr %s237, 32
        %s239 = smul.addr %s238, 4
        %s240 = scalar_lea.vmem %s0, %s239
      $region36: #{_lambda_.6} parent=31 // pred_fallthru
        _
    $region32: #{_lambda_.6} parent=5 // pred_fallthru
      _
    %p241 = scmp.le.s32.totalorder 1, %s14
    %p242 = scmp.lt.s32.totalorder %s14, 3
    %p243 = pnand %p241, %p242
    %p244 = pneg %p243
    // Predicated region
    $region37: #{_lambda_.6} parent=5 // pred_check
      _
    $region38: #{_lambda_.6} parent=5 // pred_check_branch
      %246 = sbr.rel (%p243) target = $region40
    $region39: #{_lambda_.6} parent=5 // pred_region
      %s247 = ssub.s32 %s14, 1
      %p248 = scmp.lt.s32.totalorder %s19, 1
      %s249 = scalar_select %p248, %s19, 1
      %s250 = smul.addr %s249, 32
      %s251 = smul.addr %s250, 4
      %s252 = scalar_lea.vmem %s0, %s251
      %p253 = pneg %p40
      %p254 = pneg %p37
      %p255 = pneg %p61
      %p256 = pneg %p58
      %p257 = pneg %p82
      %p258 = pneg %p79
      %p259 = pneg %p103
      %p260 = pneg %p100
      %p261 = pneg %p124
      %p262 = pneg %p121
      %p263 = pneg %p150
      %p264 = pneg %p147
      %p265 = scmp.lt.s32.totalorder %s19, 1
      %s266 = scalar_select %p265, %s19, 1
      %s267 = smul.addr %s266, 32
      %s268 = smul.addr %s267, 4
      %s269 = scalar_lea.vmem %s5, %s268
      %p270 = pneg %p176
      %p271 = pneg %p173
      %p272 = scmp.lt.s32.totalorder %s19, 1
      %s273 = scalar_select %p272, %s19, 1
      %s274 = scalar_lea.vmem %s6, %s273
      %p275 = pneg %p202
      %p276 = pneg %p199
      %p277 = scmp.lt.s32.totalorder %s19, 1
      %s278 = scalar_select %p277, %s19, 1
      %s279 = scalar_lea.vmem %s7, %s278
      %p280 = scmp.lt.s32.totalorder %s19, 1
      %s281 = scalar_select %p280, %s19, 1
      %s282 = smul.addr %s281, 32
      %s283 = smul.addr %s282, 4
      %s284 = scalar_lea.vmem %s0, %s283
      %p285 = scmp.lt.s32.totalorder %s19, 1
      %s286 = scalar_select %p285, %s19, 1
      %s287 = smul.addr %s286, 32
      %s288 = smul.addr %s287, 4
      %s289 = scalar_lea.vmem %s5, %s288
      %p290 = scmp.lt.s32.totalorder %s19, 1
      %s291 = scalar_select %p290, %s19, 1
      %s292 = scalar_lea.vmem %s6, %s291
      %p293 = scmp.lt.s32.totalorder %s19, 1
      %s294 = scalar_select %p293, %s19, 1
      %s295 = scalar_lea.vmem %s7, %s294
      %v297 = vld [vmem:[%s284] sm:$0xf]
      %v298 = vld [vmem:[%s284 + $0x4] sm:$0xf]
      %v299 = vld [vmem:[%s284 + $0x8] sm:$0xf]
      %v300 = vld [vmem:[%s284 + $0xc] sm:$0xf]
      %v301 = vld [vmem:[%s284 + $0x10] sm:$0xf]
      %v302 = vld [vmem:[%s284 + $0x14] sm:$0xf]
      %v303 = vld [vmem:[%s284 + $0x18] sm:$0xf]
      %v304 = vld [vmem:[%s284 + $0x1c] sm:$0xf]
      %v305 = vld [vmem:[%s284 + $0x20] sm:$0xf]
      %v306 = vld [vmem:[%s284 + $0x24] sm:$0xf]
      %v307 = vld [vmem:[%s284 + $0x28] sm:$0xf]
      %v308 = vld [vmem:[%s284 + $0x2c] sm:$0xf]
      %v309 = vld [vmem:[%s284 + $0x30] sm:$0xf]
      %v310 = vld [vmem:[%s284 + $0x34] sm:$0xf]
      %v311 = vld [vmem:[%s284 + $0x38] sm:$0xf]
      %v312 = vld [vmem:[%s284 + $0x3c] sm:$0xf]
      %v313 = vld [vmem:[%s284 + $0x40] sm:$0xf]
      %v314 = vld [vmem:[%s284 + $0x44] sm:$0xf]
      %v315 = vld [vmem:[%s284 + $0x48] sm:$0xf]
      %v316 = vld [vmem:[%s284 + $0x4c] sm:$0xf]
      %v317 = vld [vmem:[%s284 + $0x50] sm:$0xf]
      %v318 = vld [vmem:[%s284 + $0x54] sm:$0xf]
      %v319 = vld [vmem:[%s284 + $0x58] sm:$0xf]
      %v320 = vld [vmem:[%s284 + $0x5c] sm:$0xf]
      %v321 = vld [vmem:[%s284 + $0x60] sm:$0xf]
      %v322 = vld [vmem:[%s284 + $0x64] sm:$0xf]
      %v323 = vld [vmem:[%s284 + $0x68] sm:$0xf]
      %v324 = vld [vmem:[%s284 + $0x6c] sm:$0xf]
      %v325 = vld [vmem:[%s284 + $0x70] sm:$0xf]
      %v326 = vld [vmem:[%s284 + $0x74] sm:$0xf]
      %v327 = vld [vmem:[%s284 + $0x78] sm:$0xf]
      %v328 = vld [vmem:[%s284 + $0x7c] sm:$0xf]
      %v329 = vunpack.c.l.bf16 %v297
      %v330 = vunpack.c.l.bf16 %v298
      %v331 = vunpack.c.l.bf16 %v299
      %v332 = vunpack.c.l.bf16 %v300
      %v333 = vunpack.c.l.bf16 %v301
      %v334 = vunpack.c.l.bf16 %v302
      %v335 = vunpack.c.l.bf16 %v303
      %v336 = vunpack.c.l.bf16 %v304
      %v337 = vunpack.c.l.bf16 %v305
      %v338 = vunpack.c.l.bf16 %v306
      %v339 = vunpack.c.l.bf16 %v307
      %v340 = vunpack.c.l.bf16 %v308
      %v341 = vunpack.c.l.bf16 %v309
      %v342 = vunpack.c.l.bf16 %v310
      %v343 = vunpack.c.l.bf16 %v311
      %v344 = vunpack.c.l.bf16 %v312
      %v345 = vunpack.c.l.bf16 %v313
      %v346 = vunpack.c.l.bf16 %v314
      %v347 = vunpack.c.l.bf16 %v315
      %v348 = vunpack.c.l.bf16 %v316
      %v349 = vunpack.c.l.bf16 %v317
      %v350 = vunpack.c.l.bf16 %v318
      %v351 = vunpack.c.l.bf16 %v319
      %v352 = vunpack.c.l.bf16 %v320
      %v353 = vunpack.c.l.bf16 %v321
      %v354 = vunpack.c.l.bf16 %v322
      %v355 = vunpack.c.l.bf16 %v323
      %v356 = vunpack.c.l.bf16 %v324
      %v357 = vunpack.c.l.bf16 %v325
      %v358 = vunpack.c.l.bf16 %v326
      %v359 = vunpack.c.l.bf16 %v327
      %v360 = vunpack.c.l.bf16 %v328
      %v361 = vld [vmem:[%s3] sm:$0x1]
      %v363 = vlaneseq
      %v364 = vshrl.u32 %v363, 7
      %v365 = vsub.s32 0, %v364
      %v366 = vrot.slane %v361, %v365
      %v368 = vmul.f32 %v329, %v366
      %v369 = vmul.f32 %v330, %v366
      %v370 = vmul.f32 %v331, %v366
      %v371 = vmul.f32 %v332, %v366
      %v372 = vmul.f32 %v333, %v366
      %v373 = vmul.f32 %v334, %v366
      %v374 = vmul.f32 %v335, %v366
      %v375 = vmul.f32 %v336, %v366
      %v376 = vmul.f32 %v337, %v366
      %v377 = vmul.f32 %v338, %v366
      %v378 = vmul.f32 %v339, %v366
      %v379 = vmul.f32 %v340, %v366
      %v380 = vmul.f32 %v341, %v366
      %v381 = vmul.f32 %v342, %v366
      %v382 = vmul.f32 %v343, %v366
      %v383 = vmul.f32 %v344, %v366
      %v384 = vmul.f32 %v345, %v366
      %v385 = vmul.f32 %v346, %v366
      %v386 = vmul.f32 %v347, %v366
      %v387 = vmul.f32 %v348, %v366
      %v388 = vmul.f32 %v349, %v366
      %v389 = vmul.f32 %v350, %v366
      %v390 = vmul.f32 %v351, %v366
      %v391 = vmul.f32 %v352, %v366
      %v392 = vmul.f32 %v353, %v366
      %v393 = vmul.f32 %v354, %v366
      %v394 = vmul.f32 %v355, %v366
      %v395 = vmul.f32 %v356, %v366
      %v396 = vmul.f32 %v357, %v366
      %v397 = vmul.f32 %v358, %v366
      %v398 = vmul.f32 %v359, %v366
      %v399 = vmul.f32 %v360, %v366
      %v400 = vld [vmem:[%s4] sm:$0x1]
      %v402 = vlaneseq
      %v403 = vshrl.u32 %v402, 7
      %v404 = vsub.s32 0, %v403
      %v405 = vrot.slane %v400, %v404
      %v407 = vadd.f32 %v368, %v405
      %v408 = vadd.f32 %v369, %v405
      %v409 = vadd.f32 %v370, %v405
      %v410 = vadd.f32 %v371, %v405
      %v411 = vadd.f32 %v372, %v405
      %v412 = vadd.f32 %v373, %v405
      %v413 = vadd.f32 %v374, %v405
      %v414 = vadd.f32 %v375, %v405
      %v415 = vadd.f32 %v376, %v405
      %v416 = vadd.f32 %v377, %v405
      %v417 = vadd.f32 %v378, %v405
      %v418 = vadd.f32 %v379, %v405
      %v419 = vadd.f32 %v380, %v405
      %v420 = vadd.f32 %v381, %v405
      %v421 = vadd.f32 %v382, %v405
      %v422 = vadd.f32 %v383, %v405
      %v423 = vadd.f32 %v384, %v405
      %v424 = vadd.f32 %v385, %v405
      %v425 = vadd.f32 %v386, %v405
      %v426 = vadd.f32 %v387, %v405
      %v427 = vadd.f32 %v388, %v405
      %v428 = vadd.f32 %v389, %v405
      %v429 = vadd.f32 %v390, %v405
      %v430 = vadd.f32 %v391, %v405
      %v431 = vadd.f32 %v392, %v405
      %v432 = vadd.f32 %v393, %v405
      %v433 = vadd.f32 %v394, %v405
      %v434 = vadd.f32 %v395, %v405
      %v435 = vadd.f32 %v396, %v405
      %v436 = vadd.f32 %v397, %v405
      %v437 = vadd.f32 %v398, %v405
      %v438 = vadd.f32 %v399, %v405
      %vm439 = vcmp.ge.f32.partialorder %v407, 0.0
      %vm440 = vcmp.ge.f32.partialorder %v408, 0.0
      %vm441 = vcmp.ge.f32.partialorder %v409, 0.0
      %vm442 = vcmp.ge.f32.partialorder %v410, 0.0
      %vm443 = vcmp.ge.f32.partialorder %v411, 0.0
      %vm444 = vcmp.ge.f32.partialorder %v412, 0.0
      %vm445 = vcmp.ge.f32.partialorder %v413, 0.0
      %vm446 = vcmp.ge.f32.partialorder %v414, 0.0
      %vm447 = vcmp.ge.f32.partialorder %v415, 0.0
      %vm448 = vcmp.ge.f32.partialorder %v416, 0.0
      %vm449 = vcmp.ge.f32.partialorder %v417, 0.0
      %vm450 = vcmp.ge.f32.partialorder %v418, 0.0
      %vm451 = vcmp.ge.f32.partialorder %v419, 0.0
      %vm452 = vcmp.ge.f32.partialorder %v420, 0.0
      %vm453 = vcmp.ge.f32.partialorder %v421, 0.0
      %vm454 = vcmp.ge.f32.partialorder %v422, 0.0
      %vm455 = vcmp.ge.f32.partialorder %v423, 0.0
      %vm456 = vcmp.ge.f32.partialorder %v424, 0.0
      %vm457 = vcmp.ge.f32.partialorder %v425, 0.0
      %vm458 = vcmp.ge.f32.partialorder %v426, 0.0
      %vm459 = vcmp.ge.f32.partialorder %v427, 0.0
      %vm460 = vcmp.ge.f32.partialorder %v428, 0.0
      %vm461 = vcmp.ge.f32.partialorder %v429, 0.0
      %vm462 = vcmp.ge.f32.partialorder %v430, 0.0
      %vm463 = vcmp.ge.f32.partialorder %v431, 0.0
      %vm464 = vcmp.ge.f32.partialorder %v432, 0.0
      %vm465 = vcmp.ge.f32.partialorder %v433, 0.0
      %vm466 = vcmp.ge.f32.partialorder %v434, 0.0
      %vm467 = vcmp.ge.f32.partialorder %v435, 0.0
      %vm468 = vcmp.ge.f32.partialorder %v436, 0.0
      %vm469 = vcmp.ge.f32.partialorder %v437, 0.0
      %vm470 = vcmp.ge.f32.partialorder %v438, 0.0
      %v471 = vmul.f32 %v407, 0.2
      %v472 = vmul.f32 %v408, 0.2
      %v473 = vmul.f32 %v409, 0.2
      %v474 = vmul.f32 %v410, 0.2
      %v475 = vmul.f32 %v411, 0.2
      %v476 = vmul.f32 %v412, 0.2
      %v477 = vmul.f32 %v413, 0.2
      %v478 = vmul.f32 %v414, 0.2
      %v479 = vmul.f32 %v415, 0.2
      %v480 = vmul.f32 %v416, 0.2
      %v481 = vmul.f32 %v417, 0.2
      %v482 = vmul.f32 %v418, 0.2
      %v483 = vmul.f32 %v419, 0.2
      %v484 = vmul.f32 %v420, 0.2
      %v485 = vmul.f32 %v421, 0.2
      %v486 = vmul.f32 %v422, 0.2
      %v487 = vmul.f32 %v423, 0.2
      %v488 = vmul.f32 %v424, 0.2
      %v489 = vmul.f32 %v425, 0.2
      %v490 = vmul.f32 %v426, 0.2
      %v491 = vmul.f32 %v427, 0.2
      %v492 = vmul.f32 %v428, 0.2
      %v493 = vmul.f32 %v429, 0.2
      %v494 = vmul.f32 %v430, 0.2
      %v495 = vmul.f32 %v431, 0.2
      %v496 = vmul.f32 %v432, 0.2
      %v497 = vmul.f32 %v433, 0.2
      %v498 = vmul.f32 %v434, 0.2
      %v499 = vmul.f32 %v435, 0.2
      %v500 = vmul.f32 %v436, 0.2
      %v501 = vmul.f32 %v437, 0.2
      %v502 = vmul.f32 %v438, 0.2
      %v503 = vsel %vm439, %v407, %v471
      %v504 = vsel %vm440, %v408, %v472
      %v505 = vsel %vm441, %v409, %v473
      %v506 = vsel %vm442, %v410, %v474
      %v507 = vsel %vm443, %v411, %v475
      %v508 = vsel %vm444, %v412, %v476
      %v509 = vsel %vm445, %v413, %v477
      %v510 = vsel %vm446, %v414, %v478
      %v511 = vsel %vm447, %v415, %v479
      %v512 = vsel %vm448, %v416, %v480
      %v513 = vsel %vm449, %v417, %v481
      %v514 = vsel %vm450, %v418, %v482
      %v515 = vsel %vm451, %v419, %v483
      %v516 = vsel %vm452, %v420, %v484
      %v517 = vsel %vm453, %v421, %v485
      %v518 = vsel %vm454, %v422, %v486
      %v519 = vsel %vm455, %v423, %v487
      %v520 = vsel %vm456, %v424, %v488
      %v521 = vsel %vm457, %v425, %v489
      %v522 = vsel %vm458, %v426, %v490
      %v523 = vsel %vm459, %v427, %v491
      %v524 = vsel %vm460, %v428, %v492
      %v525 = vsel %vm461, %v429, %v493
      %v526 = vsel %vm462, %v430, %v494
      %v527 = vsel %vm463, %v431, %v495
      %v528 = vsel %vm464, %v432, %v496
      %v529 = vsel %vm465, %v433, %v497
      %v530 = vsel %vm466, %v434, %v498
      %v531 = vsel %vm467, %v435, %v499
      %v532 = vsel %vm468, %v436, %v500
      %v533 = vsel %vm469, %v437, %v501
      %v534 = vsel %vm470, %v438, %v502
      %vm568 = vcmask 1040384
      %v569 = vrot.slane 0.0, 7
      %v570 = vsel %vm568, %v569, %v569
      %v571 = vrot.slane %v503, 7
      %v572 = vrot.slane %v504, 7
      %v573 = vsel %vm568, %v571, %v572
      %v574 = vrot.slane %v505, 7
      %v575 = vrot.slane %v506, 7
      %v576 = vsel %vm568, %v574, %v575
      %v577 = vrot.slane %v507, 7
      %v578 = vrot.slane %v508, 7
      %v579 = vsel %vm568, %v577, %v578
      %v580 = vrot.slane %v509, 7
      %v581 = vrot.slane %v510, 7
      %v582 = vsel %vm568, %v580, %v581
      %v583 = vrot.slane %v511, 7
      %v584 = vrot.slane %v512, 7
      %v585 = vsel %vm568, %v583, %v584
      %v586 = vrot.slane %v513, 7
      %v587 = vrot.slane %v514, 7
      %v588 = vsel %vm568, %v586, %v587
      %v589 = vrot.slane %v515, 7
      %v590 = vrot.slane %v516, 7
      %v591 = vsel %vm568, %v589, %v590
      %v592 = vrot.slane %v517, 7
      %v593 = vrot.slane %v518, 7
      %v594 = vsel %vm568, %v592, %v593
      %v595 = vrot.slane %v519, 7
      %v596 = vrot.slane %v520, 7
      %v597 = vsel %vm568, %v595, %v596
      %v598 = vrot.slane %v521, 7
      %v599 = vrot.slane %v522, 7
      %v600 = vsel %vm568, %v598, %v599
      %v601 = vrot.slane %v523, 7
      %v602 = vrot.slane %v524, 7
      %v603 = vsel %vm568, %v601, %v602
      %v604 = vrot.slane %v525, 7
      %v605 = vrot.slane %v526, 7
      %v606 = vsel %vm568, %v604, %v605
      %v607 = vrot.slane %v527, 7
      %v608 = vrot.slane %v528, 7
      %v609 = vsel %vm568, %v607, %v608
      %v610 = vrot.slane %v529, 7
      %v611 = vrot.slane %v530, 7
      %v612 = vsel %vm568, %v610, %v611
      %v613 = vrot.slane %v531, 7
      %v614 = vrot.slane %v532, 7
      %v615 = vsel %vm568, %v613, %v614
      %v616 = vrot.slane %v533, 7
      %v617 = vrot.slane %v534, 7
      %v618 = vsel %vm568, %v616, %v617
      %v653 = vsel %vm568, 0.0, %v569
      %v654 = vsel %vm568, 0.0, %v571
      %v655 = vsel %vm568, 0.0, %v574
      %v656 = vsel %vm568, 0.0, %v577
      %v657 = vsel %vm568, 0.0, %v580
      %v658 = vsel %vm568, 0.0, %v583
      %v659 = vsel %vm568, 0.0, %v586
      %v660 = vsel %vm568, 0.0, %v589
      %v661 = vsel %vm568, 0.0, %v592
      %v662 = vsel %vm568, 0.0, %v595
      %v663 = vsel %vm568, 0.0, %v598
      %v664 = vsel %vm568, 0.0, %v601
      %v665 = vsel %vm568, 0.0, %v604
      %v666 = vsel %vm568, 0.0, %v607
      %v667 = vsel %vm568, 0.0, %v610
      %v668 = vsel %vm568, 0.0, %v613
      %v669 = vsel %vm568, 0.0, %v616
      %vm670 = vcmask 1046528
      %v671 = vrot.slane 0.0, 1
      %v672 = vsel %vm670, %v671, %v671
      %v673 = vrot.slane %v503, 1
      %v674 = vrot.slane %v504, 1
      %v675 = vsel %vm670, %v673, %v674
      %v676 = vrot.slane %v505, 1
      %v677 = vrot.slane %v506, 1
      %v678 = vsel %vm670, %v676, %v677
      %v679 = vrot.slane %v507, 1
      %v680 = vrot.slane %v508, 1
      %v681 = vsel %vm670, %v679, %v680
      %v682 = vrot.slane %v509, 1
      %v683 = vrot.slane %v510, 1
      %v684 = vsel %vm670, %v682, %v683
      %v685 = vrot.slane %v511, 1
      %v686 = vrot.slane %v512, 1
      %v687 = vsel %vm670, %v685, %v686
      %v688 = vrot.slane %v513, 1
      %v689 = vrot.slane %v514, 1
      %v690 = vsel %vm670, %v688, %v689
      %v691 = vrot.slane %v515, 1
      %v692 = vrot.slane %v516, 1
      %v693 = vsel %vm670, %v691, %v692
      %v694 = vrot.slane %v517, 1
      %v695 = vrot.slane %v518, 1
      %v696 = vsel %vm670, %v694, %v695
      %v697 = vrot.slane %v519, 1
      %v698 = vrot.slane %v520, 1
      %v699 = vsel %vm670, %v697, %v698
      %v700 = vrot.slane %v521, 1
      %v701 = vrot.slane %v522, 1
      %v702 = vsel %vm670, %v700, %v701
      %v703 = vrot.slane %v523, 1
      %v704 = vrot.slane %v524, 1
      %v705 = vsel %vm670, %v703, %v704
      %v706 = vrot.slane %v525, 1
      %v707 = vrot.slane %v526, 1
      %v708 = vsel %vm670, %v706, %v707
      %v709 = vrot.slane %v527, 1
      %v710 = vrot.slane %v528, 1
      %v711 = vsel %vm670, %v709, %v710
      %v712 = vrot.slane %v529, 1
      %v713 = vrot.slane %v530, 1
      %v714 = vsel %vm670, %v712, %v713
      %v715 = vrot.slane %v531, 1
      %v716 = vrot.slane %v532, 1
      %v717 = vsel %vm670, %v715, %v716
      %v718 = vrot.slane %v533, 1
      %v719 = vrot.slane %v534, 1
      %v720 = vsel %vm670, %v718, %v719
      %v738 = vsel %vm670, %v671, 0.0
      %v739 = vsel %vm670, %v674, 0.0
      %v740 = vsel %vm670, %v677, 0.0
      %v741 = vsel %vm670, %v680, 0.0
      %v742 = vsel %vm670, %v683, 0.0
      %v743 = vsel %vm670, %v686, 0.0
      %v744 = vsel %vm670, %v689, 0.0
      %v745 = vsel %vm670, %v692, 0.0
      %v746 = vsel %vm670, %v695, 0.0
      %v747 = vsel %vm670, %v698, 0.0
      %v748 = vsel %vm670, %v701, 0.0
      %v749 = vsel %vm670, %v704, 0.0
      %v750 = vsel %vm670, %v707, 0.0
      %v751 = vsel %vm670, %v710, 0.0
      %v752 = vsel %vm670, %v713, 0.0
      %v753 = vsel %vm670, %v716, 0.0
      %v754 = vsel %vm670, %v719, 0.0
      %755 = vrot.lane.b32.xlu0 0.0, 32
      %v756 = vpop.permute.xlu0 %755
      %757 = vrot.lane.b32.xlu0 %v503, 32
      %v758 = vpop.permute.xlu0 %757
      %759 = vrot.lane.b32.xlu0 %v504, 32
      %v760 = vpop.permute.xlu0 %759
      %761 = vrot.lane.b32.xlu0 %v505, 32
      %v762 = vpop.permute.xlu0 %761
      %763 = vrot.lane.b32.xlu0 %v506, 32
      %v764 = vpop.permute.xlu0 %763
      %765 = vrot.lane.b32.xlu0 %v507, 32
      %v766 = vpop.permute.xlu0 %765
      %767 = vrot.lane.b32.xlu0 %v508, 32
      %v768 = vpop.permute.xlu0 %767
      %769 = vrot.lane.b32.xlu0 %v509, 32
      %v770 = vpop.permute.xlu0 %769
      %771 = vrot.lane.b32.xlu0 %v510, 32
      %v772 = vpop.permute.xlu0 %771
      %773 = vrot.lane.b32.xlu0 %v511, 32
      %v774 = vpop.permute.xlu0 %773
      %775 = vrot.lane.b32.xlu0 %v512, 32
      %v776 = vpop.permute.xlu0 %775
      %777 = vrot.lane.b32.xlu0 %v513, 32
      %v778 = vpop.permute.xlu0 %777
      %779 = vrot.lane.b32.xlu0 %v514, 32
      %v780 = vpop.permute.xlu0 %779
      %781 = vrot.lane.b32.xlu0 %v515, 32
      %v782 = vpop.permute.xlu0 %781
      %783 = vrot.lane.b32.xlu0 %v516, 32
      %v784 = vpop.permute.xlu0 %783
      %785 = vrot.lane.b32.xlu0 %v517, 32
      %v786 = vpop.permute.xlu0 %785
      %787 = vrot.lane.b32.xlu0 %v518, 32
      %v788 = vpop.permute.xlu0 %787
      %789 = vrot.lane.b32.xlu0 %v519, 32
      %v790 = vpop.permute.xlu0 %789
      %791 = vrot.lane.b32.xlu0 %v520, 32
      %v792 = vpop.permute.xlu0 %791
      %793 = vrot.lane.b32.xlu0 %v521, 32
      %v794 = vpop.permute.xlu0 %793
      %795 = vrot.lane.b32.xlu0 %v522, 32
      %v796 = vpop.permute.xlu0 %795
      %797 = vrot.lane.b32.xlu0 %v523, 32
      %v798 = vpop.permute.xlu0 %797
      %799 = vrot.lane.b32.xlu0 %v524, 32
      %v800 = vpop.permute.xlu0 %799
      %801 = vrot.lane.b32.xlu0 %v525, 32
      %v802 = vpop.permute.xlu0 %801
      %803 = vrot.lane.b32.xlu0 %v526, 32
      %v804 = vpop.permute.xlu0 %803
      %805 = vrot.lane.b32.xlu0 %v527, 32
      %v806 = vpop.permute.xlu0 %805
      %807 = vrot.lane.b32.xlu0 %v528, 32
      %v808 = vpop.permute.xlu0 %807
      %809 = vrot.lane.b32.xlu0 %v529, 32
      %v810 = vpop.permute.xlu0 %809
      %811 = vrot.lane.b32.xlu0 %v530, 32
      %v812 = vpop.permute.xlu0 %811
      %813 = vrot.lane.b32.xlu0 %v531, 32
      %v814 = vpop.permute.xlu0 %813
      %815 = vrot.lane.b32.xlu0 %v532, 32
      %v816 = vpop.permute.xlu0 %815
      %817 = vrot.lane.b32.xlu0 %v533, 32
      %v818 = vpop.permute.xlu0 %817
      %819 = vrot.lane.b32.xlu0 %v534, 32
      %v820 = vpop.permute.xlu0 %819
      %871 = vrot.lane.b32.xlu0 %v672, 64
      %v872 = vpop.permute.xlu0 %871
      %873 = vrot.lane.b32.xlu0 %v738, 64
      %v874 = vpop.permute.xlu0 %873
      %875 = vrot.lane.b32.xlu0 %v675, 64
      %v876 = vpop.permute.xlu0 %875
      %877 = vrot.lane.b32.xlu0 %v739, 64
      %v878 = vpop.permute.xlu0 %877
      %879 = vrot.lane.b32.xlu0 %v678, 64
      %v880 = vpop.permute.xlu0 %879
      %881 = vrot.lane.b32.xlu0 %v740, 64
      %v882 = vpop.permute.xlu0 %881
      %883 = vrot.lane.b32.xlu0 %v681, 64
      %v884 = vpop.permute.xlu0 %883
      %885 = vrot.lane.b32.xlu0 %v741, 64
      %v886 = vpop.permute.xlu0 %885
      %887 = vrot.lane.b32.xlu0 %v684, 64
      %v888 = vpop.permute.xlu0 %887
      %889 = vrot.lane.b32.xlu0 %v742, 64
      %v890 = vpop.permute.xlu0 %889
      %891 = vrot.lane.b32.xlu0 %v687, 64
      %v892 = vpop.permute.xlu0 %891
      %893 = vrot.lane.b32.xlu0 %v743, 64
      %v894 = vpop.permute.xlu0 %893
      %895 = vrot.lane.b32.xlu0 %v690, 64
      %v896 = vpop.permute.xlu0 %895
      %897 = vrot.lane.b32.xlu0 %v744, 64
      %v898 = vpop.permute.xlu0 %897
      %899 = vrot.lane.b32.xlu0 %v693, 64
      %v900 = vpop.permute.xlu0 %899
      %901 = vrot.lane.b32.xlu0 %v745, 64
      %v902 = vpop.permute.xlu0 %901
      %903 = vrot.lane.b32.xlu0 %v696, 64
      %v904 = vpop.permute.xlu0 %903
      %905 = vrot.lane.b32.xlu0 %v746, 64
      %v906 = vpop.permute.xlu0 %905
      %907 = vrot.lane.b32.xlu0 %v699, 64
      %v908 = vpop.permute.xlu0 %907
      %909 = vrot.lane.b32.xlu0 %v747, 64
      %v910 = vpop.permute.xlu0 %909
      %911 = vrot.lane.b32.xlu0 %v702, 64
      %v912 = vpop.permute.xlu0 %911
      %913 = vrot.lane.b32.xlu0 %v748, 64
      %v914 = vpop.permute.xlu0 %913
      %915 = vrot.lane.b32.xlu0 %v705, 64
      %v916 = vpop.permute.xlu0 %915
      %917 = vrot.lane.b32.xlu0 %v749, 64
      %v918 = vpop.permute.xlu0 %917
      %919 = vrot.lane.b32.xlu0 %v708, 64
      %v920 = vpop.permute.xlu0 %919
      %921 = vrot.lane.b32.xlu0 %v750, 64
      %v922 = vpop.permute.xlu0 %921
      %923 = vrot.lane.b32.xlu0 %v711, 64
      %v924 = vpop.permute.xlu0 %923
      %925 = vrot.lane.b32.xlu0 %v751, 64
      %v926 = vpop.permute.xlu0 %925
      %927 = vrot.lane.b32.xlu0 %v714, 64
      %v928 = vpop.permute.xlu0 %927
      %929 = vrot.lane.b32.xlu0 %v752, 64
      %v930 = vpop.permute.xlu0 %929
      %931 = vrot.lane.b32.xlu0 %v717, 64
      %v932 = vpop.permute.xlu0 %931
      %933 = vrot.lane.b32.xlu0 %v753, 64
      %v934 = vpop.permute.xlu0 %933
      %935 = vrot.lane.b32.xlu0 %v720, 64
      %v936 = vpop.permute.xlu0 %935
      %937 = vrot.lane.b32.xlu0 %v754, 64
      %v938 = vpop.permute.xlu0 %937
      %vm973 = vcmask 261120
      %v974 = vsel %vm973, %v653, %v756
      %v975 = vsel %vm973, %v570, %v756
      %v976 = vsel %vm973, %v654, %v758
      %v977 = vsel %vm973, %v573, %v760
      %v978 = vsel %vm973, %v655, %v762
      %v979 = vsel %vm973, %v576, %v764
      %v980 = vsel %vm973, %v656, %v766
      %v981 = vsel %vm973, %v579, %v768
      %v982 = vsel %vm973, %v657, %v770
      %v983 = vsel %vm973, %v582, %v772
      %v984 = vsel %vm973, %v658, %v774
      %v985 = vsel %vm973, %v585, %v776
      %v986 = vsel %vm973, %v659, %v778
      %v987 = vsel %vm973, %v588, %v780
      %v988 = vsel %vm973, %v660, %v782
      %v989 = vsel %vm973, %v591, %v784
      %v990 = vsel %vm973, %v661, %v786
      %v991 = vsel %vm973, %v594, %v788
      %v992 = vsel %vm973, %v662, %v790
      %v993 = vsel %vm973, %v597, %v792
      %v994 = vsel %vm973, %v663, %v794
      %v995 = vsel %vm973, %v600, %v796
      %v996 = vsel %vm973, %v664, %v798
      %v997 = vsel %vm973, %v603, %v800
      %v998 = vsel %vm973, %v665, %v802
      %v999 = vsel %vm973, %v606, %v804
      %v1000 = vsel %vm973, %v666, %v806
      %v1001 = vsel %vm973, %v609, %v808
      %v1002 = vsel %vm973, %v667, %v810
      %v1003 = vsel %vm973, %v612, %v812
      %v1004 = vsel %vm973, %v668, %v814
      %v1005 = vsel %vm973, %v615, %v816
      %v1006 = vsel %vm973, %v669, %v818
      %v1007 = vsel %vm973, %v618, %v820
      %vm1008 = vcmask 523264
      %v1009 = vsel %vm1008, %v974, %v872
      %v1010 = vsel %vm1008, %v975, %v874
      %v1011 = vsel %vm1008, %v976, %v876
      %v1012 = vsel %vm1008, %v977, %v878
      %v1013 = vsel %vm1008, %v978, %v880
      %v1014 = vsel %vm1008, %v979, %v882
      %v1015 = vsel %vm1008, %v980, %v884
      %v1016 = vsel %vm1008, %v981, %v886
      %v1017 = vsel %vm1008, %v982, %v888
      %v1018 = vsel %vm1008, %v983, %v890
      %v1019 = vsel %vm1008, %v984, %v892
      %v1020 = vsel %vm1008, %v985, %v894
      %v1021 = vsel %vm1008, %v986, %v896
      %v1022 = vsel %vm1008, %v987, %v898
      %v1023 = vsel %vm1008, %v988, %v900
      %v1024 = vsel %vm1008, %v989, %v902
      %v1025 = vsel %vm1008, %v990, %v904
      %v1026 = vsel %vm1008, %v991, %v906
      %v1027 = vsel %vm1008, %v992, %v908
      %v1028 = vsel %vm1008, %v993, %v910
      %v1029 = vsel %vm1008, %v994, %v912
      %v1030 = vsel %vm1008, %v995, %v914
      %v1031 = vsel %vm1008, %v996, %v916
      %v1032 = vsel %vm1008, %v997, %v918
      %v1033 = vsel %vm1008, %v998, %v920
      %v1034 = vsel %vm1008, %v999, %v922
      %v1035 = vsel %vm1008, %v1000, %v924
      %v1036 = vsel %vm1008, %v1001, %v926
      %v1037 = vsel %vm1008, %v1002, %v928
      %v1038 = vsel %vm1008, %v1003, %v930
      %v1039 = vsel %vm1008, %v1004, %v932
      %v1040 = vsel %vm1008, %v1005, %v934
      %v1041 = vsel %vm1008, %v1006, %v936
      %v1042 = vsel %vm1008, %v1007, %v938
      %v1043 = vpack.c.bf16 %v1010, %v1009
      %v1044 = vpack.c.bf16 %v1012, %v1011
      %v1045 = vpack.c.bf16 %v1014, %v1013
      %v1046 = vpack.c.bf16 %v1016, %v1015
      %v1047 = vpack.c.bf16 %v1018, %v1017
      %v1048 = vpack.c.bf16 %v1020, %v1019
      %v1049 = vpack.c.bf16 %v1022, %v1021
      %v1050 = vpack.c.bf16 %v1024, %v1023
      %v1051 = vpack.c.bf16 %v1026, %v1025
      %v1052 = vpack.c.bf16 %v1028, %v1027
      %v1053 = vpack.c.bf16 %v1030, %v1029
      %v1054 = vpack.c.bf16 %v1032, %v1031
      %v1055 = vpack.c.bf16 %v1034, %v1033
      %v1056 = vpack.c.bf16 %v1036, %v1035
      %v1057 = vpack.c.bf16 %v1038, %v1037
      %v1058 = vpack.c.bf16 %v1040, %v1039
      %v1059 = vpack.c.bf16 %v1042, %v1041
      %v1060 = vld [vmem:[%s2] sm:$0x1]
      %v1061 = vld [vmem:[%s1] sm:$0xf]
      %v1062 = vld [vmem:[%s1 + $0x4] sm:$0xf]
      %v1063 = vld [vmem:[%s1 + $0x8] sm:$0xf]
      %v1064 = vld [vmem:[%s1 + $0xc] sm:$0xf]
      %v1065 = vld [vmem:[%s1 + $0x10] sm:$0xf]
      %v1066 = vld [vmem:[%s1 + $0x14] sm:$0xf]
      %v1067 = vld [vmem:[%s1 + $0x18] sm:$0xf]
      %v1068 = vld [vmem:[%s1 + $0x1c] sm:$0xf]
      %v1069 = vld [vmem:[%s1 + $0x20] sm:$0xf]
      %v1070 = vld [vmem:[%s1 + $0x24] sm:$0xf]
      %v1071 = vld [vmem:[%s1 + $0x28] sm:$0xf]
      %v1072 = vld [vmem:[%s1 + $0x2c] sm:$0xf]
      %v1074 = vlaneseq
      %v1075 = vshrl.u32 %v1074, 7
      %v1076 = vsub.s32 0, %v1075
      %v1077 = vrot.slane %v1060, %v1076
      %v1091 = vunpack.c.l.b16 %v1061
      %v1092 = vunpack.c.l.b16 %v1062
      %v1093 = vunpack.c.l.b16 %v1063
      %v1094 = vunpack.c.l.b16 %v1064
      %v1095 = vunpack.c.l.b16 %v1065
      %v1096 = vunpack.c.l.b16 %v1066
      %v1097 = vunpack.c.l.b16 %v1067
      %v1098 = vunpack.c.l.b16 %v1068
      %v1099 = vunpack.c.l.b16 %v1069
      %v1100 = vunpack.c.l.b16 %v1070
      %v1101 = vunpack.c.l.b16 %v1071
      %v1102 = vunpack.c.l.b16 %v1072
      %v1103 = vpack.c.b16 %v1092, %v1091
      %v1104 = vpack.c.b16 %v1094, %v1093
      %v1105 = vpack.c.b16 %v1096, %v1095
      %v1106 = vpack.c.b16 %v1098, %v1097
      %v1107 = vpack.c.b16 %v1100, %v1099
      %v1108 = vpack.c.b16 %v1102, %v1101
      %vm1115 = vcmask 785408
      %v1117 = vsel %vm1115, %v1043, 0
      %v1120 = vsel %vm1115, %v1044, 0
      %v1123 = vsel %vm1115, %v1045, 0
      %v1126 = vsel %vm1115, %v1046, 0
      %v1129 = vsel %vm1115, %v1047, 0
      %v1132 = vsel %vm1115, %v1048, 0
      %v1135 = vsel %vm1115, %v1049, 0
      %v1138 = vsel %vm1115, %v1050, 0
      %v1141 = vsel %vm1115, %v1051, 0
      %v1144 = vsel %vm1115, %v1052, 0
      %v1147 = vsel %vm1115, %v1053, 0
      %v1150 = vsel %vm1115, %v1054, 0
      %v1153 = vsel %vm1115, %v1055, 0
      %v1156 = vsel %vm1115, %v1056, 0
      %v1159 = vsel %vm1115, %v1057, 0
      %v1162 = vsel %vm1115, %v1058, 0
      %1164 = vmatprep.subr.bf16.mxu0 0
      %1165 = vmatpush1.bf16.msra.mxu0 %v1103
      %1166 = vmatprep.subr.bf16.mxu0 0
      %1167 = vmatpush1.bf16.msra.mxu0 %v1104
      %1168 = vmatprep.subr.bf16.mxu0 0
      %1169 = vmatpush1.bf16.msra.mxu0 %v1105
      %1170 = vmatprep.subr.bf16.mxu0 0
      %1171 = vmatpush1.bf16.msra.mxu0 %v1106
      %1172 = vmatprep.subr.bf16.mxu0 0
      %1173 = vmatpush1.bf16.msra.mxu0 %v1107
      %1174 = vmatprep.subr.bf16.mxu0 0
      %1175 = vmatpush1.bf16.msra.mxu0 %v1108
      %1176 = vmatprep.subr.bf16.mxu0 0
      %1177 = vmatpush1.bf16.msra.mxu0 0
      %1178 = vmatprep.subr.bf16.mxu0 0
      %1179 = vmatpush1.bf16.msra.mxu0 0
      %1180 = vmatprep.subr.bf16.mxu0 0
      %1181 = vmatpush1.bf16.msra.mxu0 0
      %1182 = vmatprep.subr.bf16.mxu0 0
      %1183 = vmatpush1.bf16.msra.mxu0 0
      %1184 = vmatprep.subr.bf16.mxu0 0
      %1185 = vmatpush1.bf16.msra.mxu0 0
      %1186 = vmatprep.subr.bf16.mxu0 0
      %1187 = vmatpush1.bf16.msra.mxu0 0
      %1188 = vmatprep.subr.bf16.mxu0 0
      %1189 = vmatpush1.bf16.msra.mxu0 0
      %1190 = vmatprep.subr.bf16.mxu0 0
      %1191 = vmatpush1.bf16.msra.mxu0 0
      %1192 = vmatprep.subr.bf16.mxu0 0
      %1193 = vmatpush1.bf16.msra.mxu0 0
      %1194 = vmatprep.subr.bf16.mxu0 0
      %1195 = vmatpush1.bf16.msra.mxu0 0
      %1196 = vmatprep.mubr.bf16.mxu0 0
      %1197 = vmatmul.mubr.bf16.gmra.mrb[0].mxu0 %v1117
      %v1198 = vpop.f32.mrb[0].mxu0
      %v1199 = vadd.f32 %v1077, %v1198
      %v1200 = vpop.f32.mrb[0].mxu0
      %v1201 = vpop.f32.mrb[0].mxu0
      %v1202 = vadd.f32 %v1077, %v1201
      %v1203 = vpop.f32.mrb[0].mxu0
      %1204 = vmatprep.mubr.bf16.mxu0 0
      %1205 = vmatmul.mubr.bf16.gmra.mrb[0].mxu0 %v1120
      %v1206 = vpop.f32.mrb[0].mxu0
      %v1207 = vadd.f32 %v1077, %v1206
      %v1208 = vpop.f32.mrb[0].mxu0
      %v1209 = vpop.f32.mrb[0].mxu0
      %v1210 = vadd.f32 %v1077, %v1209
      %v1211 = vpop.f32.mrb[0].mxu0
      %1212 = vmatprep.mubr.bf16.mxu0 0
      %1213 = vmatmul.mubr.bf16.gmra.mrb[0].mxu0 %v1123
      %v1214 = vpop.f32.mrb[0].mxu0
      %v1215 = vadd.f32 %v1077, %v1214
      %v1216 = vpop.f32.mrb[0].mxu0
      %v1217 = vpop.f32.mrb[0].mxu0
      %v1218 = vadd.f32 %v1077, %v1217
      %v1219 = vpop.f32.mrb[0].mxu0
      %1220 = vmatprep.mubr.bf16.mxu0 0
      %1221 = vmatmul.mubr.bf16.gmra.mrb[0].mxu0 %v1126
      %v1222 = vpop.f32.mrb[0].mxu0
      %v1223 = vadd.f32 %v1077, %v1222
      %v1224 = vpop.f32.mrb[0].mxu0
      %v1225 = vpop.f32.mrb[0].mxu0
      %v1226 = vadd.f32 %v1077, %v1225
      %v1227 = vpop.f32.mrb[0].mxu0
      %1228 = vmatprep.mubr.bf16.mxu0 0
      %1229 = vmatmul.mubr.bf16.gmra.mrb[0].mxu0 %v1129
      %v1230 = vpop.f32.mrb[0].mxu0
      %v1231 = vadd.f32 %v1077, %v1230
      %v1232 = vpop.f32.mrb[0].mxu0
      %v1233 = vpop.f32.mrb[0].mxu0
      %v1234 = vadd.f32 %v1077, %v1233
      %v1235 = vpop.f32.mrb[0].mxu0
      %1236 = vmatprep.mubr.bf16.mxu0 0
      %1237 = vmatmul.mubr.bf16.gmra.mrb[0].mxu0 %v1132
      %v1238 = vpop.f32.mrb[0].mxu0
      %v1239 = vadd.f32 %v1077, %v1238
      %v1240 = vpop.f32.mrb[0].mxu0
      %v1241 = vpop.f32.mrb[0].mxu0
      %v1242 = vadd.f32 %v1077, %v1241
      %v1243 = vpop.f32.mrb[0].mxu0
      %1244 = vmatprep.mubr.bf16.mxu0 0
      %1245 = vmatmul.mubr.bf16.gmra.mrb[0].mxu0 %v1135
      %v1246 = vpop.f32.mrb[0].mxu0
      %v1247 = vadd.f32 %v1077, %v1246
      %v1248 = vpop.f32.mrb[0].mxu0
      %v1249 = vpop.f32.mrb[0].mxu0
      %v1250 = vadd.f32 %v1077, %v1249
      %v1251 = vpop.f32.mrb[0].mxu0
      %1252 = vmatprep.mubr.bf16.mxu0 0
      %1253 = vmatmul.mubr.bf16.gmra.mrb[0].mxu0 %v1138
      %v1254 = vpop.f32.mrb[0].mxu0
      %v1255 = vadd.f32 %v1077, %v1254
      %v1256 = vpop.f32.mrb[0].mxu0
      %v1257 = vpop.f32.mrb[0].mxu0
      %v1258 = vadd.f32 %v1077, %v1257
      %v1259 = vpop.f32.mrb[0].mxu0
      %1260 = vmatprep.mubr.bf16.mxu0 0
      %1261 = vmatmul.mubr.bf16.gmra.mrb[0].mxu0 %v1141
      %v1262 = vpop.f32.mrb[0].mxu0
      %v1263 = vadd.f32 %v1077, %v1262
      %v1264 = vpop.f32.mrb[0].mxu0
      %v1265 = vpop.f32.mrb[0].mxu0
      %v1266 = vadd.f32 %v1077, %v1265
      %v1267 = vpop.f32.mrb[0].mxu0
      %1268 = vmatprep.mubr.bf16.mxu0 0
      %1269 = vmatmul.mubr.bf16.gmra.mrb[0].mxu0 %v1144
      %v1270 = vpop.f32.mrb[0].mxu0
      %v1271 = vadd.f32 %v1077, %v1270
      %v1272 = vpop.f32.mrb[0].mxu0
      %v1273 = vpop.f32.mrb[0].mxu0
      %v1274 = vadd.f32 %v1077, %v1273
      %v1275 = vpop.f32.mrb[0].mxu0
      %1276 = vmatprep.mubr.bf16.mxu0 0
      %1277 = vmatmul.mubr.bf16.gmra.mrb[0].mxu0 %v1147
      %v1278 = vpop.f32.mrb[0].mxu0
      %v1279 = vadd.f32 %v1077, %v1278
      %v1280 = vpop.f32.mrb[0].mxu0
      %v1281 = vpop.f32.mrb[0].mxu0
      %v1282 = vadd.f32 %v1077, %v1281
      %v1283 = vpop.f32.mrb[0].mxu0
      %1284 = vmatprep.mubr.bf16.mxu0 0
      %1285 = vmatmul.mubr.bf16.gmra.mrb[0].mxu0 %v1150
      %v1286 = vpop.f32.mrb[0].mxu0
      %v1287 = vadd.f32 %v1077, %v1286
      %v1288 = vpop.f32.mrb[0].mxu0
      %v1289 = vpop.f32.mrb[0].mxu0
      %v1290 = vadd.f32 %v1077, %v1289
      %v1291 = vpop.f32.mrb[0].mxu0
      %1292 = vmatprep.mubr.bf16.mxu0 0
      %1293 = vmatmul.mubr.bf16.gmra.mrb[0].mxu0 %v1153
      %v1294 = vpop.f32.mrb[0].mxu0
      %v1295 = vadd.f32 %v1077, %v1294
      %v1296 = vpop.f32.mrb[0].mxu0
      %v1297 = vpop.f32.mrb[0].mxu0
      %v1298 = vadd.f32 %v1077, %v1297
      %v1299 = vpop.f32.mrb[0].mxu0
      %1300 = vmatprep.mubr.bf16.mxu0 0
      %1301 = vmatmul.mubr.bf16.gmra.mrb[0].mxu0 %v1156
      %v1302 = vpop.f32.mrb[0].mxu0
      %v1303 = vadd.f32 %v1077, %v1302
      %v1304 = vpop.f32.mrb[0].mxu0
      %v1305 = vpop.f32.mrb[0].mxu0
      %v1306 = vadd.f32 %v1077, %v1305
      %v1307 = vpop.f32.mrb[0].mxu0
      %1308 = vmatprep.mubr.bf16.mxu0 0
      %1309 = vmatmul.mubr.bf16.gmra.mrb[0].mxu0 %v1159
      %v1310 = vpop.f32.mrb[0].mxu0
      %v1311 = vadd.f32 %v1077, %v1310
      %v1312 = vpop.f32.mrb[0].mxu0
      %v1313 = vpop.f32.mrb[0].mxu0
      %v1314 = vadd.f32 %v1077, %v1313
      %v1315 = vpop.f32.mrb[0].mxu0
      %1316 = vmatprep.mubr.bf16.mxu0 0
      %1317 = vmatmul.mubr.bf16.gmra.mrb[0].mxu0 %v1162
      %v1318 = vpop.f32.mrb[0].mxu0
      %v1319 = vadd.f32 %v1077, %v1318
      %v1320 = vpop.f32.mrb[0].mxu0
      %v1321 = vpop.f32.mrb[0].mxu0
      %v1322 = vadd.f32 %v1077, %v1321
      %v1323 = vpop.f32.mrb[0].mxu0
      %1324 = vdwg.mxu0
      %s1325 = scalar_lea.vmem %s1, 48
      %v1326 = vld [vmem:[%s1325] sm:$0xf]
      %v1327 = vld [vmem:[%s1325 + $0x4] sm:$0xf]
      %v1328 = vld [vmem:[%s1325 + $0x8] sm:$0xf]
      %v1329 = vld [vmem:[%s1325 + $0xc] sm:$0xf]
      %v1330 = vld [vmem:[%s1325 + $0x10] sm:$0xf]
      %v1331 = vld [vmem:[%s1325 + $0x14] sm:$0xf]
      %v1332 = vld [vmem:[%s1325 + $0x18] sm:$0xf]
      %v1333 = vld [vmem:[%s1325 + $0x1c] sm:$0xf]
      %v1334 = vld [vmem:[%s1325 + $0x20] sm:$0xf]
      %v1335 = vld [vmem:[%s1325 + $0x24] sm:$0xf]
      %v1336 = vld [vmem:[%s1325 + $0x28] sm:$0xf]
      %v1337 = vld [vmem:[%s1325 + $0x2c] sm:$0xf]
      %v1350 = vunpack.c.l.b16 %v1326
      %v1351 = vunpack.c.l.b16 %v1327
      %v1352 = vunpack.c.l.b16 %v1328
      %v1353 = vunpack.c.l.b16 %v1329
      %v1354 = vunpack.c.l.b16 %v1330
      %v1355 = vunpack.c.l.b16 %v1331
      %v1356 = vunpack.c.l.b16 %v1332
      %v1357 = vunpack.c.l.b16 %v1333
      %v1358 = vunpack.c.l.b16 %v1334
      %v1359 = vunpack.c.l.b16 %v1335
      %v1360 = vunpack.c.l.b16 %v1336
      %v1361 = vunpack.c.l.b16 %v1337
      %v1362 = vpack.c.b16 %v1351, %v1350
      %v1363 = vpack.c.b16 %v1353, %v1352
      %v1364 = vpack.c.b16 %v1355, %v1354
      %v1365 = vpack.c.b16 %v1357, %v1356
      %v1366 = vpack.c.b16 %v1359, %v1358
      %v1367 = vpack.c.b16 %v1361, %v1360
      %v1375 = vsel %vm1115, %v1059, 0
      %1377 = vmatprep.subr.bf16.mxu0 0
      %1378 = vmatpush1.bf16.msra.mxu0 %v1362
      %1379 = vmatprep.subr.bf16.mxu0 0
      %1380 = vmatpush1.bf16.msra.mxu0 %v1363
      %1381 = vmatprep.subr.bf16.mxu0 0
      %1382 = vmatpush1.bf16.msra.mxu0 %v1364
      %1383 = vmatprep.subr.bf16.mxu0 0
      %1384 = vmatpush1.bf16.msra.mxu0 %v1365
      %1385 = vmatprep.subr.bf16.mxu0 0
      %1386 = vmatpush1.bf16.msra.mxu0 %v1366
      %1387 = vmatprep.subr.bf16.mxu0 0
      %1388 = vmatpush1.bf16.msra.mxu0 %v1367
      %1389 = vmatprep.subr.bf16.mxu0 0
      %1390 = vmatpush1.bf16.msra.mxu0 0
      %1391 = vmatprep.subr.bf16.mxu0 0
      %1392 = vmatpush1.bf16.msra.mxu0 0
      %1393 = vmatprep.subr.bf16.mxu0 0
      %1394 = vmatpush1.bf16.msra.mxu0 0
      %1395 = vmatprep.subr.bf16.mxu0 0
      %1396 = vmatpush1.bf16.msra.mxu0 0
      %1397 = vmatprep.subr.bf16.mxu0 0
      %1398 = vmatpush1.bf16.msra.mxu0 0
      %1399 = vmatprep.subr.bf16.mxu0 0
      %1400 = vmatpush1.bf16.msra.mxu0 0
      %1401 = vmatprep.subr.bf16.mxu0 0
      %1402 = vmatpush1.bf16.msra.mxu0 0
      %1403 = vmatprep.subr.bf16.mxu0 0
      %1404 = vmatpush1.bf16.msra.mxu0 0
      %1405 = vmatprep.subr.bf16.mxu0 0
      %1406 = vmatpush1.bf16.msra.mxu0 0
      %1407 = vmatprep.subr.bf16.mxu0 0
      %1408 = vmatpush1.bf16.msra.mxu0 0
      %1409 = vmatprep.mubr.bf16.mxu0 0
      %1410 = vmatmul.mubr.bf16.gmra.mrb[0].mxu0 %v1120
      %v1411 = vpop.f32.mrb[0].mxu0
      %v1412 = vadd.f32 0.0, %v1411
      %v1413 = vpop.f32.mrb[0].mxu0
      %v1414 = vpop.f32.mrb[0].mxu0
      %v1415 = vadd.f32 0.0, %v1414
      %v1416 = vpop.f32.mrb[0].mxu0
      %1417 = vmatprep.mubr.bf16.mxu0 0
      %1418 = vmatmul.mubr.bf16.gmra.mrb[0].mxu0 %v1123
      %v1419 = vpop.f32.mrb[0].mxu0
      %v1420 = vadd.f32 0.0, %v1419
      %v1421 = vpop.f32.mrb[0].mxu0
      %v1422 = vpop.f32.mrb[0].mxu0
      %v1423 = vadd.f32 0.0, %v1422
      %v1424 = vpop.f32.mrb[0].mxu0
      %1425 = vmatprep.mubr.bf16.mxu0 0
      %1426 = vmatmul.mubr.bf16.gmra.mrb[0].mxu0 %v1126
      %v1427 = vpop.f32.mrb[0].mxu0
      %v1428 = vadd.f32 0.0, %v1427
      %v1429 = vpop.f32.mrb[0].mxu0
      %v1430 = vpop.f32.mrb[0].mxu0
      %v1431 = vadd.f32 0.0, %v1430
      %v1432 = vpop.f32.mrb[0].mxu0
      %1433 = vmatprep.mubr.bf16.mxu0 0
      %1434 = vmatmul.mubr.bf16.gmra.mrb[0].mxu0 %v1129
      %v1435 = vpop.f32.mrb[0].mxu0
      %v1436 = vadd.f32 0.0, %v1435
      %v1437 = vpop.f32.mrb[0].mxu0
      %v1438 = vpop.f32.mrb[0].mxu0
      %v1439 = vadd.f32 0.0, %v1438
      %v1440 = vpop.f32.mrb[0].mxu0
      %1441 = vmatprep.mubr.bf16.mxu0 0
      %1442 = vmatmul.mubr.bf16.gmra.mrb[0].mxu0 %v1132
      %v1443 = vpop.f32.mrb[0].mxu0
      %v1444 = vadd.f32 0.0, %v1443
      %v1445 = vpop.f32.mrb[0].mxu0
      %v1446 = vpop.f32.mrb[0].mxu0
      %v1447 = vadd.f32 0.0, %v1446
      %v1448 = vpop.f32.mrb[0].mxu0
      %1449 = vmatprep.mubr.bf16.mxu0 0
      %1450 = vmatmul.mubr.bf16.gmra.mrb[0].mxu0 %v1135
      %v1451 = vpop.f32.mrb[0].mxu0
      %v1452 = vadd.f32 0.0, %v1451
      %v1453 = vpop.f32.mrb[0].mxu0
      %v1454 = vpop.f32.mrb[0].mxu0
      %v1455 = vadd.f32 0.0, %v1454
      %v1456 = vpop.f32.mrb[0].mxu0
      %1457 = vmatprep.mubr.bf16.mxu0 0
      %1458 = vmatmul.mubr.bf16.gmra.mrb[0].mxu0 %v1138
      %v1459 = vpop.f32.mrb[0].mxu0
      %v1460 = vadd.f32 0.0, %v1459
      %v1461 = vpop.f32.mrb[0].mxu0
      %v1462 = vpop.f32.mrb[0].mxu0
      %v1463 = vadd.f32 0.0, %v1462
      %v1464 = vpop.f32.mrb[0].mxu0
      %1465 = vmatprep.mubr.bf16.mxu0 0
      %1466 = vmatmul.mubr.bf16.gmra.mrb[0].mxu0 %v1141
      %v1467 = vpop.f32.mrb[0].mxu0
      %v1468 = vadd.f32 0.0, %v1467
      %v1469 = vpop.f32.mrb[0].mxu0
      %v1470 = vpop.f32.mrb[0].mxu0
      %v1471 = vadd.f32 0.0, %v1470
      %v1472 = vpop.f32.mrb[0].mxu0
      %1473 = vmatprep.mubr.bf16.mxu0 0
      %1474 = vmatmul.mubr.bf16.gmra.mrb[0].mxu0 %v1144
      %v1475 = vpop.f32.mrb[0].mxu0
      %v1476 = vadd.f32 0.0, %v1475
      %v1477 = vpop.f32.mrb[0].mxu0
      %v1478 = vpop.f32.mrb[0].mxu0
      %v1479 = vadd.f32 0.0, %v1478
      %v1480 = vpop.f32.mrb[0].mxu0
      %1481 = vmatprep.mubr.bf16.mxu0 0
      %1482 = vmatmul.mubr.bf16.gmra.mrb[0].mxu0 %v1147
      %v1483 = vpop.f32.mrb[0].mxu0
      %v1484 = vadd.f32 0.0, %v1483
      %v1485 = vpop.f32.mrb[0].mxu0
      %v1486 = vpop.f32.mrb[0].mxu0
      %v1487 = vadd.f32 0.0, %v1486
      %v1488 = vpop.f32.mrb[0].mxu0
      %1489 = vmatprep.mubr.bf16.mxu0 0
      %1490 = vmatmul.mubr.bf16.gmra.mrb[0].mxu0 %v1150
      %v1491 = vpop.f32.mrb[0].mxu0
      %v1492 = vadd.f32 0.0, %v1491
      %v1493 = vpop.f32.mrb[0].mxu0
      %v1494 = vpop.f32.mrb[0].mxu0
      %v1495 = vadd.f32 0.0, %v1494
      %v1496 = vpop.f32.mrb[0].mxu0
      %1497 = vmatprep.mubr.bf16.mxu0 0
      %1498 = vmatmul.mubr.bf16.gmra.mrb[0].mxu0 %v1153
      %v1499 = vpop.f32.mrb[0].mxu0
      %v1500 = vadd.f32 0.0, %v1499
      %v1501 = vpop.f32.mrb[0].mxu0
      %v1502 = vpop.f32.mrb[0].mxu0
      %v1503 = vadd.f32 0.0, %v1502
      %v1504 = vpop.f32.mrb[0].mxu0
      %1505 = vmatprep.mubr.bf16.mxu0 0
      %1506 = vmatmul.mubr.bf16.gmra.mrb[0].mxu0 %v1156
      %v1507 = vpop.f32.mrb[0].mxu0
      %v1508 = vadd.f32 0.0, %v1507
      %v1509 = vpop.f32.mrb[0].mxu0
      %v1510 = vpop.f32.mrb[0].mxu0
      %v1511 = vadd.f32 0.0, %v1510
      %v1512 = vpop.f32.mrb[0].mxu0
      %1513 = vmatprep.mubr.bf16.mxu0 0
      %1514 = vmatmul.mubr.bf16.gmra.mrb[0].mxu0 %v1159
      %v1515 = vpop.f32.mrb[0].mxu0
      %v1516 = vadd.f32 0.0, %v1515
      %v1517 = vpop.f32.mrb[0].mxu0
      %v1518 = vpop.f32.mrb[0].mxu0
      %v1519 = vadd.f32 0.0, %v1518
      %v1520 = vpop.f32.mrb[0].mxu0
      %1521 = vmatprep.mubr.bf16.mxu0 0
      %1522 = vmatmul.mubr.bf16.gmra.mrb[0].mxu0 %v1162
      %v1523 = vpop.f32.mrb[0].mxu0
      %v1524 = vadd.f32 0.0, %v1523
      %v1525 = vpop.f32.mrb[0].mxu0
      %v1526 = vpop.f32.mrb[0].mxu0
      %v1527 = vadd.f32 0.0, %v1526
      %v1528 = vpop.f32.mrb[0].mxu0
      %1529 = vmatprep.mubr.bf16.mxu0 0
      %1530 = vmatmul.mubr.bf16.gmra.mrb[0].mxu0 %v1375
      %v1531 = vpop.f32.mrb[0].mxu0
      %v1532 = vadd.f32 0.0, %v1531
      %v1533 = vpop.f32.mrb[0].mxu0
      %v1534 = vpop.f32.mrb[0].mxu0
      %v1535 = vadd.f32 0.0, %v1534
      %v1536 = vpop.f32.mrb[0].mxu0
      %1537 = vdwg.mxu0
      %v1538 = vadd.f32 %v1199, %v1412
      %v1539 = vadd.f32 %v1202, %v1415
      %v1540 = vadd.f32 %v1207, %v1420
      %v1541 = vadd.f32 %v1210, %v1423
      %v1542 = vadd.f32 %v1215, %v1428
      %v1543 = vadd.f32 %v1218, %v1431
      %v1544 = vadd.f32 %v1223, %v1436
      %v1545 = vadd.f32 %v1226, %v1439
      %v1546 = vadd.f32 %v1231, %v1444
      %v1547 = vadd.f32 %v1234, %v1447
      %v1548 = vadd.f32 %v1239, %v1452
      %v1549 = vadd.f32 %v1242, %v1455
      %v1550 = vadd.f32 %v1247, %v1460
      %v1551 = vadd.f32 %v1250, %v1463
      %v1552 = vadd.f32 %v1255, %v1468
      %v1553 = vadd.f32 %v1258, %v1471
      %v1554 = vadd.f32 %v1263, %v1476
      %v1555 = vadd.f32 %v1266, %v1479
      %v1556 = vadd.f32 %v1271, %v1484
      %v1557 = vadd.f32 %v1274, %v1487
      %v1558 = vadd.f32 %v1279, %v1492
      %v1559 = vadd.f32 %v1282, %v1495
      %v1560 = vadd.f32 %v1287, %v1500
      %v1561 = vadd.f32 %v1290, %v1503
      %v1562 = vadd.f32 %v1295, %v1508
      %v1563 = vadd.f32 %v1298, %v1511
      %v1564 = vadd.f32 %v1303, %v1516
      %v1565 = vadd.f32 %v1306, %v1519
      %v1566 = vadd.f32 %v1311, %v1524
      %v1567 = vadd.f32 %v1314, %v1527
      %v1568 = vadd.f32 %v1319, %v1532
      %v1569 = vadd.f32 %v1322, %v1535
      %s1570 = scalar_lea.vmem %s1, 96
      %v1571 = vld [vmem:[%s1570] sm:$0xf]
      %v1572 = vld [vmem:[%s1570 + $0x4] sm:$0xf]
      %v1573 = vld [vmem:[%s1570 + $0x8] sm:$0xf]
      %v1574 = vld [vmem:[%s1570 + $0xc] sm:$0xf]
      %v1575 = vld [vmem:[%s1570 + $0x10] sm:$0xf]
      %v1576 = vld [vmem:[%s1570 + $0x14] sm:$0xf]
      %v1577 = vld [vmem:[%s1570 + $0x18] sm:$0xf]
      %v1578 = vld [vmem:[%s1570 + $0x1c] sm:$0xf]
      %v1579 = vld [vmem:[%s1570 + $0x20] sm:$0xf]
      %v1580 = vld [vmem:[%s1570 + $0x24] sm:$0xf]
      %v1581 = vld [vmem:[%s1570 + $0x28] sm:$0xf]
      %v1582 = vld [vmem:[%s1570 + $0x2c] sm:$0xf]
      %v1595 = vunpack.c.l.b16 %v1571
      %v1596 = vunpack.c.l.b16 %v1572
      %v1597 = vunpack.c.l.b16 %v1573
      %v1598 = vunpack.c.l.b16 %v1574
      %v1599 = vunpack.c.l.b16 %v1575
      %v1600 = vunpack.c.l.b16 %v1576
      %v1601 = vunpack.c.l.b16 %v1577
      %v1602 = vunpack.c.l.b16 %v1578
      %v1603 = vunpack.c.l.b16 %v1579
      %v1604 = vunpack.c.l.b16 %v1580
      %v1605 = vunpack.c.l.b16 %v1581
      %v1606 = vunpack.c.l.b16 %v1582
      %v1607 = vpack.c.b16 %v1596, %v1595
      %v1608 = vpack.c.b16 %v1598, %v1597
      %v1609 = vpack.c.b16 %v1600, %v1599
      %v1610 = vpack.c.b16 %v1602, %v1601
      %v1611 = vpack.c.b16 %v1604, %v1603
      %v1612 = vpack.c.b16 %v1606, %v1605
      %1619 = vmatprep.subr.bf16.mxu0 0
      %1620 = vmatpush1.bf16.msra.mxu0 %v1607
      %1621 = vmatprep.subr.bf16.mxu0 0
      %1622 = vmatpush1.bf16.msra.mxu0 %v1608
      %1623 = vmatprep.subr.bf16.mxu0 0
      %1624 = vmatpush1.bf16.msra.mxu0 %v1609
      %1625 = vmatprep.subr.bf16.mxu0 0
      %1626 = vmatpush1.bf16.msra.mxu0 %v1610
      %1627 = vmatprep.subr.bf16.mxu0 0
      %1628 = vmatpush1.bf16.msra.mxu0 %v1611
      %1629 = vmatprep.subr.bf16.mxu0 0
      %1630 = vmatpush1.bf16.msra.mxu0 %v1612
      %1631 = vmatprep.subr.bf16.mxu0 0
      %1632 = vmatpush1.bf16.msra.mxu0 0
      %1633 = vmatprep.subr.bf16.mxu0 0
      %1634 = vmatpush1.bf16.msra.mxu0 0
      %1635 = vmatprep.subr.bf16.mxu0 0
      %1636 = vmatpush1.bf16.msra.mxu0 0
      %1637 = vmatprep.subr.bf16.mxu0 0
      %1638 = vmatpush1.bf16.msra.mxu0 0
      %1639 = vmatprep.subr.bf16.mxu0 0
      %1640 = vmatpush1.bf16.msra.mxu0 0
      %1641 = vmatprep.subr.bf16.mxu0 0
      %1642 = vmatpush1.bf16.msra.mxu0 0
      %1643 = vmatprep.subr.bf16.mxu0 0
      %1644 = vmatpush1.bf16.msra.mxu0 0
      %1645 = vmatprep.subr.bf16.mxu0 0
      %1646 = vmatpush1.bf16.msra.mxu0 0
      %1647 = vmatprep.subr.bf16.mxu0 0
      %1648 = vmatpush1.bf16.msra.mxu0 0
      %1649 = vmatprep.subr.bf16.mxu0 0
      %1650 = vmatpush1.bf16.msra.mxu0 0
      %1651 = vmatprep.mubr.bf16.mxu0 0
      %1652 = vmatmul.mubr.bf16.gmra.mrb[0].mxu0 %v1123
      %v1653 = vpop.f32.mrb[0].mxu0
      %v1654 = vadd.f32 0.0, %v1653
      %v1655 = vpop.f32.mrb[0].mxu0
      %v1656 = vpop.f32.mrb[0].mxu0
      %v1657 = vadd.f32 0.0, %v1656
      %v1658 = vpop.f32.mrb[0].mxu0
      %1659 = vmatprep.mubr.bf16.mxu0 0
      %1660 = vmatmul.mubr.bf16.gmra.mrb[0].mxu0 %v1126
      %v1661 = vpop.f32.mrb[0].mxu0
      %v1662 = vadd.f32 0.0, %v1661
      %v1663 = vpop.f32.mrb[0].mxu0
      %v1664 = vpop.f32.mrb[0].mxu0
      %v1665 = vadd.f32 0.0, %v1664
      %v1666 = vpop.f32.mrb[0].mxu0
      %1667 = vmatprep.mubr.bf16.mxu0 0
      %1668 = vmatmul.mubr.bf16.gmra.mrb[0].mxu0 %v1129
      %v1669 = vpop.f32.mrb[0].mxu0
      %v1670 = vadd.f32 0.0, %v1669
      %v1671 = vpop.f32.mrb[0].mxu0
      %v1672 = vpop.f32.mrb[0].mxu0
      %v1673 = vadd.f32 0.0, %v1672
      %v1674 = vpop.f32.mrb[0].mxu0
      %1675 = vmatprep.mubr.bf16.mxu0 0
      %1676 = vmatmul.mubr.bf16.gmra.mrb[0].mxu0 %v1132
      %v1677 = vpop.f32.mrb[0].mxu0
      %v1678 = vadd.f32 0.0, %v1677
      %v1679 = vpop.f32.mrb[0].mxu0
      %v1680 = vpop.f32.mrb[0].mxu0
      %v1681 = vadd.f32 0.0, %v1680
      %v1682 = vpop.f32.mrb[0].mxu0
      %1683 = vmatprep.mubr.bf16.mxu0 0
      %1684 = vmatmul.mubr.bf16.gmra.mrb[0].mxu0 %v1135
      %v1685 = vpop.f32.mrb[0].mxu0
      %v1686 = vadd.f32 0.0, %v1685
      %v1687 = vpop.f32.mrb[0].mxu0
      %v1688 = vpop.f32.mrb[0].mxu0
      %v1689 = vadd.f32 0.0, %v1688
      %v1690 = vpop.f32.mrb[0].mxu0
      %1691 = vmatprep.mubr.bf16.mxu0 0
      %1692 = vmatmul.mubr.bf16.gmra.mrb[0].mxu0 %v1138
      %v1693 = vpop.f32.mrb[0].mxu0
      %v1694 = vadd.f32 0.0, %v1693
      %v1695 = vpop.f32.mrb[0].mxu0
      %v1696 = vpop.f32.mrb[0].mxu0
      %v1697 = vadd.f32 0.0, %v1696
      %v1698 = vpop.f32.mrb[0].mxu0
      %1699 = vmatprep.mubr.bf16.mxu0 0
      %1700 = vmatmul.mubr.bf16.gmra.mrb[0].mxu0 %v1141
      %v1701 = vpop.f32.mrb[0].mxu0
      %v1702 = vadd.f32 0.0, %v1701
      %v1703 = vpop.f32.mrb[0].mxu0
      %v1704 = vpop.f32.mrb[0].mxu0
      %v1705 = vadd.f32 0.0, %v1704
      %v1706 = vpop.f32.mrb[0].mxu0
      %1707 = vmatprep.mubr.bf16.mxu0 0
      %1708 = vmatmul.mubr.bf16.gmra.mrb[0].mxu0 %v1144
      %v1709 = vpop.f32.mrb[0].mxu0
      %v1710 = vadd.f32 0.0, %v1709
      %v1711 = vpop.f32.mrb[0].mxu0
      %v1712 = vpop.f32.mrb[0].mxu0
      %v1713 = vadd.f32 0.0, %v1712
      %v1714 = vpop.f32.mrb[0].mxu0
      %1715 = vmatprep.mubr.bf16.mxu0 0
      %1716 = vmatmul.mubr.bf16.gmra.mrb[0].mxu0 %v1147
      %v1717 = vpop.f32.mrb[0].mxu0
      %v1718 = vadd.f32 0.0, %v1717
      %v1719 = vpop.f32.mrb[0].mxu0
      %v1720 = vpop.f32.mrb[0].mxu0
      %v1721 = vadd.f32 0.0, %v1720
      %v1722 = vpop.f32.mrb[0].mxu0
      %1723 = vmatprep.mubr.bf16.mxu0 0
      %1724 = vmatmul.mubr.bf16.gmra.mrb[0].mxu0 %v1150
      %v1725 = vpop.f32.mrb[0].mxu0
      %v1726 = vadd.f32 0.0, %v1725
      %v1727 = vpop.f32.mrb[0].mxu0
      %v1728 = vpop.f32.mrb[0].mxu0
      %v1729 = vadd.f32 0.0, %v1728
      %v1730 = vpop.f32.mrb[0].mxu0
      %1731 = vmatprep.mubr.bf16.mxu0 0
      %1732 = vmatmul.mubr.bf16.gmra.mrb[0].mxu0 %v1153
      %v1733 = vpop.f32.mrb[0].mxu0
      %v1734 = vadd.f32 0.0, %v1733
      %v1735 = vpop.f32.mrb[0].mxu0
      %v1736 = vpop.f32.mrb[0].mxu0
      %v1737 = vadd.f32 0.0, %v1736
      %v1738 = vpop.f32.mrb[0].mxu0
      %1739 = vmatprep.mubr.bf16.mxu0 0
      %1740 = vmatmul.mubr.bf16.gmra.mrb[0].mxu0 %v1156
      %v1741 = vpop.f32.mrb[0].mxu0
      %v1742 = vadd.f32 0.0, %v1741
      %v1743 = vpop.f32.mrb[0].mxu0
      %v1744 = vpop.f32.mrb[0].mxu0
      %v1745 = vadd.f32 0.0, %v1744
      %v1746 = vpop.f32.mrb[0].mxu0
      %1747 = vmatprep.mubr.bf16.mxu0 0
      %1748 = vmatmul.mubr.bf16.gmra.mrb[0].mxu0 %v1159
      %v1749 = vpop.f32.mrb[0].mxu0
      %v1750 = vadd.f32 0.0, %v1749
      %v1751 = vpop.f32.mrb[0].mxu0
      %v1752 = vpop.f32.mrb[0].mxu0
      %v1753 = vadd.f32 0.0, %v1752
      %v1754 = vpop.f32.mrb[0].mxu0
      %1755 = vmatprep.mubr.bf16.mxu0 0
      %1756 = vmatmul.mubr.bf16.gmra.mrb[0].mxu0 %v1162
      %v1757 = vpop.f32.mrb[0].mxu0
      %v1758 = vadd.f32 0.0, %v1757
      %v1759 = vpop.f32.mrb[0].mxu0
      %v1760 = vpop.f32.mrb[0].mxu0
      %v1761 = vadd.f32 0.0, %v1760
      %v1762 = vpop.f32.mrb[0].mxu0
      %1763 = vmatprep.mubr.bf16.mxu0 0
      %1764 = vmatmul.mubr.bf16.gmra.mrb[0].mxu0 %v1375
      %v1765 = vpop.f32.mrb[0].mxu0
      %v1766 = vadd.f32 0.0, %v1765
      %v1767 = vpop.f32.mrb[0].mxu0
      %v1768 = vpop.f32.mrb[0].mxu0
      %v1769 = vadd.f32 0.0, %v1768
      %v1770 = vpop.f32.mrb[0].mxu0
      %1771 = vmatprep.mubr.bf16.mxu0 0
      %1772 = vmatmul.mubr.bf16.gmra.mrb[0].mxu0 %v1117
      %v1773 = vpop.f32.mrb[0].mxu0
      %v1774 = vadd.f32 0.0, %v1773
      %v1775 = vpop.f32.mrb[0].mxu0
      %v1776 = vpop.f32.mrb[0].mxu0
      %v1777 = vadd.f32 0.0, %v1776
      %v1778 = vpop.f32.mrb[0].mxu0
      %1779 = vdwg.mxu0
      %v1780 = vadd.f32 %v1538, %v1654
      %v1781 = vadd.f32 %v1539, %v1657
      %v1782 = vadd.f32 %v1540, %v1662
      %v1783 = vadd.f32 %v1541, %v1665
      %v1784 = vadd.f32 %v1542, %v1670
      %v1785 = vadd.f32 %v1543, %v1673
      %v1786 = vadd.f32 %v1544, %v1678
      %v1787 = vadd.f32 %v1545, %v1681
      %v1788 = vadd.f32 %v1546, %v1686
      %v1789 = vadd.f32 %v1547, %v1689
      %v1790 = vadd.f32 %v1548, %v1694
      %v1791 = vadd.f32 %v1549, %v1697
      %v1792 = vadd.f32 %v1550, %v1702
      %v1793 = vadd.f32 %v1551, %v1705
      %v1794 = vadd.f32 %v1552, %v1710
      %v1795 = vadd.f32 %v1553, %v1713
      %v1796 = vadd.f32 %v1554, %v1718
      %v1797 = vadd.f32 %v1555, %v1721
      %v1798 = vadd.f32 %v1556, %v1726
      %v1799 = vadd.f32 %v1557, %v1729
      %v1800 = vadd.f32 %v1558, %v1734
      %v1801 = vadd.f32 %v1559, %v1737
      %v1802 = vadd.f32 %v1560, %v1742
      %v1803 = vadd.f32 %v1561, %v1745
      %v1804 = vadd.f32 %v1562, %v1750
      %v1805 = vadd.f32 %v1563, %v1753
      %v1806 = vadd.f32 %v1564, %v1758
      %v1807 = vadd.f32 %v1565, %v1761
      %v1808 = vadd.f32 %v1566, %v1766
      %v1809 = vadd.f32 %v1567, %v1769
      %v1810 = vadd.f32 %v1568, %v1774
      %v1811 = vadd.f32 %v1569, %v1777
      %v1812 = vpack.c.bf16 %v1781, %v1780
      %v1813 = vpack.c.bf16 %v1783, %v1782
      %v1814 = vpack.c.bf16 %v1785, %v1784
      %v1815 = vpack.c.bf16 %v1787, %v1786
      %v1816 = vpack.c.bf16 %v1789, %v1788
      %v1817 = vpack.c.bf16 %v1791, %v1790
      %v1818 = vpack.c.bf16 %v1793, %v1792
      %v1819 = vpack.c.bf16 %v1795, %v1794
      %v1820 = vpack.c.bf16 %v1797, %v1796
      %v1821 = vpack.c.bf16 %v1799, %v1798
      %v1822 = vpack.c.bf16 %v1801, %v1800
      %v1823 = vpack.c.bf16 %v1803, %v1802
      %v1824 = vpack.c.bf16 %v1805, %v1804
      %v1825 = vpack.c.bf16 %v1807, %v1806
      %v1826 = vpack.c.bf16 %v1809, %v1808
      %v1827 = vpack.c.bf16 %v1811, %v1810
      %v1844 = vunpack.c.l.b16 %v1812
      %v1845 = vunpack.c.h.b16 %v1812
      %v1846 = vunpack.c.l.b16 %v1813
      %v1847 = vunpack.c.h.b16 %v1813
      %v1848 = vunpack.c.l.b16 %v1814
      %v1849 = vunpack.c.h.b16 %v1814
      %v1850 = vunpack.c.l.b16 %v1815
      %v1851 = vunpack.c.h.b16 %v1815
      %v1852 = vunpack.c.l.b16 %v1816
      %v1853 = vunpack.c.h.b16 %v1816
      %v1854 = vunpack.c.l.b16 %v1817
      %v1855 = vunpack.c.h.b16 %v1817
      %v1856 = vunpack.c.l.b16 %v1818
      %v1857 = vunpack.c.h.b16 %v1818
      %v1858 = vunpack.c.l.b16 %v1819
      %v1859 = vunpack.c.h.b16 %v1819
      %v1860 = vunpack.c.l.b16 %v1820
      %v1861 = vunpack.c.h.b16 %v1820
      %v1862 = vunpack.c.l.b16 %v1821
      %v1863 = vunpack.c.h.b16 %v1821
      %v1864 = vunpack.c.l.b16 %v1822
      %v1865 = vunpack.c.h.b16 %v1822
      %v1866 = vunpack.c.l.b16 %v1823
      %v1867 = vunpack.c.h.b16 %v1823
      %v1868 = vunpack.c.l.b16 %v1824
      %v1869 = vunpack.c.h.b16 %v1824
      %v1870 = vunpack.c.l.b16 %v1825
      %v1871 = vunpack.c.h.b16 %v1825
      %v1872 = vunpack.c.l.b16 %v1826
      %v1873 = vunpack.c.h.b16 %v1826
      %v1874 = vunpack.c.l.b16 %v1827
      %v1875 = vunpack.c.h.b16 %v1827
      %v1876 = vpack.c.b16 %v1844, %v1844
      %v1877 = vpack.c.b16 %v1845, %v1845
      %v1878 = vpack.c.b16 %v1846, %v1846
      %v1879 = vpack.c.b16 %v1847, %v1847
      %v1880 = vpack.c.b16 %v1848, %v1848
      %v1881 = vpack.c.b16 %v1849, %v1849
      %v1882 = vpack.c.b16 %v1850, %v1850
      %v1883 = vpack.c.b16 %v1851, %v1851
      %v1884 = vpack.c.b16 %v1852, %v1852
      %v1885 = vpack.c.b16 %v1853, %v1853
      %v1886 = vpack.c.b16 %v1854, %v1854
      %v1887 = vpack.c.b16 %v1855, %v1855
      %v1888 = vpack.c.b16 %v1856, %v1856
      %v1889 = vpack.c.b16 %v1857, %v1857
      %v1890 = vpack.c.b16 %v1858, %v1858
      %v1891 = vpack.c.b16 %v1859, %v1859
      %v1892 = vpack.c.b16 %v1860, %v1860
      %v1893 = vpack.c.b16 %v1861, %v1861
      %v1894 = vpack.c.b16 %v1862, %v1862
      %v1895 = vpack.c.b16 %v1863, %v1863
      %v1896 = vpack.c.b16 %v1864, %v1864
      %v1897 = vpack.c.b16 %v1865, %v1865
      %v1898 = vpack.c.b16 %v1866, %v1866
      %v1899 = vpack.c.b16 %v1867, %v1867
      %v1900 = vpack.c.b16 %v1868, %v1868
      %v1901 = vpack.c.b16 %v1869, %v1869
      %v1902 = vpack.c.b16 %v1870, %v1870
      %v1903 = vpack.c.b16 %v1871, %v1871
      %v1904 = vpack.c.b16 %v1872, %v1872
      %v1905 = vpack.c.b16 %v1873, %v1873
      %v1906 = vpack.c.b16 %v1874, %v1874
      %v1907 = vpack.c.b16 %v1875, %v1875
      %vm1940 = vcmask 257024
      %1941 = vst.msk [vmem:[%s289] sm:$0xf] %vm1940, %v1876
      %1942 = vst.msk [vmem:[%s289 + $0x4] sm:$0xf] %vm1940, %v1877
      %1943 = vst.msk [vmem:[%s289 + $0x8] sm:$0xf] %vm1940, %v1878
      %1944 = vst.msk [vmem:[%s289 + $0xc] sm:$0xf] %vm1940, %v1879
      %1945 = vst.msk [vmem:[%s289 + $0x10] sm:$0xf] %vm1940, %v1880
      %1946 = vst.msk [vmem:[%s289 + $0x14] sm:$0xf] %vm1940, %v1881
      %1947 = vst.msk [vmem:[%s289 + $0x18] sm:$0xf] %vm1940, %v1882
      %1948 = vst.msk [vmem:[%s289 + $0x1c] sm:$0xf] %vm1940, %v1883
      %1949 = vst.msk [vmem:[%s289 + $0x20] sm:$0xf] %vm1940, %v1884
      %1950 = vst.msk [vmem:[%s289 + $0x24] sm:$0xf] %vm1940, %v1885
      %1951 = vst.msk [vmem:[%s289 + $0x28] sm:$0xf] %vm1940, %v1886
      %1952 = vst.msk [vmem:[%s289 + $0x2c] sm:$0xf] %vm1940, %v1887
      %1953 = vst.msk [vmem:[%s289 + $0x30] sm:$0xf] %vm1940, %v1888
      %1954 = vst.msk [vmem:[%s289 + $0x34] sm:$0xf] %vm1940, %v1889
      %1955 = vst.msk [vmem:[%s289 + $0x38] sm:$0xf] %vm1940, %v1890
      %1956 = vst.msk [vmem:[%s289 + $0x3c] sm:$0xf] %vm1940, %v1891
      %1957 = vst.msk [vmem:[%s289 + $0x40] sm:$0xf] %vm1940, %v1892
      %1958 = vst.msk [vmem:[%s289 + $0x44] sm:$0xf] %vm1940, %v1893
      %1959 = vst.msk [vmem:[%s289 + $0x48] sm:$0xf] %vm1940, %v1894
      %1960 = vst.msk [vmem:[%s289 + $0x4c] sm:$0xf] %vm1940, %v1895
      %1961 = vst.msk [vmem:[%s289 + $0x50] sm:$0xf] %vm1940, %v1896
      %1962 = vst.msk [vmem:[%s289 + $0x54] sm:$0xf] %vm1940, %v1897
      %1963 = vst.msk [vmem:[%s289 + $0x58] sm:$0xf] %vm1940, %v1898
      %1964 = vst.msk [vmem:[%s289 + $0x5c] sm:$0xf] %vm1940, %v1899
      %1965 = vst.msk [vmem:[%s289 + $0x60] sm:$0xf] %vm1940, %v1900
      %1966 = vst.msk [vmem:[%s289 + $0x64] sm:$0xf] %vm1940, %v1901
      %1967 = vst.msk [vmem:[%s289 + $0x68] sm:$0xf] %vm1940, %v1902
      %1968 = vst.msk [vmem:[%s289 + $0x6c] sm:$0xf] %vm1940, %v1903
      %1969 = vst.msk [vmem:[%s289 + $0x70] sm:$0xf] %vm1940, %v1904
      %1970 = vst.msk [vmem:[%s289 + $0x74] sm:$0xf] %vm1940, %v1905
      %1971 = vst.msk [vmem:[%s289 + $0x78] sm:$0xf] %vm1940, %v1906
      %1972 = vst.msk [vmem:[%s289 + $0x7c] sm:$0xf] %vm1940, %v1907
      %v1973 = vsel %vm973, %v1780, 0.0
      %v1974 = vsel %vm973, %v1781, 0.0
      %v1975 = vadd.f32 %v1973, %v1974
      %v1976 = vsel %vm973, %v1782, 0.0
      %v1977 = vadd.f32 %v1975, %v1976
      %v1978 = vsel %vm973, %v1783, 0.0
      %v1979 = vadd.f32 %v1977, %v1978
      %v1980 = vsel %vm973, %v1784, 0.0
      %v1981 = vadd.f32 %v1979, %v1980
      %v1982 = vsel %vm973, %v1785, 0.0
      %v1983 = vadd.f32 %v1981, %v1982
      %v1984 = vsel %vm973, %v1786, 0.0
      %v1985 = vadd.f32 %v1983, %v1984
      %v1986 = vsel %vm973, %v1787, 0.0
      %v1987 = vadd.f32 %v1985, %v1986
      %v1988 = vsel %vm973, %v1788, 0.0
      %v1989 = vadd.f32 %v1987, %v1988
      %v1990 = vsel %vm973, %v1789, 0.0
      %v1991 = vadd.f32 %v1989, %v1990
      %v1992 = vsel %vm973, %v1790, 0.0
      %v1993 = vadd.f32 %v1991, %v1992
      %v1994 = vsel %vm973, %v1791, 0.0
      %v1995 = vadd.f32 %v1993, %v1994
      %v1996 = vsel %vm973, %v1792, 0.0
      %v1997 = vadd.f32 %v1995, %v1996
      %v1998 = vsel %vm973, %v1793, 0.0
      %v1999 = vadd.f32 %v1997, %v1998
      %v2000 = vsel %vm973, %v1794, 0.0
      %v2001 = vadd.f32 %v1999, %v2000
      %v2002 = vsel %vm973, %v1795, 0.0
      %v2003 = vadd.f32 %v2001, %v2002
      %v2004 = vsel %vm973, %v1796, 0.0
      %v2005 = vadd.f32 %v2003, %v2004
      %v2006 = vsel %vm973, %v1797, 0.0
      %v2007 = vadd.f32 %v2005, %v2006
      %v2008 = vsel %vm973, %v1798, 0.0
      %v2009 = vadd.f32 %v2007, %v2008
      %v2010 = vsel %vm973, %v1799, 0.0
      %v2011 = vadd.f32 %v2009, %v2010
      %v2012 = vsel %vm973, %v1800, 0.0
      %v2013 = vadd.f32 %v2011, %v2012
      %v2014 = vsel %vm973, %v1801, 0.0
      %v2015 = vadd.f32 %v2013, %v2014
      %v2016 = vsel %vm973, %v1802, 0.0
      %v2017 = vadd.f32 %v2015, %v2016
      %v2018 = vsel %vm973, %v1803, 0.0
      %v2019 = vadd.f32 %v2017, %v2018
      %v2020 = vsel %vm973, %v1804, 0.0
      %v2021 = vadd.f32 %v2019, %v2020
      %v2022 = vsel %vm973, %v1805, 0.0
      %v2023 = vadd.f32 %v2021, %v2022
      %v2024 = vsel %vm973, %v1806, 0.0
      %v2025 = vadd.f32 %v2023, %v2024
      %v2026 = vsel %vm973, %v1807, 0.0
      %v2027 = vadd.f32 %v2025, %v2026
      %v2028 = vsel %vm973, %v1808, 0.0
      %v2029 = vadd.f32 %v2027, %v2028
      %v2030 = vsel %vm973, %v1809, 0.0
      %v2031 = vadd.f32 %v2029, %v2030
      %v2032 = vsel %vm973, %v1810, 0.0
      %v2033 = vadd.f32 %v2031, %v2032
      %v2034 = vsel %vm973, %v1811, 0.0
      %v2035 = vadd.f32 %v2033, %v2034
      %v2036 = vrot.slane %v2035, 4
      %v2037 = vadd.f32 %v2035, %v2036
      %v2038 = vrot.slane %v2037, 2
      %v2039 = vadd.f32 %v2037, %v2038
      %v2040 = vrot.slane %v2039, 1
      %v2041 = vadd.f32 %v2039, %v2040
      %vm2042 = vcmask 253952
      %2043 = vst.msk [vmem:[%s292] sm:$0x1] %vm2042, %v2041
      %v2044 = vmul.f32 %v1780, %v1780
      %v2045 = vmul.f32 %v1781, %v1781
      %v2046 = vmul.f32 %v1782, %v1782
      %v2047 = vmul.f32 %v1783, %v1783
      %v2048 = vmul.f32 %v1784, %v1784
      %v2049 = vmul.f32 %v1785, %v1785
      %v2050 = vmul.f32 %v1786, %v1786
      %v2051 = vmul.f32 %v1787, %v1787
      %v2052 = vmul.f32 %v1788, %v1788
      %v2053 = vmul.f32 %v1789, %v1789
      %v2054 = vmul.f32 %v1790, %v1790
      %v2055 = vmul.f32 %v1791, %v1791
      %v2056 = vmul.f32 %v1792, %v1792
      %v2057 = vmul.f32 %v1793, %v1793
      %v2058 = vmul.f32 %v1794, %v1794
      %v2059 = vmul.f32 %v1795, %v1795
      %v2060 = vmul.f32 %v1796, %v1796
      %v2061 = vmul.f32 %v1797, %v1797
      %v2062 = vmul.f32 %v1798, %v1798
      %v2063 = vmul.f32 %v1799, %v1799
      %v2064 = vmul.f32 %v1800, %v1800
      %v2065 = vmul.f32 %v1801, %v1801
      %v2066 = vmul.f32 %v1802, %v1802
      %v2067 = vmul.f32 %v1803, %v1803
      %v2068 = vmul.f32 %v1804, %v1804
      %v2069 = vmul.f32 %v1805, %v1805
      %v2070 = vmul.f32 %v1806, %v1806
      %v2071 = vmul.f32 %v1807, %v1807
      %v2072 = vmul.f32 %v1808, %v1808
      %v2073 = vmul.f32 %v1809, %v1809
      %v2074 = vmul.f32 %v1810, %v1810
      %v2075 = vmul.f32 %v1811, %v1811
      %v2076 = vsel %vm973, %v2044, 0.0
      %v2077 = vsel %vm973, %v2045, 0.0
      %v2078 = vadd.f32 %v2076, %v2077
      %v2079 = vsel %vm973, %v2046, 0.0
      %v2080 = vadd.f32 %v2078, %v2079
      %v2081 = vsel %vm973, %v2047, 0.0
      %v2082 = vadd.f32 %v2080, %v2081
      %v2083 = vsel %vm973, %v2048, 0.0
      %v2084 = vadd.f32 %v2082, %v2083
      %v2085 = vsel %vm973, %v2049, 0.0
      %v2086 = vadd.f32 %v2084, %v2085
      %v2087 = vsel %vm973, %v2050, 0.0
      %v2088 = vadd.f32 %v2086, %v2087
      %v2089 = vsel %vm973, %v2051, 0.0
      %v2090 = vadd.f32 %v2088, %v2089
      %v2091 = vsel %vm973, %v2052, 0.0
      %v2092 = vadd.f32 %v2090, %v2091
      %v2093 = vsel %vm973, %v2053, 0.0
      %v2094 = vadd.f32 %v2092, %v2093
      %v2095 = vsel %vm973, %v2054, 0.0
      %v2096 = vadd.f32 %v2094, %v2095
      %v2097 = vsel %vm973, %v2055, 0.0
      %v2098 = vadd.f32 %v2096, %v2097
      %v2099 = vsel %vm973, %v2056, 0.0
      %v2100 = vadd.f32 %v2098, %v2099
      %v2101 = vsel %vm973, %v2057, 0.0
      %v2102 = vadd.f32 %v2100, %v2101
      %v2103 = vsel %vm973, %v2058, 0.0
      %v2104 = vadd.f32 %v2102, %v2103
      %v2105 = vsel %vm973, %v2059, 0.0
      %v2106 = vadd.f32 %v2104, %v2105
      %v2107 = vsel %vm973, %v2060, 0.0
      %v2108 = vadd.f32 %v2106, %v2107
      %v2109 = vsel %vm973, %v2061, 0.0
      %v2110 = vadd.f32 %v2108, %v2109
      %v2111 = vsel %vm973, %v2062, 0.0
      %v2112 = vadd.f32 %v2110, %v2111
      %v2113 = vsel %vm973, %v2063, 0.0
      %v2114 = vadd.f32 %v2112, %v2113
      %v2115 = vsel %vm973, %v2064, 0.0
      %v2116 = vadd.f32 %v2114, %v2115
      %v2117 = vsel %vm973, %v2065, 0.0
      %v2118 = vadd.f32 %v2116, %v2117
      %v2119 = vsel %vm973, %v2066, 0.0
      %v2120 = vadd.f32 %v2118, %v2119
      %v2121 = vsel %vm973, %v2067, 0.0
      %v2122 = vadd.f32 %v2120, %v2121
      %v2123 = vsel %vm973, %v2068, 0.0
      %v2124 = vadd.f32 %v2122, %v2123
      %v2125 = vsel %vm973, %v2069, 0.0
      %v2126 = vadd.f32 %v2124, %v2125
      %v2127 = vsel %vm973, %v2070, 0.0
      %v2128 = vadd.f32 %v2126, %v2127
      %v2129 = vsel %vm973, %v2071, 0.0
      %v2130 = vadd.f32 %v2128, %v2129
      %v2131 = vsel %vm973, %v2072, 0.0
      %v2132 = vadd.f32 %v2130, %v2131
      %v2133 = vsel %vm973, %v2073, 0.0
      %v2134 = vadd.f32 %v2132, %v2133
      %v2135 = vsel %vm973, %v2074, 0.0
      %v2136 = vadd.f32 %v2134, %v2135
      %v2137 = vsel %vm973, %v2075, 0.0
      %v2138 = vadd.f32 %v2136, %v2137
      %v2139 = vrot.slane %v2138, 4
      %v2140 = vadd.f32 %v2138, %v2139
      %v2141 = vrot.slane %v2140, 2
      %v2142 = vadd.f32 %v2140, %v2141
      %v2143 = vrot.slane %v2142, 1
      %v2144 = vadd.f32 %v2142, %v2143
      %2145 = vst.msk [vmem:[%s295] sm:$0x1] %vm2042, %v2144
      %p2146 = scmp.lt.s32.totalorder %s19, 1
      %s2147 = scalar_select %p2146, %s19, 1
      %s2148 = smul.addr %s2147, 32
      %s2149 = smul.addr %s2148, 4
      %s2150 = scalar_lea.vmem %s5, %s2149
      %p2151 = scmp.lt.s32.totalorder %s19, 1
      %s2152 = scalar_select %p2151, %s19, 1
      %s2153 = scalar_lea.vmem %s6, %s2152
      %p2154 = scmp.lt.s32.totalorder %s19, 1
      %s2155 = scalar_select %p2154, %s19, 1
      %s2156 = scalar_lea.vmem %s7, %s2155
      // Predicated region
      $region41: #{_lambda_.6} parent=39 // pred_check
        %p2157 = pneg %p147
      $region42: #{_lambda_.6} parent=39 // pred_check_branch
        %2159 = sbr.rel (%p2157) target = $region44
      $region43: #{_lambda_.6} parent=39 // pred_region
        _
      $region44: #{_lambda_.6} parent=39 // pred_fallthru
        _
      // Predicated region
      $region45: #{_lambda_.6} parent=39 // pred_check
        %p2160 = pneg %p173
      $region46: #{_lambda_.6} parent=39 // pred_check_branch
        %2162 = sbr.rel (%p2160) target = $region48
      $region47: #{_lambda_.6} parent=39 // pred_region
        _
      $region48: #{_lambda_.6} parent=39 // pred_fallthru
        _
      // Predicated region
      $region49: #{_lambda_.6} parent=39 // pred_check
        %p2163 = pneg %p199
      $region50: #{_lambda_.6} parent=39 // pred_check_branch
        %2165 = sbr.rel (%p2163) target = $region52
      $region51: #{_lambda_.6} parent=39 // pred_region
        _
      $region52: #{_lambda_.6} parent=39 // pred_fallthru
        _
    $region40: #{_lambda_.6} parent=5 // pred_fallthru
      _
    %p2166 = scmp.le.s32.totalorder 2, %s14
    // Predicated region
    $region53: #{_lambda_.6} parent=5 // pred_check
      %p2167 = pneg %p2166
    $region54: #{_lambda_.6} parent=5 // pred_check_branch
      %2169 = sbr.rel (%p2167) target = $region56
    $region55: #{_lambda_.6} parent=5 // pred_region
      %s2170 = ssub.s32 %s14, 2
      // Predicated region
      $region57: #{_lambda_.6} parent=55 // pred_check
        %p2171 = pneg %p153
      $region58: #{_lambda_.6} parent=55 // pred_check_branch
        %2173 = sbr.rel (%p2171) target = $region60
      $region59: #{_lambda_.6} parent=55 // pred_region
        %p2174 = scmp.lt.s32.totalorder %s20, 1
        %s2175 = scalar_select %p2174, %s20, 1
        %s2176 = smul.addr %s2175, 32
        %s2177 = smul.addr %s2176, 4
        %s2178 = scalar_lea.vmem %s5, %s2177
      $region60: #{_lambda_.6} parent=55 // pred_fallthru
        _
      // Predicated region
      $region61: #{_lambda_.6} parent=55 // pred_check
        %p2179 = pneg %p179
      $region62: #{_lambda_.6} parent=55 // pred_check_branch
        %2181 = sbr.rel (%p2179) target = $region64
      $region63: #{_lambda_.6} parent=55 // pred_region
        %p2182 = scmp.lt.s32.totalorder %s20, 1
        %s2183 = scalar_select %p2182, %s20, 1
        %s2184 = scalar_lea.vmem %s6, %s2183
      $region64: #{_lambda_.6} parent=55 // pred_fallthru
        _
      // Predicated region
      $region65: #{_lambda_.6} parent=55 // pred_check
        %p2185 = pneg %p205
      $region66: #{_lambda_.6} parent=55 // pred_check_branch
        %2187 = sbr.rel (%p2185) target = $region68
      $region67: #{_lambda_.6} parent=55 // pred_region
        %p2188 = scmp.lt.s32.totalorder %s20, 1
        %s2189 = scalar_select %p2188, %s20, 1
        %s2190 = scalar_lea.vmem %s7, %s2189
      $region68: #{_lambda_.6} parent=55 // pred_fallthru
        _
    $region56: #{_lambda_.6} parent=5 // pred_fallthru
      _
  $region6: #{_lambda_.6} parent=0 // loop_footer
    %s18 = sadd.s32 1, %s14
  $region7: #{_lambda_.6} parent=0 // loop_footer_branch
    %13 = sbr.rel target = $region3
  $region8: #{_lambda_.6} parent=0 // loop_exit
    _

</llo_original>
